<compile_context>
chip_gen: v5e
topology: v5e:2x2
jax: 0.10.0
libtpu: 0.0.40
codegen_flags: <defaults>
</compile_context>

<pallas_src>
import functools
import math

import jax
import jax.numpy as jnp
from jax import lax
from jax.experimental import pallas as pl
from jax.experimental.pallas import tpu as pltpu


# ---------------------------------------------------------------------------
# generation-aware sizing helpers
# ---------------------------------------------------------------------------

def _vmem_budget_bytes():
    """~75% of physical VMEM, capped at 100 MiB (v7x 64MiB -> 48MiB,
    v5e/v6e 128MiB -> 96MiB).  Conservative fallback if the query fails."""
    try:
        cap = int(pltpu.get_tpu_info().vmem_capacity_bytes)
    except Exception:
        cap = 64 * 1024 * 1024
    return min(cap * 3 // 4, 100 * 1024 * 1024)


def _largest_divisor(extent, max_val, mult_of=1):
    """Largest divisor of `extent` that is <= max_val and (multiple of
    `mult_of` or the full extent).  Falls back to the full extent."""
    best = None
    for t in range(1, extent + 1):
        if extent % t == 0 and t <= max_val and (t % mult_of == 0 or t == extent):
            best = t
    return best if best is not None else extent


def _plan_sampling(tiled_extent, fixed_extent, tc, budget, n_bf16_outs, mult_of):
    """Pick the spatial tile on the non-sampled axis of a sampling kernel and
    whether the f32 inputs need single-buffering (VMEM-tight, e.g. v7x)."""
    cap = budget * 6 // 10                 # leave headroom for compiler scratch
    tmp = 4 * 4                            # x load, pos, wgt, loop carry (f32)
    out_db = 2 * 2 * n_bf16_outs           # bf16 outputs, double-buffered
    row = fixed_extent * tc
    per_db = 2 * (4 + 4) + out_db + tmp    # x + offset double-buffered
    per_sb = (4 + 4) + out_db + tmp        # x + offset single-buffered
    single = False
    max_t = cap // (per_db * row)
    if max_t < 1:                          # only triggers on very large W/H * C
        single = True
        max_t = max(cap // (per_sb * row), 1)
    return _largest_divisor(tiled_extent, max_t, mult_of), single


def _pick_rows(hw, c, budget):
    """HW-tile for the fuse+proj kernel (bf16-friendly multiple of 16)."""
    cap = budget * 6 // 10
    w_bytes = 2 * (3 * c * c * 2)          # stacked bf16 weights, double-buffered
    per_row = 30 * c                       # 3 bf16 ins (db) + f32 out (db) + temps
    max_t = max((cap - w_bytes) // per_row, 16)
    max_t = min(max_t, 2048)
    return _largest_divisor(hw, max_t, mult_of=16)


# ---------------------------------------------------------------------------
# kernels
# ---------------------------------------------------------------------------

def _sample_w_kernel(x_ref, dx_ref, sw_ref, xb_ref, pw_ref, px_ref, *, unroll):
    """Deformable 1x1 sampling along W (bilinear, zero padding, per-channel
    offsets).  Also emits a bf16 copy of x and per-tile spatial partial sums."""
    f32 = jnp.float32
    x = x_ref[...]                                         # [tH, W, tc] f32
    tH, W, tc = x.shape
    # sample x-coordinate; hat weights max(0, 1-|p-s|) == bilinear + zero pad
    pos = lax.broadcasted_iota(jnp.int32, (tH, W, tc), 1).astype(f32) + dx_ref[...]

    def body(s, acc):
        wgt = jnp.maximum(0.0, 1.0 - jnp.abs(pos - s.astype(f32)))
        # TODO(synk): switch to a stride-0 sublane-broadcast load
        # (x_ref[:, pl.ds(s, W, stride=0), :]) once broadly supported so the
        # column broadcast rides the load slot instead of a per-iter relayout.
        col = x_ref[:, pl.ds(s, 1), :]                     # [tH, 1, tc]
        return acc + wgt * col

    sample = lax.fori_loop(0, W, body, jnp.zeros((tH, W, tc), f32), unroll=unroll)

    # partial spatial sums in f32 (before the bf16 downcast) for the fusion MLP
    pw_ref[...] = jnp.sum(sample, axis=0).sum(axis=0, keepdims=True)   # [1, tc]
    px_ref[...] = jnp.sum(x, axis=0).sum(axis=0, keepdims=True)
    sw_ref[...] = sample.astype(sw_ref.dtype)
    xb_ref[...] = x.astype(xb_ref.dtype)


def _sample_h_kernel(x_ref, dy_ref, sh_ref, ph_ref, *, unroll):
    """Deformable 1x1 sampling along H (bilinear, zero padding, per-channel
    offsets) + per-tile spatial partial sums."""
    f32 = jnp.float32
    x = x_ref[...]                                         # [H, tW, tc] f32
    H, tW, tc = x.shape
    pos = lax.broadcasted_iota(jnp.int32, (H, tW, tc), 0).astype(f32) + dy_ref[...]

    def body(s, acc):
        wgt = jnp.maximum(0.0, 1.0 - jnp.abs(pos - s.astype(f32)))
        row = x_ref[pl.ds(s, 1), :, :]                     # [1, tW, tc]
        return acc + wgt * row

    sample = lax.fori_loop(0, H, body, jnp.zeros((H, tW, tc), f32), unroll=unroll)
    ph_ref[...] = jnp.sum(sample, axis=0).sum(axis=0, keepdims=True)   # [1, tc]
    sh_ref[...] = sample.astype(sh_ref.dtype)


def _fuse_proj_kernel(sw_ref, sh_ref, xb_ref, w_ref, b_ref, o_ref, *, stack_k):
    """out = sw@W1 + sh@W2 + x@W3 + b_eff with per-batch effective weights that
    already fold the branch softmax scales and the output projection.
    bf16 MXU, f32 accumulation."""
    f32 = jnp.float32
    if stack_k:
        # single K-stacked matmul: fills the 256-wide MXU on v6e/v7x
        lhs = jnp.concatenate([sw_ref[...], sh_ref[...], xb_ref[...]], axis=-1)
        acc = jnp.dot(lhs, w_ref[...], preferred_element_type=f32)
    else:
        acc = jnp.dot(sw_ref[...], w_ref[0], preferred_element_type=f32)
        acc = acc + jnp.dot(sh_ref[...], w_ref[1], preferred_element_type=f32)
        acc = acc + jnp.dot(xb_ref[...], w_ref[2], preferred_element_type=f32)
    o_ref[...] = acc + b_ref[...]


# ---------------------------------------------------------------------------
# params + wrapper
# ---------------------------------------------------------------------------

def init_params(key, dim):
    hidden = dim // 4
    ks = jax.random.split(key, 11)

    def u(k, shape, fan_in):
        b = 1.0 / math.sqrt(fan_in)
        return jax.random.uniform(k, shape, jnp.float32, -b, b)

    return dict(
        tm_c_w=u(ks[0], (dim, dim), dim),               # Linear(dim, dim, bias=False)
        tm_h_w=u(ks[1], (dim, dim, 1, 1), dim),         # MixerOp 'h' 1x1 conv weight
        tm_h_b=u(ks[2], (dim,), dim),
        tm_w_w=u(ks[3], (dim, dim, 1, 1), dim),         # MixerOp 'w' 1x1 conv weight
        tm_w_b=u(ks[4], (dim,), dim),
        fc1_w=u(ks[5], (hidden, dim), dim),             # Mlp fc1
        fc1_b=u(ks[6], (hidden,), dim),
        fc2_w=u(ks[7], (dim * 3, hidden), hidden),      # Mlp fc2
        fc2_b=u(ks[8], (dim * 3,), hidden),
        proj_w=u(ks[9], (dim, dim), dim),               # proj Linear
        proj_b=u(ks[10], (dim,), dim),
    )


def token_mixer_forward(x, offset, params):
    """x: [B, H, W, C]   offset: [B, 2C, H, W]   -> [B, H, W, C] (f32)"""
    B, H, W, C = x.shape
    assert offset.shape == (B, 2 * C, H, W)
    f32, bf16 = jnp.float32, jnp.bfloat16

    budget = _vmem_budget_bytes()

    def cparams(n_axes):
        return pltpu.CompilerParams(
            dimension_semantics=("parallel",) * n_axes,
            vmem_limit_bytes=budget)

    # channel tiling: 128 lanes when possible, else whole C
    tc = 128 if (C > 128 and C % 128 == 0) else C
    n_ct = C // tc

    # MixerOp('w') consumes offset[:, :C] as dx; MixerOp('h') offset[:, C:] as dy.
    # TODO(synk): fold these NCHW->NHWC transposes into the sampling kernels
    # (offset BlockSpec (1, tc, tH, W) + in-kernel relayout) or have the offset
    # producer emit channel-last; for now XLA does one extra HBM pass per branch.
    dxw = jnp.transpose(offset[:, :C], (0, 2, 3, 1)).astype(f32)   # [B, H, W, C]
    dyh = jnp.transpose(offset[:, C:], (0, 2, 3, 1)).astype(f32)   # [B, H, W, C]
    x_f32 = x.astype(f32)

    # ---------------- kernel 1a: W-branch deformable sampling ---------------
    tH, single_w = _plan_sampling(H, W, tc, budget, n_bf16_outs=2, mult_of=1)
    n_ht = H // tH
    in_mode_w = dict(pipeline_mode=pl.Buffered(1)) if single_w else {}
    img_w_in = pl.BlockSpec((None, tH, W, tc), lambda b, h, c: (b, h, 0, c),
                            **in_mode_w)
    img_w_out = pl.BlockSpec((None, tH, W, tc), lambda b, h, c: (b, h, 0, c))
    psum_w_spec = pl.BlockSpec((None, None, 1, tc), lambda b, h, c: (b, h, 0, c))

    sw, xb, pw, px = pl.pallas_call(
        functools.partial(_sample_w_kernel, unroll=min(8, W)),
        grid=(B, n_ht, n_ct),
        in_specs=[img_w_in, img_w_in],
        out_specs=[img_w_out, img_w_out, psum_w_spec, psum_w_spec],
        out_shape=[jax.ShapeDtypeStruct((B, H, W, C), bf16),
                   jax.ShapeDtypeStruct((B, H, W, C), bf16),
                   jax.ShapeDtypeStruct((B, n_ht, 1, C), f32),
                   jax.ShapeDtypeStruct((B, n_ht, 1, C), f32)],
        compiler_params=cparams(3),
    )(x_f32, dxw)

    # ---------------- kernel 1b: H-branch deformable sampling ---------------
    tW, single_h = _plan_sampling(W, H, tc, budget, n_bf16_outs=1, mult_of=16)
    n_wt = W // tW
    in_mode_h = dict(pipeline_mode=pl.Buffered(1)) if single_h else {}
    img_h_in = pl.BlockSpec((None, H, tW, tc), lambda b, w, c: (b, 0, w, c),
                            **in_mode_h)
    img_h_out = pl.BlockSpec((None, H, tW, tc), lambda b, w, c: (b, 0, w, c))
    psum_h_spec = pl.BlockSpec((None, None, 1, tc), lambda b, w, c: (b, w, 0, c))

    sh, ph = pl.pallas_call(
        functools.partial(_sample_h_kernel, unroll=min(8, H)),
        grid=(B, n_wt, n_ct),
        in_specs=[img_h_in, img_h_in],
        out_specs=[img_h_out, psum_h_spec],
        out_shape=[jax.ShapeDtypeStruct((B, H, W, C), bf16),
                   jax.ShapeDtypeStruct((B, n_wt, 1, C), f32)],
        compiler_params=cparams(3),
    )(x_f32, dyh)

    # ---------------- fusion MLP + branch softmax (O(B*C), plain JAX) -------
    inv_hw = 1.0 / float(H * W)
    m_w = jnp.sum(pw[:, :, 0, :], axis=1) * inv_hw                 # [B, C]
    m_x = jnp.sum(px[:, :, 0, :], axis=1) * inv_hw
    m_h = jnp.sum(ph[:, :, 0, :], axis=1) * inv_hw

    wtw = params['tm_w_w'][:, :, 0, 0].T                           # [C_in, C_out]
    wth = params['tm_h_w'][:, :, 0, 0].T
    wtc = params['tm_c_w'].T
    bw, bh = params['tm_w_b'], params['tm_h_b']

    a_pre = m_w @ wtw + bw + m_h @ wth + bh + m_x @ wtc            # mean of (w+h+c)
    hdn = jax.nn.gelu(a_pre @ params['fc1_w'].T + params['fc1_b'],
                      approximate=False)                           # exact GELU
    fused = hdn @ params['fc2_w'].T + params['fc2_b']              # [B, 3C]
    a = jax.nn.softmax(fused.reshape(B, C, 3), axis=2)             # softmax / branch
    a0, a1, a2 = a[..., 0], a[..., 1], a[..., 2]                   # [B, C] each

    # Fold branch scales + output projection into per-batch effective weights.
    wp = params['proj_w'].T                                        # [C, C]
    w1 = jnp.einsum('io,bo,op->bip', wtw, a0, wp)                  # [B, C, C]
    w2 = jnp.einsum('io,bo,op->bip', wth, a1, wp)
    w3 = jnp.einsum('io,bo,op->bip', wtc, a2, wp)
    w_all = jnp.stack([w1, w2, w3], axis=1).astype(bf16)           # [B, 3, C, C]
    beff = ((bw[None, :] * a0 + bh[None, :] * a1) @ wp
            + params['proj_b'][None, :]).astype(f32)               # [B, C]

    # ---------------- kernel 2: fuse + projection, HW-tiled -----------------
    HW = H * W
    T = _pick_rows(HW, C, budget)
    sw2 = sw.reshape(B, HW, C)
    sh2 = sh.reshape(B, HW, C)
    xb2 = xb.reshape(B, HW, C)

    stack_k = (C % 128 == 0)
    if stack_k:
        w_in = w_all.reshape(B, 3 * C, C)
        w_spec = pl.BlockSpec((None, 3 * C, C), lambda b, t: (b, 0, 0))
    else:
        w_in = w_all
        w_spec = pl.BlockSpec((None, 3, C, C), lambda b, t: (b, 0, 0, 0))

    feat_spec = pl.BlockSpec((None, T, C), lambda b, t: (b, t, 0))
    bias_spec = pl.BlockSpec((None, 1, C), lambda b, t: (b, 0, 0))

    out = pl.pallas_call(
        functools.partial(_fuse_proj_kernel, stack_k=stack_k),
        grid=(B, HW // T),
        in_specs=[feat_spec, feat_spec, feat_spec, w_spec, bias_spec],
        out_specs=feat_spec,
        out_shape=jax.ShapeDtypeStruct((B, HW, C), f32),
        compiler_params=cparams(2),
    )(sw2, sh2, xb2, w_in, beff.reshape(B, 1, C))
    return out.reshape(B, H, W, C)


if __name__ == "__main__":
    B, H, W, C = 2, 8, 8, 16
    key = jax.random.PRNGKey(0)
    kx, koff, kp = jax.random.split(key, 3)
    x = jax.random.normal(kx, (B, H, W, C), jnp.float32)
    offset = 2.0 * jax.random.normal(koff, (B, 2 * C, H, W), jnp.float32)
    params = init_params(kp, C)

    out = jax.jit(lambda xx, oo: token_mixer_forward(xx, oo, params))(x, offset)
    jax.block_until_ready(out)
    assert out.shape == (B, H, W, C) and out.dtype == jnp.float32
    print("KERNEL_OK")
</pallas_src>

<mosaic_0001>
module attributes {stable_mosaic.version = 11 : i64} {
  func.func @_sample_w_kernel(%arg0: i32, %arg1: i32, %arg2: i32, %arg3: memref<1x8x8x16xf32, #tpu.memory_space<vmem>>, %arg4: memref<1x8x8x16xf32, #tpu.memory_space<vmem>>, %arg5: memref<1x8x8x16xbf16, #tpu.memory_space<vmem>>, %arg6: memref<1x8x8x16xbf16, #tpu.memory_space<vmem>>, %arg7: memref<1x1x1x16xf32, #tpu.memory_space<vmem>>, %arg8: memref<1x1x1x16xf32, #tpu.memory_space<vmem>>) attributes {dimension_semantics = [#tpu.dimension_semantics<parallel>, #tpu.dimension_semantics<parallel>, #tpu.dimension_semantics<parallel>], iteration_bounds = array<i64: 2, 1, 1>, scalar_prefetch = 0 : i64, scratch_operands = 0 : i64, tpu.core_type = #tpu.core_type<tc>, window_params = [{transform_indices = @transform_0, window_bounds = array<i64: 1, 8, 8, 16>}, {transform_indices = @transform_1, window_bounds = array<i64: 1, 8, 8, 16>}, {transform_indices = @transform_2, window_bounds = array<i64: 1, 8, 8, 16>}, {transform_indices = @transform_3, window_bounds = array<i64: 1, 8, 8, 16>}, {transform_indices = @transform_4, window_bounds = array<i64: 1, 1, 1, 16>}, {transform_indices = @transform_5, window_bounds = array<i64: 1, 1, 1, 16>}]} {
    %c0 = arith.constant 0 : index
    %c0_0 = arith.constant 0 : index
    %c0_1 = arith.constant 0 : index
    %c0_2 = arith.constant 0 : index
    %0 = vector.load %arg3[%c0, %c0_0, %c0_1, %c0_2] : memref<1x8x8x16xf32, #tpu.memory_space<vmem>>, vector<1x8x8x16xf32>
    %1 = vector.shape_cast %0 : vector<1x8x8x16xf32> to vector<8x8x16xf32>
    %2 = tpu.iota {dimensions = array<i32: 1>} : vector<8x8x16xi32>
    %3 = arith.sitofp %2 : vector<8x8x16xi32> to vector<8x8x16xf32>
    %c0_3 = arith.constant 0 : index
    %c0_4 = arith.constant 0 : index
    %c0_5 = arith.constant 0 : index
    %c0_6 = arith.constant 0 : index
    %4 = vector.load %arg4[%c0_3, %c0_4, %c0_5, %c0_6] : memref<1x8x8x16xf32, #tpu.memory_space<vmem>>, vector<1x8x8x16xf32>
    %5 = vector.shape_cast %4 : vector<1x8x8x16xf32> to vector<8x8x16xf32>
    %6 = arith.addf %3, %5 : vector<8x8x16xf32>
    %cst = arith.constant 0.000000e+00 : f32
    %7 = vector.broadcast %cst : f32 to vector<8x8x16xf32>
    %c0_i32 = arith.constant 0 : i32
    %8 = arith.sitofp %c0_i32 : i32 to f32
    %9 = vector.broadcast %8 : f32 to vector<8x8x16xf32>
    %10 = arith.subf %6, %9 : vector<8x8x16xf32>
    %11 = math.absf %10 : vector<8x8x16xf32>
    %cst_7 = arith.constant 1.000000e+00 : f32
    %12 = vector.broadcast %cst_7 : f32 to vector<8x8x16xf32>
    %13 = arith.subf %12, %11 : vector<8x8x16xf32>
    %cst_8 = arith.constant 0.000000e+00 : f32
    %14 = vector.broadcast %cst_8 : f32 to vector<8x8x16xf32>
    %15 = arith.maximumf %14, %13 : vector<8x8x16xf32>
    %c0_9 = arith.constant 0 : index
    %c0_10 = arith.constant 0 : index
    %16 = arith.index_cast %c0_i32 : i32 to index
    %c0_11 = arith.constant 0 : index
    %17 = vector.load %arg3[%c0_9, %c0_10, %16, %c0_11] : memref<1x8x8x16xf32, #tpu.memory_space<vmem>>, vector<1x8x1x16xf32>
    %18 = vector.shape_cast %17 : vector<1x8x1x16xf32> to vector<8x1x16xf32>
    %19 = vector.broadcast %18 : vector<8x1x16xf32> to vector<8x8x16xf32>
    %20 = arith.mulf %15, %19 : vector<8x8x16xf32>
    %21 = arith.addf %7, %20 : vector<8x8x16xf32>
    %c1_i32 = arith.constant 1 : i32
    %22 = arith.sitofp %c1_i32 : i32 to f32
    %23 = vector.broadcast %22 : f32 to vector<8x8x16xf32>
    %24 = arith.subf %6, %23 : vector<8x8x16xf32>
    %25 = math.absf %24 : vector<8x8x16xf32>
    %cst_12 = arith.constant 1.000000e+00 : f32
    %26 = vector.broadcast %cst_12 : f32 to vector<8x8x16xf32>
    %27 = arith.subf %26, %25 : vector<8x8x16xf32>
    %cst_13 = arith.constant 0.000000e+00 : f32
    %28 = vector.broadcast %cst_13 : f32 to vector<8x8x16xf32>
    %29 = arith.maximumf %28, %27 : vector<8x8x16xf32>
    %c0_14 = arith.constant 0 : index
    %c0_15 = arith.constant 0 : index
    %30 = arith.index_cast %c1_i32 : i32 to index
    %c0_16 = arith.constant 0 : index
    %31 = vector.load %arg3[%c0_14, %c0_15, %30, %c0_16] : memref<1x8x8x16xf32, #tpu.memory_space<vmem>>, vector<1x8x1x16xf32>
    %32 = vector.shape_cast %31 : vector<1x8x1x16xf32> to vector<8x1x16xf32>
    %33 = vector.broadcast %32 : vector<8x1x16xf32> to vector<8x8x16xf32>
    %34 = arith.mulf %29, %33 : vector<8x8x16xf32>
    %35 = arith.addf %21, %34 : vector<8x8x16xf32>
    %c2_i32 = arith.constant 2 : i32
    %36 = arith.sitofp %c2_i32 : i32 to f32
    %37 = vector.broadcast %36 : f32 to vector<8x8x16xf32>
    %38 = arith.subf %6, %37 : vector<8x8x16xf32>
    %39 = math.absf %38 : vector<8x8x16xf32>
    %cst_17 = arith.constant 1.000000e+00 : f32
    %40 = vector.broadcast %cst_17 : f32 to vector<8x8x16xf32>
    %41 = arith.subf %40, %39 : vector<8x8x16xf32>
    %cst_18 = arith.constant 0.000000e+00 : f32
    %42 = vector.broadcast %cst_18 : f32 to vector<8x8x16xf32>
    %43 = arith.maximumf %42, %41 : vector<8x8x16xf32>
    %c0_19 = arith.constant 0 : index
    %c0_20 = arith.constant 0 : index
    %44 = arith.index_cast %c2_i32 : i32 to index
    %c0_21 = arith.constant 0 : index
    %45 = vector.load %arg3[%c0_19, %c0_20, %44, %c0_21] : memref<1x8x8x16xf32, #tpu.memory_space<vmem>>, vector<1x8x1x16xf32>
    %46 = vector.shape_cast %45 : vector<1x8x1x16xf32> to vector<8x1x16xf32>
    %47 = vector.broadcast %46 : vector<8x1x16xf32> to vector<8x8x16xf32>
    %48 = arith.mulf %43, %47 : vector<8x8x16xf32>
    %49 = arith.addf %35, %48 : vector<8x8x16xf32>
    %c3_i32 = arith.constant 3 : i32
    %50 = arith.sitofp %c3_i32 : i32 to f32
    %51 = vector.broadcast %50 : f32 to vector<8x8x16xf32>
    %52 = arith.subf %6, %51 : vector<8x8x16xf32>
    %53 = math.absf %52 : vector<8x8x16xf32>
    %cst_22 = arith.constant 1.000000e+00 : f32
    %54 = vector.broadcast %cst_22 : f32 to vector<8x8x16xf32>
    %55 = arith.subf %54, %53 : vector<8x8x16xf32>
    %cst_23 = arith.constant 0.000000e+00 : f32
    %56 = vector.broadcast %cst_23 : f32 to vector<8x8x16xf32>
    %57 = arith.maximumf %56, %55 : vector<8x8x16xf32>
    %c0_24 = arith.constant 0 : index
    %c0_25 = arith.constant 0 : index
    %58 = arith.index_cast %c3_i32 : i32 to index
    %c0_26 = arith.constant 0 : index
    %59 = vector.load %arg3[%c0_24, %c0_25, %58, %c0_26] : memref<1x8x8x16xf32, #tpu.memory_space<vmem>>, vector<1x8x1x16xf32>
    %60 = vector.shape_cast %59 : vector<1x8x1x16xf32> to vector<8x1x16xf32>
    %61 = vector.broadcast %60 : vector<8x1x16xf32> to vector<8x8x16xf32>
    %62 = arith.mulf %57, %61 : vector<8x8x16xf32>
    %63 = arith.addf %49, %62 : vector<8x8x16xf32>
    %c4_i32 = arith.constant 4 : i32
    %64 = arith.sitofp %c4_i32 : i32 to f32
    %65 = vector.broadcast %64 : f32 to vector<8x8x16xf32>
    %66 = arith.subf %6, %65 : vector<8x8x16xf32>
    %67 = math.absf %66 : vector<8x8x16xf32>
    %cst_27 = arith.constant 1.000000e+00 : f32
    %68 = vector.broadcast %cst_27 : f32 to vector<8x8x16xf32>
    %69 = arith.subf %68, %67 : vector<8x8x16xf32>
    %cst_28 = arith.constant 0.000000e+00 : f32
    %70 = vector.broadcast %cst_28 : f32 to vector<8x8x16xf32>
    %71 = arith.maximumf %70, %69 : vector<8x8x16xf32>
    %c0_29 = arith.constant 0 : index
    %c0_30 = arith.constant 0 : index
    %72 = arith.index_cast %c4_i32 : i32 to index
    %c0_31 = arith.constant 0 : index
    %73 = vector.load %arg3[%c0_29, %c0_30, %72, %c0_31] : memref<1x8x8x16xf32, #tpu.memory_space<vmem>>, vector<1x8x1x16xf32>
    %74 = vector.shape_cast %73 : vector<1x8x1x16xf32> to vector<8x1x16xf32>
    %75 = vector.broadcast %74 : vector<8x1x16xf32> to vector<8x8x16xf32>
    %76 = arith.mulf %71, %75 : vector<8x8x16xf32>
    %77 = arith.addf %63, %76 : vector<8x8x16xf32>
    %c5_i32 = arith.constant 5 : i32
    %78 = arith.sitofp %c5_i32 : i32 to f32
    %79 = vector.broadcast %78 : f32 to vector<8x8x16xf32>
    %80 = arith.subf %6, %79 : vector<8x8x16xf32>
    %81 = math.absf %80 : vector<8x8x16xf32>
    %cst_32 = arith.constant 1.000000e+00 : f32
    %82 = vector.broadcast %cst_32 : f32 to vector<8x8x16xf32>
    %83 = arith.subf %82, %81 : vector<8x8x16xf32>
    %cst_33 = arith.constant 0.000000e+00 : f32
    %84 = vector.broadcast %cst_33 : f32 to vector<8x8x16xf32>
    %85 = arith.maximumf %84, %83 : vector<8x8x16xf32>
    %c0_34 = arith.constant 0 : index
    %c0_35 = arith.constant 0 : index
    %86 = arith.index_cast %c5_i32 : i32 to index
    %c0_36 = arith.constant 0 : index
    %87 = vector.load %arg3[%c0_34, %c0_35, %86, %c0_36] : memref<1x8x8x16xf32, #tpu.memory_space<vmem>>, vector<1x8x1x16xf32>
    %88 = vector.shape_cast %87 : vector<1x8x1x16xf32> to vector<8x1x16xf32>
    %89 = vector.broadcast %88 : vector<8x1x16xf32> to vector<8x8x16xf32>
    %90 = arith.mulf %85, %89 : vector<8x8x16xf32>
    %91 = arith.addf %77, %90 : vector<8x8x16xf32>
    %c6_i32 = arith.constant 6 : i32
    %92 = arith.sitofp %c6_i32 : i32 to f32
    %93 = vector.broadcast %92 : f32 to vector<8x8x16xf32>
    %94 = arith.subf %6, %93 : vector<8x8x16xf32>
    %95 = math.absf %94 : vector<8x8x16xf32>
    %cst_37 = arith.constant 1.000000e+00 : f32
    %96 = vector.broadcast %cst_37 : f32 to vector<8x8x16xf32>
    %97 = arith.subf %96, %95 : vector<8x8x16xf32>
    %cst_38 = arith.constant 0.000000e+00 : f32
    %98 = vector.broadcast %cst_38 : f32 to vector<8x8x16xf32>
    %99 = arith.maximumf %98, %97 : vector<8x8x16xf32>
    %c0_39 = arith.constant 0 : index
    %c0_40 = arith.constant 0 : index
    %100 = arith.index_cast %c6_i32 : i32 to index
    %c0_41 = arith.constant 0 : index
    %101 = vector.load %arg3[%c0_39, %c0_40, %100, %c0_41] : memref<1x8x8x16xf32, #tpu.memory_space<vmem>>, vector<1x8x1x16xf32>
    %102 = vector.shape_cast %101 : vector<1x8x1x16xf32> to vector<8x1x16xf32>
    %103 = vector.broadcast %102 : vector<8x1x16xf32> to vector<8x8x16xf32>
    %104 = arith.mulf %99, %103 : vector<8x8x16xf32>
    %105 = arith.addf %91, %104 : vector<8x8x16xf32>
    %c7_i32 = arith.constant 7 : i32
    %106 = arith.sitofp %c7_i32 : i32 to f32
    %107 = vector.broadcast %106 : f32 to vector<8x8x16xf32>
    %108 = arith.subf %6, %107 : vector<8x8x16xf32>
    %109 = math.absf %108 : vector<8x8x16xf32>
    %cst_42 = arith.constant 1.000000e+00 : f32
    %110 = vector.broadcast %cst_42 : f32 to vector<8x8x16xf32>
    %111 = arith.subf %110, %109 : vector<8x8x16xf32>
    %cst_43 = arith.constant 0.000000e+00 : f32
    %112 = vector.broadcast %cst_43 : f32 to vector<8x8x16xf32>
    %113 = arith.maximumf %112, %111 : vector<8x8x16xf32>
    %c0_44 = arith.constant 0 : index
    %c0_45 = arith.constant 0 : index
    %114 = arith.index_cast %c7_i32 : i32 to index
    %c0_46 = arith.constant 0 : index
    %115 = vector.load %arg3[%c0_44, %c0_45, %114, %c0_46] : memref<1x8x8x16xf32, #tpu.memory_space<vmem>>, vector<1x8x1x16xf32>
    %116 = vector.shape_cast %115 : vector<1x8x1x16xf32> to vector<8x1x16xf32>
    %117 = vector.broadcast %116 : vector<8x1x16xf32> to vector<8x8x16xf32>
    %118 = arith.mulf %113, %117 : vector<8x8x16xf32>
    %119 = arith.addf %105, %118 : vector<8x8x16xf32>
    %c8_i32 = arith.constant 8 : i32
    %cst_47 = arith.constant dense<0.000000e+00> : vector<8x16xf32>
    %120 = vector.multi_reduction <add>, %119, %cst_47 [0] : vector<8x8x16xf32> to vector<8x16xf32>
    %cst_48 = arith.constant dense<0.000000e+00> : vector<16xf32>
    %121 = vector.multi_reduction <add>, %120, %cst_48 [0] : vector<8x16xf32> to vector<16xf32>
    %122 = vector.shape_cast %121 : vector<16xf32> to vector<1x16xf32>
    %c0_49 = arith.constant 0 : index
    %c0_50 = arith.constant 0 : index
    %c0_51 = arith.constant 0 : index
    %c0_52 = arith.constant 0 : index
    %123 = vector.load %arg7[%c0_49, %c0_50, %c0_51, %c0_52] : memref<1x1x1x16xf32, #tpu.memory_space<vmem>>, vector<1x1x1x16xf32>
    %124 = vector.shape_cast %123 : vector<1x1x1x16xf32> to vector<1x16xf32>
    %125 = vector.shape_cast %122 : vector<1x16xf32> to vector<1x1x1x16xf32>
    tpu.vector_store %arg7[%c0_49, %c0_50, %c0_51, %c0_52], %125 {strides = array<i32>} : memref<1x1x1x16xf32, #tpu.memory_space<vmem>>, vector<1x1x1x16xf32>,
    %cst_53 = arith.constant dense<0.000000e+00> : vector<8x16xf32>
    %126 = vector.multi_reduction <add>, %1, %cst_53 [0] : vector<8x8x16xf32> to vector<8x16xf32>
    %cst_54 = arith.constant dense<0.000000e+00> : vector<16xf32>
    %127 = vector.multi_reduction <add>, %126, %cst_54 [0] : vector<8x16xf32> to vector<16xf32>
    %128 = vector.shape_cast %127 : vector<16xf32> to vector<1x16xf32>
    %c0_55 = arith.constant 0 : index
    %c0_56 = arith.constant 0 : index
    %c0_57 = arith.constant 0 : index
    %c0_58 = arith.constant 0 : index
    %129 = vector.load %arg8[%c0_55, %c0_56, %c0_57, %c0_58] : memref<1x1x1x16xf32, #tpu.memory_space<vmem>>, vector<1x1x1x16xf32>
    %130 = vector.shape_cast %129 : vector<1x1x1x16xf32> to vector<1x16xf32>
    %131 = vector.shape_cast %128 : vector<1x16xf32> to vector<1x1x1x16xf32>
    tpu.vector_store %arg8[%c0_55, %c0_56, %c0_57, %c0_58], %131 {strides = array<i32>} : memref<1x1x1x16xf32, #tpu.memory_space<vmem>>, vector<1x1x1x16xf32>,
    %132 = arith.truncf %119 : vector<8x8x16xf32> to vector<8x8x16xbf16>
    %c0_59 = arith.constant 0 : index
    %c0_60 = arith.constant 0 : index
    %c0_61 = arith.constant 0 : index
    %c0_62 = arith.constant 0 : index
    %133 = vector.load %arg5[%c0_59, %c0_60, %c0_61, %c0_62] : memref<1x8x8x16xbf16, #tpu.memory_space<vmem>>, vector<1x8x8x16xbf16>
    %134 = vector.shape_cast %133 : vector<1x8x8x16xbf16> to vector<8x8x16xbf16>
    %135 = vector.shape_cast %132 : vector<8x8x16xbf16> to vector<1x8x8x16xbf16>
    tpu.vector_store %arg5[%c0_59, %c0_60, %c0_61, %c0_62], %135 {strides = array<i32>} : memref<1x8x8x16xbf16, #tpu.memory_space<vmem>>, vector<1x8x8x16xbf16>,
    %136 = arith.truncf %1 : vector<8x8x16xf32> to vector<8x8x16xbf16>
    %c0_63 = arith.constant 0 : index
    %c0_64 = arith.constant 0 : index
    %c0_65 = arith.constant 0 : index
    %c0_66 = arith.constant 0 : index
    %137 = vector.load %arg6[%c0_63, %c0_64, %c0_65, %c0_66] : memref<1x8x8x16xbf16, #tpu.memory_space<vmem>>, vector<1x8x8x16xbf16>
    %138 = vector.shape_cast %137 : vector<1x8x8x16xbf16> to vector<8x8x16xbf16>
    %139 = vector.shape_cast %136 : vector<8x8x16xbf16> to vector<1x8x8x16xbf16>
    tpu.vector_store %arg6[%c0_63, %c0_64, %c0_65, %c0_66], %139 {strides = array<i32>} : memref<1x8x8x16xbf16, #tpu.memory_space<vmem>>, vector<1x8x8x16xbf16>,
    return
  }
  func.func @transform_0(%arg0: i32, %arg1: i32, %arg2: i32) -> (i32, i32, i32, i32) {
    %c0_i32 = arith.constant 0 : i32
    %c0_i32_0 = arith.constant 0 : i32
    return %arg0, %arg1, %c0_i32, %arg2 : i32, i32, i32, i32
  }
  func.func @transform_1(%arg0: i32, %arg1: i32, %arg2: i32) -> (i32, i32, i32, i32) {
    %c0_i32 = arith.constant 0 : i32
    %c0_i32_0 = arith.constant 0 : i32
    return %arg0, %arg1, %c0_i32, %arg2 : i32, i32, i32, i32
  }
  func.func @transform_2(%arg0: i32, %arg1: i32, %arg2: i32) -> (i32, i32, i32, i32) {
    %c0_i32 = arith.constant 0 : i32
    %c0_i32_0 = arith.constant 0 : i32
    return %arg0, %arg1, %c0_i32, %arg2 : i32, i32, i32, i32
  }
  func.func @transform_3(%arg0: i32, %arg1: i32, %arg2: i32) -> (i32, i32, i32, i32) {
    %c0_i32 = arith.constant 0 : i32
    %c0_i32_0 = arith.constant 0 : i32
    return %arg0, %arg1, %c0_i32, %arg2 : i32, i32, i32, i32
  }
  func.func @transform_4(%arg0: i32, %arg1: i32, %arg2: i32) -> (i32, i32, i32, i32) {
    %c0_i32 = arith.constant 0 : i32
    %c0_i32_0 = arith.constant 0 : i32
    return %arg0, %arg1, %c0_i32, %arg2 : i32, i32, i32, i32
  }
  func.func @transform_5(%arg0: i32, %arg1: i32, %arg2: i32) -> (i32, i32, i32, i32) {
    %c0_i32 = arith.constant 0 : i32
    %c0_i32_0 = arith.constant 0 : i32
    return %arg0, %arg1, %c0_i32, %arg2 : i32, i32, i32, i32
  }
}

module attributes {stable_mosaic.version = 11 : i64} {
  func.func @_sample_h_kernel(%arg0: i32, %arg1: i32, %arg2: i32, %arg3: memref<1x8x8x16xf32, #tpu.memory_space<vmem>>, %arg4: memref<1x8x8x16xf32, #tpu.memory_space<vmem>>, %arg5: memref<1x8x8x16xbf16, #tpu.memory_space<vmem>>, %arg6: memref<1x1x1x16xf32, #tpu.memory_space<vmem>>) attributes {dimension_semantics = [#tpu.dimension_semantics<parallel>, #tpu.dimension_semantics<parallel>, #tpu.dimension_semantics<parallel>], iteration_bounds = array<i64: 2, 1, 1>, scalar_prefetch = 0 : i64, scratch_operands = 0 : i64, tpu.core_type = #tpu.core_type<tc>, window_params = [{transform_indices = @transform_0, window_bounds = array<i64: 1, 8, 8, 16>}, {transform_indices = @transform_1, window_bounds = array<i64: 1, 8, 8, 16>}, {transform_indices = @transform_2, window_bounds = array<i64: 1, 8, 8, 16>}, {transform_indices = @transform_3, window_bounds = array<i64: 1, 1, 1, 16>}]} {
    %0 = tpu.iota {dimensions = array<i32: 0>} : vector<8x8x16xi32>
    %1 = arith.sitofp %0 : vector<8x8x16xi32> to vector<8x8x16xf32>
    %c0 = arith.constant 0 : index
    %c0_0 = arith.constant 0 : index
    %c0_1 = arith.constant 0 : index
    %c0_2 = arith.constant 0 : index
    %2 = vector.load %arg4[%c0, %c0_0, %c0_1, %c0_2] : memref<1x8x8x16xf32, #tpu.memory_space<vmem>>, vector<1x8x8x16xf32>
    %3 = vector.shape_cast %2 : vector<1x8x8x16xf32> to vector<8x8x16xf32>
    %4 = arith.addf %1, %3 : vector<8x8x16xf32>
    %cst = arith.constant 0.000000e+00 : f32
    %5 = vector.broadcast %cst : f32 to vector<8x8x16xf32>
    %c0_i32 = arith.constant 0 : i32
    %6 = arith.sitofp %c0_i32 : i32 to f32
    %7 = vector.broadcast %6 : f32 to vector<8x8x16xf32>
    %8 = arith.subf %4, %7 : vector<8x8x16xf32>
    %9 = math.absf %8 : vector<8x8x16xf32>
    %cst_3 = arith.constant 1.000000e+00 : f32
    %10 = vector.broadcast %cst_3 : f32 to vector<8x8x16xf32>
    %11 = arith.subf %10, %9 : vector<8x8x16xf32>
    %cst_4 = arith.constant 0.000000e+00 : f32
    %12 = vector.broadcast %cst_4 : f32 to vector<8x8x16xf32>
    %13 = arith.maximumf %12, %11 : vector<8x8x16xf32>
    %c0_5 = arith.constant 0 : index
    %14 = arith.index_cast %c0_i32 : i32 to index
    %c0_6 = arith.constant 0 : index
    %c0_7 = arith.constant 0 : index
    %15 = vector.load %arg3[%c0_5, %14, %c0_6, %c0_7] : memref<1x8x8x16xf32, #tpu.memory_space<vmem>>, vector<1x1x8x16xf32>
    %16 = vector.shape_cast %15 : vector<1x1x8x16xf32> to vector<1x8x16xf32>
    %17 = vector.broadcast %16 : vector<1x8x16xf32> to vector<8x8x16xf32>
    %18 = arith.mulf %13, %17 : vector<8x8x16xf32>
    %19 = arith.addf %5, %18 : vector<8x8x16xf32>
    %c1_i32 = arith.constant 1 : i32
    %20 = arith.sitofp %c1_i32 : i32 to f32
    %21 = vector.broadcast %20 : f32 to vector<8x8x16xf32>
    %22 = arith.subf %4, %21 : vector<8x8x16xf32>
    %23 = math.absf %22 : vector<8x8x16xf32>
    %cst_8 = arith.constant 1.000000e+00 : f32
    %24 = vector.broadcast %cst_8 : f32 to vector<8x8x16xf32>
    %25 = arith.subf %24, %23 : vector<8x8x16xf32>
    %cst_9 = arith.constant 0.000000e+00 : f32
    %26 = vector.broadcast %cst_9 : f32 to vector<8x8x16xf32>
    %27 = arith.maximumf %26, %25 : vector<8x8x16xf32>
    %c0_10 = arith.constant 0 : index
    %28 = arith.index_cast %c1_i32 : i32 to index
    %c0_11 = arith.constant 0 : index
    %c0_12 = arith.constant 0 : index
    %29 = vector.load %arg3[%c0_10, %28, %c0_11, %c0_12] : memref<1x8x8x16xf32, #tpu.memory_space<vmem>>, vector<1x1x8x16xf32>
    %30 = vector.shape_cast %29 : vector<1x1x8x16xf32> to vector<1x8x16xf32>
    %31 = vector.broadcast %30 : vector<1x8x16xf32> to vector<8x8x16xf32>
    %32 = arith.mulf %27, %31 : vector<8x8x16xf32>
    %33 = arith.addf %19, %32 : vector<8x8x16xf32>
    %c2_i32 = arith.constant 2 : i32
    %34 = arith.sitofp %c2_i32 : i32 to f32
    %35 = vector.broadcast %34 : f32 to vector<8x8x16xf32>
    %36 = arith.subf %4, %35 : vector<8x8x16xf32>
    %37 = math.absf %36 : vector<8x8x16xf32>
    %cst_13 = arith.constant 1.000000e+00 : f32
    %38 = vector.broadcast %cst_13 : f32 to vector<8x8x16xf32>
    %39 = arith.subf %38, %37 : vector<8x8x16xf32>
    %cst_14 = arith.constant 0.000000e+00 : f32
    %40 = vector.broadcast %cst_14 : f32 to vector<8x8x16xf32>
    %41 = arith.maximumf %40, %39 : vector<8x8x16xf32>
    %c0_15 = arith.constant 0 : index
    %42 = arith.index_cast %c2_i32 : i32 to index
    %c0_16 = arith.constant 0 : index
    %c0_17 = arith.constant 0 : index
    %43 = vector.load %arg3[%c0_15, %42, %c0_16, %c0_17] : memref<1x8x8x16xf32, #tpu.memory_space<vmem>>, vector<1x1x8x16xf32>
    %44 = vector.shape_cast %43 : vector<1x1x8x16xf32> to vector<1x8x16xf32>
    %45 = vector.broadcast %44 : vector<1x8x16xf32> to vector<8x8x16xf32>
    %46 = arith.mulf %41, %45 : vector<8x8x16xf32>
    %47 = arith.addf %33, %46 : vector<8x8x16xf32>
    %c3_i32 = arith.constant 3 : i32
    %48 = arith.sitofp %c3_i32 : i32 to f32
    %49 = vector.broadcast %48 : f32 to vector<8x8x16xf32>
    %50 = arith.subf %4, %49 : vector<8x8x16xf32>
    %51 = math.absf %50 : vector<8x8x16xf32>
    %cst_18 = arith.constant 1.000000e+00 : f32
    %52 = vector.broadcast %cst_18 : f32 to vector<8x8x16xf32>
    %53 = arith.subf %52, %51 : vector<8x8x16xf32>
    %cst_19 = arith.constant 0.000000e+00 : f32
    %54 = vector.broadcast %cst_19 : f32 to vector<8x8x16xf32>
    %55 = arith.maximumf %54, %53 : vector<8x8x16xf32>
    %c0_20 = arith.constant 0 : index
    %56 = arith.index_cast %c3_i32 : i32 to index
    %c0_21 = arith.constant 0 : index
    %c0_22 = arith.constant 0 : index
    %57 = vector.load %arg3[%c0_20, %56, %c0_21, %c0_22] : memref<1x8x8x16xf32, #tpu.memory_space<vmem>>, vector<1x1x8x16xf32>
    %58 = vector.shape_cast %57 : vector<1x1x8x16xf32> to vector<1x8x16xf32>
    %59 = vector.broadcast %58 : vector<1x8x16xf32> to vector<8x8x16xf32>
    %60 = arith.mulf %55, %59 : vector<8x8x16xf32>
    %61 = arith.addf %47, %60 : vector<8x8x16xf32>
    %c4_i32 = arith.constant 4 : i32
    %62 = arith.sitofp %c4_i32 : i32 to f32
    %63 = vector.broadcast %62 : f32 to vector<8x8x16xf32>
    %64 = arith.subf %4, %63 : vector<8x8x16xf32>
    %65 = math.absf %64 : vector<8x8x16xf32>
    %cst_23 = arith.constant 1.000000e+00 : f32
    %66 = vector.broadcast %cst_23 : f32 to vector<8x8x16xf32>
    %67 = arith.subf %66, %65 : vector<8x8x16xf32>
    %cst_24 = arith.constant 0.000000e+00 : f32
    %68 = vector.broadcast %cst_24 : f32 to vector<8x8x16xf32>
    %69 = arith.maximumf %68, %67 : vector<8x8x16xf32>
    %c0_25 = arith.constant 0 : index
    %70 = arith.index_cast %c4_i32 : i32 to index
    %c0_26 = arith.constant 0 : index
    %c0_27 = arith.constant 0 : index
    %71 = vector.load %arg3[%c0_25, %70, %c0_26, %c0_27] : memref<1x8x8x16xf32, #tpu.memory_space<vmem>>, vector<1x1x8x16xf32>
    %72 = vector.shape_cast %71 : vector<1x1x8x16xf32> to vector<1x8x16xf32>
    %73 = vector.broadcast %72 : vector<1x8x16xf32> to vector<8x8x16xf32>
    %74 = arith.mulf %69, %73 : vector<8x8x16xf32>
    %75 = arith.addf %61, %74 : vector<8x8x16xf32>
    %c5_i32 = arith.constant 5 : i32
    %76 = arith.sitofp %c5_i32 : i32 to f32
    %77 = vector.broadcast %76 : f32 to vector<8x8x16xf32>
    %78 = arith.subf %4, %77 : vector<8x8x16xf32>
    %79 = math.absf %78 : vector<8x8x16xf32>
    %cst_28 = arith.constant 1.000000e+00 : f32
    %80 = vector.broadcast %cst_28 : f32 to vector<8x8x16xf32>
    %81 = arith.subf %80, %79 : vector<8x8x16xf32>
    %cst_29 = arith.constant 0.000000e+00 : f32
    %82 = vector.broadcast %cst_29 : f32 to vector<8x8x16xf32>
    %83 = arith.maximumf %82, %81 : vector<8x8x16xf32>
    %c0_30 = arith.constant 0 : index
    %84 = arith.index_cast %c5_i32 : i32 to index
    %c0_31 = arith.constant 0 : index
    %c0_32 = arith.constant 0 : index
    %85 = vector.load %arg3[%c0_30, %84, %c0_31, %c0_32] : memref<1x8x8x16xf32, #tpu.memory_space<vmem>>, vector<1x1x8x16xf32>
    %86 = vector.shape_cast %85 : vector<1x1x8x16xf32> to vector<1x8x16xf32>
    %87 = vector.broadcast %86 : vector<1x8x16xf32> to vector<8x8x16xf32>
    %88 = arith.mulf %83, %87 : vector<8x8x16xf32>
    %89 = arith.addf %75, %88 : vector<8x8x16xf32>
    %c6_i32 = arith.constant 6 : i32
    %90 = arith.sitofp %c6_i32 : i32 to f32
    %91 = vector.broadcast %90 : f32 to vector<8x8x16xf32>
    %92 = arith.subf %4, %91 : vector<8x8x16xf32>
    %93 = math.absf %92 : vector<8x8x16xf32>
    %cst_33 = arith.constant 1.000000e+00 : f32
    %94 = vector.broadcast %cst_33 : f32 to vector<8x8x16xf32>
    %95 = arith.subf %94, %93 : vector<8x8x16xf32>
    %cst_34 = arith.constant 0.000000e+00 : f32
    %96 = vector.broadcast %cst_34 : f32 to vector<8x8x16xf32>
    %97 = arith.maximumf %96, %95 : vector<8x8x16xf32>
    %c0_35 = arith.constant 0 : index
    %98 = arith.index_cast %c6_i32 : i32 to index
    %c0_36 = arith.constant 0 : index
    %c0_37 = arith.constant 0 : index
    %99 = vector.load %arg3[%c0_35, %98, %c0_36, %c0_37] : memref<1x8x8x16xf32, #tpu.memory_space<vmem>>, vector<1x1x8x16xf32>
    %100 = vector.shape_cast %99 : vector<1x1x8x16xf32> to vector<1x8x16xf32>
    %101 = vector.broadcast %100 : vector<1x8x16xf32> to vector<8x8x16xf32>
    %102 = arith.mulf %97, %101 : vector<8x8x16xf32>
    %103 = arith.addf %89, %102 : vector<8x8x16xf32>
    %c7_i32 = arith.constant 7 : i32
    %104 = arith.sitofp %c7_i32 : i32 to f32
    %105 = vector.broadcast %104 : f32 to vector<8x8x16xf32>
    %106 = arith.subf %4, %105 : vector<8x8x16xf32>
    %107 = math.absf %106 : vector<8x8x16xf32>
    %cst_38 = arith.constant 1.000000e+00 : f32
    %108 = vector.broadcast %cst_38 : f32 to vector<8x8x16xf32>
    %109 = arith.subf %108, %107 : vector<8x8x16xf32>
    %cst_39 = arith.constant 0.000000e+00 : f32
    %110 = vector.broadcast %cst_39 : f32 to vector<8x8x16xf32>
    %111 = arith.maximumf %110, %109 : vector<8x8x16xf32>
    %c0_40 = arith.constant 0 : index
    %112 = arith.index_cast %c7_i32 : i32 to index
    %c0_41 = arith.constant 0 : index
    %c0_42 = arith.constant 0 : index
    %113 = vector.load %arg3[%c0_40, %112, %c0_41, %c0_42] : memref<1x8x8x16xf32, #tpu.memory_space<vmem>>, vector<1x1x8x16xf32>
    %114 = vector.shape_cast %113 : vector<1x1x8x16xf32> to vector<1x8x16xf32>
    %115 = vector.broadcast %114 : vector<1x8x16xf32> to vector<8x8x16xf32>
    %116 = arith.mulf %111, %115 : vector<8x8x16xf32>
    %117 = arith.addf %103, %116 : vector<8x8x16xf32>
    %c8_i32 = arith.constant 8 : i32
    %cst_43 = arith.constant dense<0.000000e+00> : vector<8x16xf32>
    %118 = vector.multi_reduction <add>, %117, %cst_43 [0] : vector<8x8x16xf32> to vector<8x16xf32>
    %cst_44 = arith.constant dense<0.000000e+00> : vector<16xf32>
    %119 = vector.multi_reduction <add>, %118, %cst_44 [0] : vector<8x16xf32> to vector<16xf32>
    %120 = vector.shape_cast %119 : vector<16xf32> to vector<1x16xf32>
    %c0_45 = arith.constant 0 : index
    %c0_46 = arith.constant 0 : index
    %c0_47 = arith.constant 0 : index
    %c0_48 = arith.constant 0 : index
    %121 = vector.load %arg6[%c0_45, %c0_46, %c0_47, %c0_48] : memref<1x1x1x16xf32, #tpu.memory_space<vmem>>, vector<1x1x1x16xf32>
    %122 = vector.shape_cast %121 : vector<1x1x1x16xf32> to vector<1x16xf32>
    %123 = vector.shape_cast %120 : vector<1x16xf32> to vector<1x1x1x16xf32>
    tpu.vector_store %arg6[%c0_45, %c0_46, %c0_47, %c0_48], %123 {strides = array<i32>} : memref<1x1x1x16xf32, #tpu.memory_space<vmem>>, vector<1x1x1x16xf32>,
    %124 = arith.truncf %117 : vector<8x8x16xf32> to vector<8x8x16xbf16>
    %c0_49 = arith.constant 0 : index
    %c0_50 = arith.constant 0 : index
    %c0_51 = arith.constant 0 : index
    %c0_52 = arith.constant 0 : index
    %125 = vector.load %arg5[%c0_49, %c0_50, %c0_51, %c0_52] : memref<1x8x8x16xbf16, #tpu.memory_space<vmem>>, vector<1x8x8x16xbf16>
    %126 = vector.shape_cast %125 : vector<1x8x8x16xbf16> to vector<8x8x16xbf16>
    %127 = vector.shape_cast %124 : vector<8x8x16xbf16> to vector<1x8x8x16xbf16>
    tpu.vector_store %arg5[%c0_49, %c0_50, %c0_51, %c0_52], %127 {strides = array<i32>} : memref<1x8x8x16xbf16, #tpu.memory_space<vmem>>, vector<1x8x8x16xbf16>,
    return
  }
  func.func @transform_0(%arg0: i32, %arg1: i32, %arg2: i32) -> (i32, i32, i32, i32) {
    %c0_i32 = arith.constant 0 : i32
    %c0_i32_0 = arith.constant 0 : i32
    return %arg0, %c0_i32, %arg1, %arg2 : i32, i32, i32, i32
  }
  func.func @transform_1(%arg0: i32, %arg1: i32, %arg2: i32) -> (i32, i32, i32, i32) {
    %c0_i32 = arith.constant 0 : i32
    %c0_i32_0 = arith.constant 0 : i32
    return %arg0, %c0_i32, %arg1, %arg2 : i32, i32, i32, i32
  }
  func.func @transform_2(%arg0: i32, %arg1: i32, %arg2: i32) -> (i32, i32, i32, i32) {
    %c0_i32 = arith.constant 0 : i32
    %c0_i32_0 = arith.constant 0 : i32
    return %arg0, %c0_i32, %arg1, %arg2 : i32, i32, i32, i32
  }
  func.func @transform_3(%arg0: i32, %arg1: i32, %arg2: i32) -> (i32, i32, i32, i32) {
    %c0_i32 = arith.constant 0 : i32
    %c0_i32_0 = arith.constant 0 : i32
    return %arg0, %arg1, %c0_i32, %arg2 : i32, i32, i32, i32
  }
}

module attributes {stable_mosaic.version = 11 : i64} {
  func.func @_fuse_proj_kernel(%arg0: i32, %arg1: i32, %arg2: memref<1x64x16xbf16, #tpu.memory_space<vmem>>, %arg3: memref<1x64x16xbf16, #tpu.memory_space<vmem>>, %arg4: memref<1x64x16xbf16, #tpu.memory_space<vmem>>, %arg5: memref<1x3x16x16xbf16, #tpu.memory_space<vmem>>, %arg6: memref<1x1x16xf32, #tpu.memory_space<vmem>>, %arg7: memref<1x64x16xf32, #tpu.memory_space<vmem>>) attributes {dimension_semantics = [#tpu.dimension_semantics<parallel>, #tpu.dimension_semantics<parallel>], iteration_bounds = array<i64: 2, 1>, scalar_prefetch = 0 : i64, scratch_operands = 0 : i64, tpu.core_type = #tpu.core_type<tc>, window_params = [{transform_indices = @transform_0, window_bounds = array<i64: 1, 64, 16>}, {transform_indices = @transform_1, window_bounds = array<i64: 1, 64, 16>}, {transform_indices = @transform_2, window_bounds = array<i64: 1, 64, 16>}, {transform_indices = @transform_3, window_bounds = array<i64: 1, 3, 16, 16>}, {transform_indices = @transform_4, window_bounds = array<i64: 1, 1, 16>}, {transform_indices = @transform_5, window_bounds = array<i64: 1, 64, 16>}]} {
    %c0 = arith.constant 0 : index
    %c0_0 = arith.constant 0 : index
    %c0_1 = arith.constant 0 : index
    %0 = vector.load %arg2[%c0, %c0_0, %c0_1] : memref<1x64x16xbf16, #tpu.memory_space<vmem>>, vector<1x64x16xbf16>
    %1 = vector.shape_cast %0 : vector<1x64x16xbf16> to vector<64x16xbf16>
    %c0_2 = arith.constant 0 : index
    %c0_3 = arith.constant 0 : index
    %c0_4 = arith.constant 0 : index
    %c0_5 = arith.constant 0 : index
    %2 = vector.load %arg5[%c0_2, %c0_3, %c0_4, %c0_5] : memref<1x3x16x16xbf16, #tpu.memory_space<vmem>>, vector<1x1x16x16xbf16>
    %3 = vector.shape_cast %2 : vector<1x1x16x16xbf16> to vector<16x16xbf16>
    %cst = arith.constant dense<0.000000e+00> : vector<64x16xf32>
    %4 = tpu.matmul %1, %3, %cst {dimension_numbers = #tpu.dot_dimension_numbers<[1], [0], [0], [1], [0, 0, 1, 1], [], []>} : vector<64x16xbf16>, vector<16x16xbf16>, vector<64x16xf32> -> vector<64x16xf32>
    %c0_6 = arith.constant 0 : index
    %c0_7 = arith.constant 0 : index
    %c0_8 = arith.constant 0 : index
    %5 = vector.load %arg3[%c0_6, %c0_7, %c0_8] : memref<1x64x16xbf16, #tpu.memory_space<vmem>>, vector<1x64x16xbf16>
    %6 = vector.shape_cast %5 : vector<1x64x16xbf16> to vector<64x16xbf16>
    %c0_9 = arith.constant 0 : index
    %c1 = arith.constant 1 : index
    %c0_10 = arith.constant 0 : index
    %c0_11 = arith.constant 0 : index
    %7 = vector.load %arg5[%c0_9, %c1, %c0_10, %c0_11] : memref<1x3x16x16xbf16, #tpu.memory_space<vmem>>, vector<1x1x16x16xbf16>
    %8 = vector.shape_cast %7 : vector<1x1x16x16xbf16> to vector<16x16xbf16>
    %cst_12 = arith.constant dense<0.000000e+00> : vector<64x16xf32>
    %9 = tpu.matmul %6, %8, %cst_12 {dimension_numbers = #tpu.dot_dimension_numbers<[1], [0], [0], [1], [0, 0, 1, 1], [], []>} : vector<64x16xbf16>, vector<16x16xbf16>, vector<64x16xf32> -> vector<64x16xf32>
    %10 = arith.addf %4, %9 : vector<64x16xf32>
    %c0_13 = arith.constant 0 : index
    %c0_14 = arith.constant 0 : index
    %c0_15 = arith.constant 0 : index
    %11 = vector.load %arg4[%c0_13, %c0_14, %c0_15] : memref<1x64x16xbf16, #tpu.memory_space<vmem>>, vector<1x64x16xbf16>
    %12 = vector.shape_cast %11 : vector<1x64x16xbf16> to vector<64x16xbf16>
    %c0_16 = arith.constant 0 : index
    %c2 = arith.constant 2 : index
    %c0_17 = arith.constant 0 : index
    %c0_18 = arith.constant 0 : index
    %13 = vector.load %arg5[%c0_16, %c2, %c0_17, %c0_18] : memref<1x3x16x16xbf16, #tpu.memory_space<vmem>>, vector<1x1x16x16xbf16>
    %14 = vector.shape_cast %13 : vector<1x1x16x16xbf16> to vector<16x16xbf16>
    %cst_19 = arith.constant dense<0.000000e+00> : vector<64x16xf32>
    %15 = tpu.matmul %12, %14, %cst_19 {dimension_numbers = #tpu.dot_dimension_numbers<[1], [0], [0], [1], [0, 0, 1, 1], [], []>} : vector<64x16xbf16>, vector<16x16xbf16>, vector<64x16xf32> -> vector<64x16xf32>
    %16 = arith.addf %10, %15 : vector<64x16xf32>
    %c0_20 = arith.constant 0 : index
    %c0_21 = arith.constant 0 : index
    %c0_22 = arith.constant 0 : index
    %17 = vector.load %arg6[%c0_20, %c0_21, %c0_22] : memref<1x1x16xf32, #tpu.memory_space<vmem>>, vector<1x1x16xf32>
    %18 = vector.shape_cast %17 : vector<1x1x16xf32> to vector<1x16xf32>
    %19 = vector.broadcast %18 : vector<1x16xf32> to vector<64x16xf32>
    %20 = arith.addf %16, %19 : vector<64x16xf32>
    %c0_23 = arith.constant 0 : index
    %c0_24 = arith.constant 0 : index
    %c0_25 = arith.constant 0 : index
    %21 = vector.load %arg7[%c0_23, %c0_24, %c0_25] : memref<1x64x16xf32, #tpu.memory_space<vmem>>, vector<1x64x16xf32>
    %22 = vector.shape_cast %21 : vector<1x64x16xf32> to vector<64x16xf32>
    %23 = vector.shape_cast %20 : vector<64x16xf32> to vector<1x64x16xf32>
    tpu.vector_store %arg7[%c0_23, %c0_24, %c0_25], %23 {strides = array<i32>} : memref<1x64x16xf32, #tpu.memory_space<vmem>>, vector<1x64x16xf32>,
    return
  }
  func.func @transform_0(%arg0: i32, %arg1: i32) -> (i32, i32, i32) {
    %c0_i32 = arith.constant 0 : i32
    %c0_i32_0 = arith.constant 0 : i32
    return %arg0, %arg1, %c0_i32 : i32, i32, i32
  }
  func.func @transform_1(%arg0: i32, %arg1: i32) -> (i32, i32, i32) {
    %c0_i32 = arith.constant 0 : i32
    %c0_i32_0 = arith.constant 0 : i32
    return %arg0, %arg1, %c0_i32 : i32, i32, i32
  }
  func.func @transform_2(%arg0: i32, %arg1: i32) -> (i32, i32, i32) {
    %c0_i32 = arith.constant 0 : i32
    %c0_i32_0 = arith.constant 0 : i32
    return %arg0, %arg1, %c0_i32 : i32, i32, i32
  }
  func.func @transform_3(%arg0: i32, %arg1: i32) -> (i32, i32, i32, i32) {
    %c0_i32 = arith.constant 0 : i32
    %c0_i32_0 = arith.constant 0 : i32
    %c0_i32_1 = arith.constant 0 : i32
    %c0_i32_2 = arith.constant 0 : i32
    return %arg0, %c0_i32, %c0_i32_0, %c0_i32_1 : i32, i32, i32, i32
  }
  func.func @transform_4(%arg0: i32, %arg1: i32) -> (i32, i32, i32) {
    %c0_i32 = arith.constant 0 : i32
    %c0_i32_0 = arith.constant 0 : i32
    %c0_i32_1 = arith.constant 0 : i32
    return %arg0, %c0_i32, %c0_i32_0 : i32, i32, i32
  }
  func.func @transform_5(%arg0: i32, %arg1: i32) -> (i32, i32, i32) {
    %c0_i32 = arith.constant 0 : i32
    %c0_i32_0 = arith.constant 0 : i32
    return %arg0, %arg1, %c0_i32 : i32, i32, i32
  }
}

</mosaic_0001>

<llo_original>
// kernel: _lambda_.4
$region0: #{_lambda_.4}
  #allocation0 [shape = 'u32[]', space=smem, size = 0x4, offset = 0x4, fixed_abs, tag = 'smem constant byte address 0x4 - core index']
  #allocation1 [shape = 'u32[72,128]{1,0:T(1,128)}', space=vmem, size = 0x9000, scoped, tag = 'internal scratch']
  %s0 = inlined_call_operand.vmem [shape: f32[2,8,8,16], index: 0, kind: input, shape index: {}]
  %s1 = inlined_call_operand.vmem [shape: f32[2,8,8,16], index: 1, kind: input, shape index: {}]
  %s2 = inlined_call_operand.vmem [shape: bf16[2,8,8,16], index: 2, kind: output, shape index: {0}]
  %s3 = inlined_call_operand.vmem [shape: f32[2,1,1,16], index: 3, kind: output, shape index: {1}]
  %4 = xla_tuple %s2, %s3
  %s5 = sld [smem:[#allocation0]]
  $region49: #{_lambda_.4} parent=0
    _
  %s7 = ssub.s32 1, %s5
  %s8 = scalar_select 0, %s7, %s5
  loop: start=0, step=1, limit=4
  $region2: #{_lambda_.4} parent=0 // loop_pre_header
    _
  $region3: #{_lambda_.4} parent=0 // loop_header
    %s10 = sphi 0, %s14
    %p11 = scmp.ge.s32.totalorder %s10, 4
    %s17 = sphi 0, %s36
    %s18 = sphi 0, %s32
    %s19 = sphi 0, %s28
    %s20 = sphi 0, %s17
    %s21 = sphi 0, %s18
    %s22 = sphi 0, %s19
    %s23 = sphi 0, %s20
    %s24 = sphi 0, %s21
    %s25 = sphi 0, %s22
    %s43 = sphi 0, %s45
    %s46 = sphi 0, %s43
    %s47 = sphi 0, %s46
    %s63 = sphi 0, %s47
    %s73 = sphi 0, %s75
    %s76 = sphi 0, %s73
    %s77 = sphi 0, %s76
    %s93 = sphi 0, %s77
    %s103 = sphi 0, %s105
    %s106 = sphi 0, %s103
    %s107 = sphi 0, %s106
    %s123 = sphi 0, %s107
    %s133 = sphi 0, %s135
    %s136 = sphi 0, %s133
    %s137 = sphi 0, %s136
    %s153 = sphi 0, %s137
  $region4: #{_lambda_.4} parent=0 // loop_header_branch
    %13 = sbr.rel (%p11) target = $region8
  $region5: #{_lambda_.4} parent=0 // loop_body
    %s15 = ssub.s32 %s10, 1
    %s16 = ssub.s32 %s10, 2
    %s26 = sadd.s32 1, %s19
    %p27 = scmp.ge.s32.totalorder %s26, 1
    %s28 = scalar_select %p27, 0, %s26
    %s29 = sadd.s32 1, %s18
    %s30 = scalar_select %p27, %s29, %s18
    %p31 = scmp.ge.s32.totalorder %s30, 1
    %s32 = scalar_select %p31, 0, %s30
    %s33 = sadd.s32 1, %s17
    %s34 = scalar_select %p31, %s33, %s17
    %p35 = scmp.ge.s32.totalorder %s34, 2
    %s36 = scalar_select %p35, 0, %s34
    %s37 = ssub.s32 %s17, %s36
    %s38 = ssub.s32 %s18, %s32
    %s39 = sor.u32 %s37, %s38
    %s40 = ssub.s32 %s19, %s28
    %s41 = sor.u32 %s39, %s40
    %p42 = scmp.eq.s32.totalorder %s41, 0
    %s44 = sadd.s32 %s43, 1
    %s45 = scalar_select %p42, %s43, %s44
    %p48 = pneg %p42
    %p49 = scmp.eq.s32.totalorder %s10, 1
    %p50 = por %p48, %p49
    %p51 = scmp.ne.s32.totalorder %s43, %s46
    %p52 = scmp.eq.s32.totalorder %s10, 0
    %p53 = por %p51, %p52
    %p54 = scmp.ne.s32.totalorder %s43, %s46
    %p55 = scmp.eq.s32.totalorder %s15, 1
    %p56 = por %p54, %p55
    %p57 = scmp.ne.s32.totalorder %s46, %s47
    %p58 = scmp.eq.s32.totalorder %s15, 0
    %p59 = por %p57, %p58
    %p60 = scmp.ne.s32.totalorder %s46, %s47
    %p61 = scmp.eq.s32.totalorder %s16, 1
    %p62 = por %p60, %p61
    %p64 = scmp.ne.s32.totalorder %s47, %s63
    %p65 = scmp.eq.s32.totalorder %s16, 0
    %p66 = por %p64, %p65
    %s67 = ssub.s32 %s17, %s36
    %s68 = ssub.s32 %s18, %s32
    %s69 = sor.u32 %s67, %s68
    %s70 = ssub.s32 %s19, %s28
    %s71 = sor.u32 %s69, %s70
    %p72 = scmp.eq.s32.totalorder %s71, 0
    %s74 = sadd.s32 %s73, 1
    %s75 = scalar_select %p72, %s73, %s74
    %p78 = pneg %p72
    %p79 = scmp.eq.s32.totalorder %s10, 1
    %p80 = por %p78, %p79
    %p81 = scmp.ne.s32.totalorder %s73, %s76
    %p82 = scmp.eq.s32.totalorder %s10, 0
    %p83 = por %p81, %p82
    %p84 = scmp.ne.s32.totalorder %s73, %s76
    %p85 = scmp.eq.s32.totalorder %s15, 1
    %p86 = por %p84, %p85
    %p87 = scmp.ne.s32.totalorder %s76, %s77
    %p88 = scmp.eq.s32.totalorder %s15, 0
    %p89 = por %p87, %p88
    %p90 = scmp.ne.s32.totalorder %s76, %s77
    %p91 = scmp.eq.s32.totalorder %s16, 1
    %p92 = por %p90, %p91
    %p94 = scmp.ne.s32.totalorder %s77, %s93
    %p95 = scmp.eq.s32.totalorder %s16, 0
    %p96 = por %p94, %p95
    %s97 = ssub.s32 %s17, %s36
    %s98 = ssub.s32 %s18, %s32
    %s99 = sor.u32 %s97, %s98
    %s100 = ssub.s32 %s19, %s28
    %s101 = sor.u32 %s99, %s100
    %p102 = scmp.eq.s32.totalorder %s101, 0
    %s104 = sadd.s32 %s103, 1
    %s105 = scalar_select %p102, %s103, %s104
    %p108 = pneg %p102
    %p109 = scmp.eq.s32.totalorder %s10, 1
    %p110 = por %p108, %p109
    %p111 = scmp.ne.s32.totalorder %s103, %s106
    %p112 = scmp.eq.s32.totalorder %s10, 0
    %p113 = por %p111, %p112
    %p114 = scmp.ne.s32.totalorder %s103, %s106
    %p115 = scmp.eq.s32.totalorder %s15, 1
    %p116 = por %p114, %p115
    %p117 = scmp.ne.s32.totalorder %s106, %s107
    %p118 = scmp.eq.s32.totalorder %s15, 0
    %p119 = por %p117, %p118
    %p120 = scmp.ne.s32.totalorder %s106, %s107
    %p121 = scmp.eq.s32.totalorder %s16, 1
    %p122 = por %p120, %p121
    %p124 = scmp.ne.s32.totalorder %s107, %s123
    %p125 = scmp.eq.s32.totalorder %s16, 0
    %p126 = por %p124, %p125
    %s127 = ssub.s32 %s17, %s36
    %s128 = ssub.s32 %s18, %s32
    %s129 = sor.u32 %s127, %s128
    %s130 = ssub.s32 %s19, %s28
    %s131 = sor.u32 %s129, %s130
    %p132 = scmp.eq.s32.totalorder %s131, 0
    %s134 = sadd.s32 %s133, 1
    %s135 = scalar_select %p132, %s133, %s134
    %p138 = pneg %p132
    %p139 = scmp.eq.s32.totalorder %s10, 1
    %p140 = por %p138, %p139
    %p141 = scmp.ne.s32.totalorder %s133, %s136
    %p142 = scmp.eq.s32.totalorder %s10, 0
    %p143 = por %p141, %p142
    %p144 = scmp.ne.s32.totalorder %s133, %s136
    %p145 = scmp.eq.s32.totalorder %s15, 1
    %p146 = por %p144, %p145
    %p147 = scmp.ne.s32.totalorder %s136, %s137
    %p148 = scmp.eq.s32.totalorder %s15, 0
    %p149 = por %p147, %p148
    %p150 = scmp.ne.s32.totalorder %s136, %s137
    %p151 = scmp.eq.s32.totalorder %s16, 1
    %p152 = por %p150, %p151
    %p154 = scmp.ne.s32.totalorder %s137, %s153
    %p155 = scmp.eq.s32.totalorder %s16, 0
    %p156 = por %p154, %p155
    %p157 = scmp.le.s32.totalorder 1, %s10
    %p158 = scmp.lt.s32.totalorder %s10, 3
    %p159 = pnand %p157, %p158
    %p160 = pneg %p159
    // Predicated region
    $region9: #{_lambda_.4} parent=5 // pred_check
      _
    $region10: #{_lambda_.4} parent=5 // pred_check_branch
      %162 = sbr.rel (%p159) target = $region12
    $region11: #{_lambda_.4} parent=5 // pred_region
      %s163 = ssub.s32 %s10, 1
    $region12: #{_lambda_.4} parent=5 // pred_fallthru
      _
    %p164 = scmp.lt.s32.totalorder %s10, 2
    // Predicated region
    $region13: #{_lambda_.4} parent=5 // pred_check
      %p165 = pneg %p164
    $region14: #{_lambda_.4} parent=5 // pred_check_branch
      %167 = sbr.rel (%p165) target = $region16
    $region15: #{_lambda_.4} parent=5 // pred_region
      // Predicated region
      $region17: #{_lambda_.4} parent=15 // pred_check
        %p168 = pneg %p53
      $region18: #{_lambda_.4} parent=15 // pred_check_branch
        %170 = sbr.rel (%p168) target = $region20
      $region19: #{_lambda_.4} parent=15 // pred_region
        %p171 = scmp.lt.s32.totalorder %s17, 1
        %s172 = scalar_select %p171, %s17, 1
        %p173 = scmp.lt.s32.totalorder %s18, 0
        %s174 = scalar_select %p173, %s18, 0
        %p175 = scmp.lt.s32.totalorder %s19, 0
        %s176 = scalar_select %p175, %s19, 0
        %s177 = sadd.s32 %s176, %s174
        %s178 = smul.addr %s172, 8
        %s179 = sadd.s32 %s177, %s178
        %s180 = smul.addr %s179, 8
        %s181 = scalar_lea.vmem %s0, %s180
      $region20: #{_lambda_.4} parent=15 // pred_fallthru
        _
      // Predicated region
      $region21: #{_lambda_.4} parent=15 // pred_check
        %p182 = pneg %p83
      $region22: #{_lambda_.4} parent=15 // pred_check_branch
        %184 = sbr.rel (%p182) target = $region24
      $region23: #{_lambda_.4} parent=15 // pred_region
        %p185 = scmp.lt.s32.totalorder %s17, 1
        %s186 = scalar_select %p185, %s17, 1
        %p187 = scmp.lt.s32.totalorder %s18, 0
        %s188 = scalar_select %p187, %s18, 0
        %p189 = scmp.lt.s32.totalorder %s19, 0
        %s190 = scalar_select %p189, %s19, 0
        %s191 = sadd.s32 %s190, %s188
        %s192 = smul.addr %s186, 8
        %s193 = sadd.s32 %s191, %s192
        %s194 = smul.addr %s193, 8
        %s195 = scalar_lea.vmem %s1, %s194
      $region24: #{_lambda_.4} parent=15 // pred_fallthru
        _
    $region16: #{_lambda_.4} parent=5 // pred_fallthru
      _
    %p196 = scmp.le.s32.totalorder 1, %s10
    %p197 = scmp.lt.s32.totalorder %s10, 3
    %p198 = pnand %p196, %p197
    %p199 = pneg %p198
    // Predicated region
    $region25: #{_lambda_.4} parent=5 // pred_check
      _
    $region26: #{_lambda_.4} parent=5 // pred_check_branch
      %201 = sbr.rel (%p198) target = $region28
    $region27: #{_lambda_.4} parent=5 // pred_region
      %s202 = ssub.s32 %s10, 1
      %p203 = scmp.lt.s32.totalorder %s20, 1
      %s204 = scalar_select %p203, %s20, 1
      %p205 = scmp.lt.s32.totalorder %s21, 0
      %s206 = scalar_select %p205, %s21, 0
      %p207 = scmp.lt.s32.totalorder %s22, 0
      %s208 = scalar_select %p207, %s22, 0
      %s209 = sadd.s32 %s208, %s206
      %s210 = smul.addr %s204, 8
      %s211 = sadd.s32 %s209, %s210
      %s212 = smul.addr %s211, 8
      %s213 = scalar_lea.vmem %s0, %s212
      %p214 = pneg %p59
      %p215 = pneg %p56
      %p216 = scmp.lt.s32.totalorder %s20, 1
      %s217 = scalar_select %p216, %s20, 1
      %p218 = scmp.lt.s32.totalorder %s21, 0
      %s219 = scalar_select %p218, %s21, 0
      %p220 = scmp.lt.s32.totalorder %s22, 0
      %s221 = scalar_select %p220, %s22, 0
      %s222 = sadd.s32 %s221, %s219
      %s223 = smul.addr %s217, 8
      %s224 = sadd.s32 %s222, %s223
      %s225 = smul.addr %s224, 8
      %s226 = scalar_lea.vmem %s1, %s225
      %p227 = pneg %p89
      %p228 = pneg %p86
      %p229 = pneg %p119
      %p230 = pneg %p116
      %p231 = scmp.lt.s32.totalorder %s20, 1
      %s232 = scalar_select %p231, %s20, 1
      %p233 = scmp.lt.s32.totalorder %s21, 0
      %s234 = scalar_select %p233, %s21, 0
      %p235 = scmp.lt.s32.totalorder %s22, 0
      %s236 = scalar_select %p235, %s22, 0
      %s237 = sadd.s32 %s236, %s234
      %s238 = smul.addr %s232, 8
      %s239 = sadd.s32 %s237, %s238
      %s240 = smul.addr %s239, 4
      %s241 = scalar_lea.vmem %s2, %s240
      %p242 = pneg %p149
      %p243 = pneg %p146
      %p244 = scmp.lt.s32.totalorder %s20, 1
      %s245 = scalar_select %p244, %s20, 1
      %p246 = scmp.lt.s32.totalorder %s21, 0
      %s247 = scalar_select %p246, %s21, 0
      %p248 = scmp.lt.s32.totalorder %s22, 0
      %s249 = scalar_select %p248, %s22, 0
      %s250 = sadd.s32 %s249, %s247
      %s251 = sadd.s32 %s250, %s245
      %s252 = scalar_lea.vmem %s3, %s251
      %p253 = scmp.lt.s32.totalorder %s20, 1
      %s254 = scalar_select %p253, %s20, 1
      %p255 = scmp.lt.s32.totalorder %s21, 0
      %s256 = scalar_select %p255, %s21, 0
      %p257 = scmp.lt.s32.totalorder %s22, 0
      %s258 = scalar_select %p257, %s22, 0
      %s259 = sadd.s32 %s258, %s256
      %s260 = smul.addr %s254, 8
      %s261 = sadd.s32 %s259, %s260
      %s262 = smul.addr %s261, 8
      %s263 = scalar_lea.vmem %s0, %s262
      %p264 = scmp.lt.s32.totalorder %s20, 1
      %s265 = scalar_select %p264, %s20, 1
      %p266 = scmp.lt.s32.totalorder %s21, 0
      %s267 = scalar_select %p266, %s21, 0
      %p268 = scmp.lt.s32.totalorder %s22, 0
      %s269 = scalar_select %p268, %s22, 0
      %s270 = sadd.s32 %s269, %s267
      %s271 = smul.addr %s265, 8
      %s272 = sadd.s32 %s270, %s271
      %s273 = smul.addr %s272, 8
      %s274 = scalar_lea.vmem %s1, %s273
      %p275 = scmp.lt.s32.totalorder %s20, 1
      %s276 = scalar_select %p275, %s20, 1
      %p277 = scmp.lt.s32.totalorder %s21, 0
      %s278 = scalar_select %p277, %s21, 0
      %p279 = scmp.lt.s32.totalorder %s22, 0
      %s280 = scalar_select %p279, %s22, 0
      %s281 = sadd.s32 %s280, %s278
      %s282 = smul.addr %s276, 8
      %s283 = sadd.s32 %s281, %s282
      %s284 = smul.addr %s283, 4
      %s285 = scalar_lea.vmem %s2, %s284
      %p286 = scmp.lt.s32.totalorder %s20, 1
      %s287 = scalar_select %p286, %s20, 1
      %p288 = scmp.lt.s32.totalorder %s21, 0
      %s289 = scalar_select %p288, %s21, 0
      %p290 = scmp.lt.s32.totalorder %s22, 0
      %s291 = scalar_select %p290, %s22, 0
      %s292 = sadd.s32 %s291, %s289
      %s293 = sadd.s32 %s292, %s287
      %s294 = scalar_lea.vmem %s3, %s293
      %v295 = vcvt.s32.f32 0
      %v296 = vcvt.s32.f32 1
      %v297 = vcvt.s32.f32 2
      %v298 = vcvt.s32.f32 3
      %v299 = vcvt.s32.f32 4
      %v300 = vcvt.s32.f32 5
      %v301 = vcvt.s32.f32 6
      %v302 = vcvt.s32.f32 7
      %v303 = vld [vmem:[%s274] sm:$0xff]
      %v304 = vld [vmem:[%s274 + $0x8] sm:$0xff]
      %v305 = vld [vmem:[%s274 + $0x10] sm:$0xff]
      %v306 = vld [vmem:[%s274 + $0x18] sm:$0xff]
      %v307 = vld [vmem:[%s274 + $0x20] sm:$0xff]
      %v308 = vld [vmem:[%s274 + $0x28] sm:$0xff]
      %v309 = vld [vmem:[%s274 + $0x30] sm:$0xff]
      %v310 = vld [vmem:[%s274 + $0x38] sm:$0xff]
      %v311 = vadd.f32 %v295, %v303
      %v312 = vadd.f32 %v296, %v304
      %v313 = vadd.f32 %v297, %v305
      %v314 = vadd.f32 %v298, %v306
      %v315 = vadd.f32 %v299, %v307
      %v316 = vadd.f32 %v300, %v308
      %v317 = vadd.f32 %v301, %v309
      %v318 = vadd.f32 %v302, %v310
      %v319 = vand.u32 2147483647, %v311
      %v320 = vand.u32 2147483647, %v312
      %v321 = vand.u32 2147483647, %v313
      %v322 = vand.u32 2147483647, %v314
      %v323 = vand.u32 2147483647, %v315
      %v324 = vand.u32 2147483647, %v316
      %v325 = vand.u32 2147483647, %v317
      %v326 = vand.u32 2147483647, %v318
      %v327 = vsub.f32 1.0, %v319
      %v328 = vsub.f32 1.0, %v320
      %v329 = vsub.f32 1.0, %v321
      %v330 = vsub.f32 1.0, %v322
      %v331 = vsub.f32 1.0, %v323
      %v332 = vsub.f32 1.0, %v324
      %v333 = vsub.f32 1.0, %v325
      %v334 = vsub.f32 1.0, %v326
      %v335 = vmax.f32 %v327, 0.0
      %v336 = vmax.f32 %v328, 0.0
      %v337 = vmax.f32 %v329, 0.0
      %v338 = vmax.f32 %v330, 0.0
      %v339 = vmax.f32 %v331, 0.0
      %v340 = vmax.f32 %v332, 0.0
      %v341 = vmax.f32 %v333, 0.0
      %v342 = vmax.f32 %v334, 0.0
      %v343 = vld [vmem:[%s263] sm:$0xff]
      %v344 = vmul.f32 %v335, %v343
      %v345 = vmul.f32 %v336, %v343
      %v346 = vmul.f32 %v337, %v343
      %v347 = vmul.f32 %v338, %v343
      %v348 = vmul.f32 %v339, %v343
      %v349 = vmul.f32 %v340, %v343
      %v350 = vmul.f32 %v341, %v343
      %v351 = vmul.f32 %v342, %v343
      %v352 = vadd.f32 %v344, 0.0
      %v353 = vadd.f32 %v345, 0.0
      %v354 = vadd.f32 %v346, 0.0
      %v355 = vadd.f32 %v347, 0.0
      %v356 = vadd.f32 %v348, 0.0
      %v357 = vadd.f32 %v349, 0.0
      %v358 = vadd.f32 %v350, 0.0
      %v359 = vadd.f32 %v351, 0.0
      %v360 = vsub.f32 %v311, 1.0
      %v361 = vsub.f32 %v312, 1.0
      %v362 = vsub.f32 %v313, 1.0
      %v363 = vsub.f32 %v314, 1.0
      %v364 = vsub.f32 %v315, 1.0
      %v365 = vsub.f32 %v316, 1.0
      %v366 = vsub.f32 %v317, 1.0
      %v367 = vsub.f32 %v318, 1.0
      %v368 = vand.u32 2147483647, %v360
      %v369 = vand.u32 2147483647, %v361
      %v370 = vand.u32 2147483647, %v362
      %v371 = vand.u32 2147483647, %v363
      %v372 = vand.u32 2147483647, %v364
      %v373 = vand.u32 2147483647, %v365
      %v374 = vand.u32 2147483647, %v366
      %v375 = vand.u32 2147483647, %v367
      %v376 = vsub.f32 1.0, %v368
      %v377 = vsub.f32 1.0, %v369
      %v378 = vsub.f32 1.0, %v370
      %v379 = vsub.f32 1.0, %v371
      %v380 = vsub.f32 1.0, %v372
      %v381 = vsub.f32 1.0, %v373
      %v382 = vsub.f32 1.0, %v374
      %v383 = vsub.f32 1.0, %v375
      %v384 = vmax.f32 %v376, 0.0
      %v385 = vmax.f32 %v377, 0.0
      %v386 = vmax.f32 %v378, 0.0
      %v387 = vmax.f32 %v379, 0.0
      %v388 = vmax.f32 %v380, 0.0
      %v389 = vmax.f32 %v381, 0.0
      %v390 = vmax.f32 %v382, 0.0
      %v391 = vmax.f32 %v383, 0.0
      %s392 = scalar_lea.vmem %s263, 8
      %v393 = vld [vmem:[%s392] sm:$0xff]
      %v394 = vmul.f32 %v384, %v393
      %v395 = vmul.f32 %v385, %v393
      %v396 = vmul.f32 %v386, %v393
      %v397 = vmul.f32 %v387, %v393
      %v398 = vmul.f32 %v388, %v393
      %v399 = vmul.f32 %v389, %v393
      %v400 = vmul.f32 %v390, %v393
      %v401 = vmul.f32 %v391, %v393
      %v402 = vadd.f32 %v352, %v394
      %v403 = vadd.f32 %v353, %v395
      %v404 = vadd.f32 %v354, %v396
      %v405 = vadd.f32 %v355, %v397
      %v406 = vadd.f32 %v356, %v398
      %v407 = vadd.f32 %v357, %v399
      %v408 = vadd.f32 %v358, %v400
      %v409 = vadd.f32 %v359, %v401
      %v410 = vsub.f32 %v311, 2.0
      %v411 = vsub.f32 %v312, 2.0
      %v412 = vsub.f32 %v313, 2.0
      %v413 = vsub.f32 %v314, 2.0
      %v414 = vsub.f32 %v315, 2.0
      %v415 = vsub.f32 %v316, 2.0
      %v416 = vsub.f32 %v317, 2.0
      %v417 = vsub.f32 %v318, 2.0
      %v418 = vand.u32 2147483647, %v410
      %v419 = vand.u32 2147483647, %v411
      %v420 = vand.u32 2147483647, %v412
      %v421 = vand.u32 2147483647, %v413
      %v422 = vand.u32 2147483647, %v414
      %v423 = vand.u32 2147483647, %v415
      %v424 = vand.u32 2147483647, %v416
      %v425 = vand.u32 2147483647, %v417
      %v426 = vsub.f32 1.0, %v418
      %v427 = vsub.f32 1.0, %v419
      %v428 = vsub.f32 1.0, %v420
      %v429 = vsub.f32 1.0, %v421
      %v430 = vsub.f32 1.0, %v422
      %v431 = vsub.f32 1.0, %v423
      %v432 = vsub.f32 1.0, %v424
      %v433 = vsub.f32 1.0, %v425
      %v434 = vmax.f32 %v426, 0.0
      %v435 = vmax.f32 %v427, 0.0
      %v436 = vmax.f32 %v428, 0.0
      %v437 = vmax.f32 %v429, 0.0
      %v438 = vmax.f32 %v430, 0.0
      %v439 = vmax.f32 %v431, 0.0
      %v440 = vmax.f32 %v432, 0.0
      %v441 = vmax.f32 %v433, 0.0
      %s442 = scalar_lea.vmem %s263, 16
      %v443 = vld [vmem:[%s442] sm:$0xff]
      %v444 = vmul.f32 %v434, %v443
      %v445 = vmul.f32 %v435, %v443
      %v446 = vmul.f32 %v436, %v443
      %v447 = vmul.f32 %v437, %v443
      %v448 = vmul.f32 %v438, %v443
      %v449 = vmul.f32 %v439, %v443
      %v450 = vmul.f32 %v440, %v443
      %v451 = vmul.f32 %v441, %v443
      %v452 = vadd.f32 %v402, %v444
      %v453 = vadd.f32 %v403, %v445
      %v454 = vadd.f32 %v404, %v446
      %v455 = vadd.f32 %v405, %v447
      %v456 = vadd.f32 %v406, %v448
      %v457 = vadd.f32 %v407, %v449
      %v458 = vadd.f32 %v408, %v450
      %v459 = vadd.f32 %v409, %v451
      %v460 = vsub.f32 %v311, 3.0
      %v461 = vsub.f32 %v312, 3.0
      %v462 = vsub.f32 %v313, 3.0
      %v463 = vsub.f32 %v314, 3.0
      %v464 = vsub.f32 %v315, 3.0
      %v465 = vsub.f32 %v316, 3.0
      %v466 = vsub.f32 %v317, 3.0
      %v467 = vsub.f32 %v318, 3.0
      %v468 = vand.u32 2147483647, %v460
      %v469 = vand.u32 2147483647, %v461
      %v470 = vand.u32 2147483647, %v462
      %v471 = vand.u32 2147483647, %v463
      %v472 = vand.u32 2147483647, %v464
      %v473 = vand.u32 2147483647, %v465
      %v474 = vand.u32 2147483647, %v466
      %v475 = vand.u32 2147483647, %v467
      %v476 = vsub.f32 1.0, %v468
      %v477 = vsub.f32 1.0, %v469
      %v478 = vsub.f32 1.0, %v470
      %v479 = vsub.f32 1.0, %v471
      %v480 = vsub.f32 1.0, %v472
      %v481 = vsub.f32 1.0, %v473
      %v482 = vsub.f32 1.0, %v474
      %v483 = vsub.f32 1.0, %v475
      %v484 = vmax.f32 %v476, 0.0
      %v485 = vmax.f32 %v477, 0.0
      %v486 = vmax.f32 %v478, 0.0
      %v487 = vmax.f32 %v479, 0.0
      %v488 = vmax.f32 %v480, 0.0
      %v489 = vmax.f32 %v481, 0.0
      %v490 = vmax.f32 %v482, 0.0
      %v491 = vmax.f32 %v483, 0.0
      %s492 = scalar_lea.vmem %s263, 24
      %v493 = vld [vmem:[%s492] sm:$0xff]
      %v494 = vmul.f32 %v484, %v493
      %v495 = vmul.f32 %v485, %v493
      %v496 = vmul.f32 %v486, %v493
      %v497 = vmul.f32 %v487, %v493
      %v498 = vmul.f32 %v488, %v493
      %v499 = vmul.f32 %v489, %v493
      %v500 = vmul.f32 %v490, %v493
      %v501 = vmul.f32 %v491, %v493
      %v502 = vadd.f32 %v452, %v494
      %v503 = vadd.f32 %v453, %v495
      %v504 = vadd.f32 %v454, %v496
      %v505 = vadd.f32 %v455, %v497
      %v506 = vadd.f32 %v456, %v498
      %v507 = vadd.f32 %v457, %v499
      %v508 = vadd.f32 %v458, %v500
      %v509 = vadd.f32 %v459, %v501
      %v510 = vsub.f32 %v311, 4.0
      %v511 = vsub.f32 %v312, 4.0
      %v512 = vsub.f32 %v313, 4.0
      %v513 = vsub.f32 %v314, 4.0
      %v514 = vsub.f32 %v315, 4.0
      %v515 = vsub.f32 %v316, 4.0
      %v516 = vsub.f32 %v317, 4.0
      %v517 = vsub.f32 %v318, 4.0
      %v518 = vand.u32 2147483647, %v510
      %v519 = vand.u32 2147483647, %v511
      %v520 = vand.u32 2147483647, %v512
      %v521 = vand.u32 2147483647, %v513
      %v522 = vand.u32 2147483647, %v514
      %v523 = vand.u32 2147483647, %v515
      %v524 = vand.u32 2147483647, %v516
      %v525 = vand.u32 2147483647, %v517
      %v526 = vsub.f32 1.0, %v518
      %v527 = vsub.f32 1.0, %v519
      %v528 = vsub.f32 1.0, %v520
      %v529 = vsub.f32 1.0, %v521
      %v530 = vsub.f32 1.0, %v522
      %v531 = vsub.f32 1.0, %v523
      %v532 = vsub.f32 1.0, %v524
      %v533 = vsub.f32 1.0, %v525
      %v534 = vmax.f32 %v526, 0.0
      %v535 = vmax.f32 %v527, 0.0
      %v536 = vmax.f32 %v528, 0.0
      %v537 = vmax.f32 %v529, 0.0
      %v538 = vmax.f32 %v530, 0.0
      %v539 = vmax.f32 %v531, 0.0
      %v540 = vmax.f32 %v532, 0.0
      %v541 = vmax.f32 %v533, 0.0
      %s542 = scalar_lea.vmem %s263, 32
      %v543 = vld [vmem:[%s542] sm:$0xff]
      %v544 = vmul.f32 %v534, %v543
      %v545 = vmul.f32 %v535, %v543
      %v546 = vmul.f32 %v536, %v543
      %v547 = vmul.f32 %v537, %v543
      %v548 = vmul.f32 %v538, %v543
      %v549 = vmul.f32 %v539, %v543
      %v550 = vmul.f32 %v540, %v543
      %v551 = vmul.f32 %v541, %v543
      %v552 = vadd.f32 %v502, %v544
      %v553 = vadd.f32 %v503, %v545
      %v554 = vadd.f32 %v504, %v546
      %v555 = vadd.f32 %v505, %v547
      %v556 = vadd.f32 %v506, %v548
      %v557 = vadd.f32 %v507, %v549
      %v558 = vadd.f32 %v508, %v550
      %v559 = vadd.f32 %v509, %v551
      %v560 = vsub.f32 %v311, 5.0
      %v561 = vsub.f32 %v312, 5.0
      %v562 = vsub.f32 %v313, 5.0
      %v563 = vsub.f32 %v314, 5.0
      %v564 = vsub.f32 %v315, 5.0
      %v565 = vsub.f32 %v316, 5.0
      %v566 = vsub.f32 %v317, 5.0
      %v567 = vsub.f32 %v318, 5.0
      %v568 = vand.u32 2147483647, %v560
      %v569 = vand.u32 2147483647, %v561
      %v570 = vand.u32 2147483647, %v562
      %v571 = vand.u32 2147483647, %v563
      %v572 = vand.u32 2147483647, %v564
      %v573 = vand.u32 2147483647, %v565
      %v574 = vand.u32 2147483647, %v566
      %v575 = vand.u32 2147483647, %v567
      %v576 = vsub.f32 1.0, %v568
      %v577 = vsub.f32 1.0, %v569
      %v578 = vsub.f32 1.0, %v570
      %v579 = vsub.f32 1.0, %v571
      %v580 = vsub.f32 1.0, %v572
      %v581 = vsub.f32 1.0, %v573
      %v582 = vsub.f32 1.0, %v574
      %v583 = vsub.f32 1.0, %v575
      %v584 = vmax.f32 %v576, 0.0
      %v585 = vmax.f32 %v577, 0.0
      %v586 = vmax.f32 %v578, 0.0
      %v587 = vmax.f32 %v579, 0.0
      %v588 = vmax.f32 %v580, 0.0
      %v589 = vmax.f32 %v581, 0.0
      %v590 = vmax.f32 %v582, 0.0
      %v591 = vmax.f32 %v583, 0.0
      %s592 = scalar_lea.vmem %s263, 40
      %v593 = vld [vmem:[%s592] sm:$0xff]
      %v594 = vmul.f32 %v584, %v593
      %v595 = vmul.f32 %v585, %v593
      %v596 = vmul.f32 %v586, %v593
      %v597 = vmul.f32 %v587, %v593
      %v598 = vmul.f32 %v588, %v593
      %v599 = vmul.f32 %v589, %v593
      %v600 = vmul.f32 %v590, %v593
      %v601 = vmul.f32 %v591, %v593
      %v602 = vadd.f32 %v552, %v594
      %v603 = vadd.f32 %v553, %v595
      %v604 = vadd.f32 %v554, %v596
      %v605 = vadd.f32 %v555, %v597
      %v606 = vadd.f32 %v556, %v598
      %v607 = vadd.f32 %v557, %v599
      %v608 = vadd.f32 %v558, %v600
      %v609 = vadd.f32 %v559, %v601
      %v610 = vsub.f32 %v311, 6.0
      %v611 = vsub.f32 %v312, 6.0
      %v612 = vsub.f32 %v313, 6.0
      %v613 = vsub.f32 %v314, 6.0
      %v614 = vsub.f32 %v315, 6.0
      %v615 = vsub.f32 %v316, 6.0
      %v616 = vsub.f32 %v317, 6.0
      %v617 = vsub.f32 %v318, 6.0
      %v618 = vand.u32 2147483647, %v610
      %v619 = vand.u32 2147483647, %v611
      %v620 = vand.u32 2147483647, %v612
      %v621 = vand.u32 2147483647, %v613
      %v622 = vand.u32 2147483647, %v614
      %v623 = vand.u32 2147483647, %v615
      %v624 = vand.u32 2147483647, %v616
      %v625 = vand.u32 2147483647, %v617
      %v626 = vsub.f32 1.0, %v618
      %v627 = vsub.f32 1.0, %v619
      %v628 = vsub.f32 1.0, %v620
      %v629 = vsub.f32 1.0, %v621
      %v630 = vsub.f32 1.0, %v622
      %v631 = vsub.f32 1.0, %v623
      %v632 = vsub.f32 1.0, %v624
      %v633 = vsub.f32 1.0, %v625
      %v634 = vmax.f32 %v626, 0.0
      %v635 = vmax.f32 %v627, 0.0
      %v636 = vmax.f32 %v628, 0.0
      %v637 = vmax.f32 %v629, 0.0
      %v638 = vmax.f32 %v630, 0.0
      %v639 = vmax.f32 %v631, 0.0
      %v640 = vmax.f32 %v632, 0.0
      %v641 = vmax.f32 %v633, 0.0
      %s642 = scalar_lea.vmem %s263, 48
      %v643 = vld [vmem:[%s642] sm:$0xff]
      %v644 = vmul.f32 %v634, %v643
      %v645 = vmul.f32 %v635, %v643
      %v646 = vmul.f32 %v636, %v643
      %v647 = vmul.f32 %v637, %v643
      %v648 = vmul.f32 %v638, %v643
      %v649 = vmul.f32 %v639, %v643
      %v650 = vmul.f32 %v640, %v643
      %v651 = vmul.f32 %v641, %v643
      %v652 = vadd.f32 %v602, %v644
      %v653 = vadd.f32 %v603, %v645
      %v654 = vadd.f32 %v604, %v646
      %v655 = vadd.f32 %v605, %v647
      %v656 = vadd.f32 %v606, %v648
      %v657 = vadd.f32 %v607, %v649
      %v658 = vadd.f32 %v608, %v650
      %v659 = vadd.f32 %v609, %v651
      %v660 = vsub.f32 %v311, 7.0
      %v661 = vsub.f32 %v312, 7.0
      %v662 = vsub.f32 %v313, 7.0
      %v663 = vsub.f32 %v314, 7.0
      %v664 = vsub.f32 %v315, 7.0
      %v665 = vsub.f32 %v316, 7.0
      %v666 = vsub.f32 %v317, 7.0
      %v667 = vsub.f32 %v318, 7.0
      %v668 = vand.u32 2147483647, %v660
      %v669 = vand.u32 2147483647, %v661
      %v670 = vand.u32 2147483647, %v662
      %v671 = vand.u32 2147483647, %v663
      %v672 = vand.u32 2147483647, %v664
      %v673 = vand.u32 2147483647, %v665
      %v674 = vand.u32 2147483647, %v666
      %v675 = vand.u32 2147483647, %v667
      %v676 = vsub.f32 1.0, %v668
      %v677 = vsub.f32 1.0, %v669
      %v678 = vsub.f32 1.0, %v670
      %v679 = vsub.f32 1.0, %v671
      %v680 = vsub.f32 1.0, %v672
      %v681 = vsub.f32 1.0, %v673
      %v682 = vsub.f32 1.0, %v674
      %v683 = vsub.f32 1.0, %v675
      %v684 = vmax.f32 %v676, 0.0
      %v685 = vmax.f32 %v677, 0.0
      %v686 = vmax.f32 %v678, 0.0
      %v687 = vmax.f32 %v679, 0.0
      %v688 = vmax.f32 %v680, 0.0
      %v689 = vmax.f32 %v681, 0.0
      %v690 = vmax.f32 %v682, 0.0
      %v691 = vmax.f32 %v683, 0.0
      %s692 = scalar_lea.vmem %s263, 56
      %v693 = vld [vmem:[%s692] sm:$0xff]
      %v694 = vmul.f32 %v684, %v693
      %v695 = vmul.f32 %v685, %v693
      %v696 = vmul.f32 %v686, %v693
      %v697 = vmul.f32 %v687, %v693
      %v698 = vmul.f32 %v688, %v693
      %v699 = vmul.f32 %v689, %v693
      %v700 = vmul.f32 %v690, %v693
      %v701 = vmul.f32 %v691, %v693
      %v702 = vadd.f32 %v652, %v694
      %v703 = vadd.f32 %v653, %v695
      %v704 = vadd.f32 %v654, %v696
      %v705 = vadd.f32 %v655, %v697
      %v706 = vadd.f32 %v656, %v698
      %v707 = vadd.f32 %v657, %v699
      %v708 = vadd.f32 %v658, %v700
      %v709 = vadd.f32 %v659, %v701
      %vm710 = vcmask 130048
      %v711 = vsel %vm710, %v702, 0.0
      %v712 = vsel %vm710, %v703, 0.0
      %v713 = vadd.f32 %v711, %v712
      %v714 = vsel %vm710, %v704, 0.0
      %v715 = vadd.f32 %v713, %v714
      %v716 = vsel %vm710, %v705, 0.0
      %v717 = vadd.f32 %v715, %v716
      %v718 = vsel %vm710, %v706, 0.0
      %v719 = vadd.f32 %v717, %v718
      %v720 = vsel %vm710, %v707, 0.0
      %v721 = vadd.f32 %v719, %v720
      %v722 = vsel %vm710, %v708, 0.0
      %v723 = vadd.f32 %v721, %v722
      %v724 = vsel %vm710, %v709, 0.0
      %v725 = vadd.f32 %v723, %v724
      %v726 = vsel %vm710, %v725, 0.0
      %v727 = vrot.slane %v726, 4
      %v728 = vadd.f32 %v726, %v727
      %v729 = vrot.slane %v728, 2
      %v730 = vadd.f32 %v728, %v729
      %v731 = vrot.slane %v730, 1
      %v732 = vadd.f32 %v730, %v731
      %vm733 = vcmask 122880
      %734 = vst.msk [vmem:[%s294] sm:$0x1] %vm733, %v732
      %v735 = vpack.c.bf16 %v702, %v702
      %v736 = vpack.c.bf16 %v703, %v703
      %v737 = vpack.c.bf16 %v704, %v704
      %v738 = vpack.c.bf16 %v705, %v705
      %v739 = vpack.c.bf16 %v706, %v706
      %v740 = vpack.c.bf16 %v707, %v707
      %v741 = vpack.c.bf16 %v708, %v708
      %v742 = vpack.c.bf16 %v709, %v709
      %vm743 = vcmask 125952
      %744 = vst.msk [vmem:[%s285] sm:$0xf] %vm743, %v735
      %745 = vst.msk [vmem:[%s285 + $0x4] sm:$0xf] %vm743, %v736
      %746 = vst.msk [vmem:[%s285 + $0x8] sm:$0xf] %vm743, %v737
      %747 = vst.msk [vmem:[%s285 + $0xc] sm:$0xf] %vm743, %v738
      %748 = vst.msk [vmem:[%s285 + $0x10] sm:$0xf] %vm743, %v739
      %749 = vst.msk [vmem:[%s285 + $0x14] sm:$0xf] %vm743, %v740
      %750 = vst.msk [vmem:[%s285 + $0x18] sm:$0xf] %vm743, %v741
      %751 = vst.msk [vmem:[%s285 + $0x1c] sm:$0xf] %vm743, %v742
      %p752 = scmp.lt.s32.totalorder %s20, 1
      %s753 = scalar_select %p752, %s20, 1
      %p754 = scmp.lt.s32.totalorder %s21, 0
      %s755 = scalar_select %p754, %s21, 0
      %p756 = scmp.lt.s32.totalorder %s22, 0
      %s757 = scalar_select %p756, %s22, 0
      %s758 = sadd.s32 %s757, %s755
      %s759 = smul.addr %s753, 8
      %s760 = sadd.s32 %s758, %s759
      %s761 = smul.addr %s760, 4
      %s762 = scalar_lea.vmem %s2, %s761
      %p763 = scmp.lt.s32.totalorder %s20, 1
      %s764 = scalar_select %p763, %s20, 1
      %p765 = scmp.lt.s32.totalorder %s21, 0
      %s766 = scalar_select %p765, %s21, 0
      %p767 = scmp.lt.s32.totalorder %s22, 0
      %s768 = scalar_select %p767, %s22, 0
      %s769 = sadd.s32 %s768, %s766
      %s770 = sadd.s32 %s769, %s764
      %s771 = scalar_lea.vmem %s3, %s770
      // Predicated region
      $region29: #{_lambda_.4} parent=27 // pred_check
        %p772 = pneg %p116
      $region30: #{_lambda_.4} parent=27 // pred_check_branch
        %774 = sbr.rel (%p772) target = $region32
      $region31: #{_lambda_.4} parent=27 // pred_region
        _
      $region32: #{_lambda_.4} parent=27 // pred_fallthru
        _
      // Predicated region
      $region33: #{_lambda_.4} parent=27 // pred_check
        %p775 = pneg %p146
      $region34: #{_lambda_.4} parent=27 // pred_check_branch
        %777 = sbr.rel (%p775) target = $region36
      $region35: #{_lambda_.4} parent=27 // pred_region
        _
      $region36: #{_lambda_.4} parent=27 // pred_fallthru
        _
    $region28: #{_lambda_.4} parent=5 // pred_fallthru
      _
    %p778 = scmp.le.s32.totalorder 2, %s10
    // Predicated region
    $region37: #{_lambda_.4} parent=5 // pred_check
      %p779 = pneg %p778
    $region38: #{_lambda_.4} parent=5 // pred_check_branch
      %781 = sbr.rel (%p779) target = $region40
    $region39: #{_lambda_.4} parent=5 // pred_region
      %s782 = ssub.s32 %s10, 2
      // Predicated region
      $region41: #{_lambda_.4} parent=39 // pred_check
        %p783 = pneg %p122
      $region42: #{_lambda_.4} parent=39 // pred_check_branch
        %785 = sbr.rel (%p783) target = $region44
      $region43: #{_lambda_.4} parent=39 // pred_region
        %p786 = scmp.lt.s32.totalorder %s23, 1
        %s787 = scalar_select %p786, %s23, 1
        %p788 = scmp.lt.s32.totalorder %s24, 0
        %s789 = scalar_select %p788, %s24, 0
        %p790 = scmp.lt.s32.totalorder %s25, 0
        %s791 = scalar_select %p790, %s25, 0
        %s792 = sadd.s32 %s791, %s789
        %s793 = smul.addr %s787, 8
        %s794 = sadd.s32 %s792, %s793
        %s795 = smul.addr %s794, 4
        %s796 = scalar_lea.vmem %s2, %s795
      $region44: #{_lambda_.4} parent=39 // pred_fallthru
        _
      // Predicated region
      $region45: #{_lambda_.4} parent=39 // pred_check
        %p797 = pneg %p152
      $region46: #{_lambda_.4} parent=39 // pred_check_branch
        %799 = sbr.rel (%p797) target = $region48
      $region47: #{_lambda_.4} parent=39 // pred_region
        %p800 = scmp.lt.s32.totalorder %s23, 1
        %s801 = scalar_select %p800, %s23, 1
        %p802 = scmp.lt.s32.totalorder %s24, 0
        %s803 = scalar_select %p802, %s24, 0
        %p804 = scmp.lt.s32.totalorder %s25, 0
        %s805 = scalar_select %p804, %s25, 0
        %s806 = sadd.s32 %s805, %s803
        %s807 = sadd.s32 %s806, %s801
        %s808 = scalar_lea.vmem %s3, %s807
      $region48: #{_lambda_.4} parent=39 // pred_fallthru
        _
    $region40: #{_lambda_.4} parent=5 // pred_fallthru
      _
  $region6: #{_lambda_.4} parent=0 // loop_footer
    %s14 = sadd.s32 1, %s10
  $region7: #{_lambda_.4} parent=0 // loop_footer_branch
    %9 = sbr.rel target = $region3
  $region8: #{_lambda_.4} parent=0 // loop_exit
    _

// kernel: _lambda_.3
$region0: #{_lambda_.3}
  #allocation0 [shape = 'u32[]', space=smem, size = 0x4, offset = 0x4, fixed_abs, tag = 'smem constant byte address 0x4 - core index']
  #allocation1 [shape = 'u32[72,128]{1,0:T(1,128)}', space=vmem, size = 0x9000, scoped, tag = 'internal scratch']
  %s0 = inlined_call_operand.vmem [shape: f32[2,8,8,16], index: 0, kind: input, shape index: {}]
  %s1 = inlined_call_operand.vmem [shape: f32[2,8,8,16], index: 1, kind: input, shape index: {}]
  %s2 = inlined_call_operand.vmem [shape: bf16[2,8,8,16], index: 2, kind: output, shape index: {0}]
  %s3 = inlined_call_operand.vmem [shape: bf16[2,8,8,16], index: 3, kind: output, shape index: {1}]
  %s4 = inlined_call_operand.vmem [shape: f32[2,1,1,16], index: 4, kind: output, shape index: {2}]
  %s5 = inlined_call_operand.vmem [shape: f32[2,1,1,16], index: 5, kind: output, shape index: {3}]
  %6 = xla_tuple %s2, %s3, %s4, %s5
  %s7 = sld [smem:[#allocation0]]
  $region65: #{_lambda_.3} parent=0
    _
  %s9 = ssub.s32 1, %s7
  %s10 = scalar_select 0, %s9, %s7
  loop: start=0, step=1, limit=4
  $region2: #{_lambda_.3} parent=0 // loop_pre_header
    _
  $region3: #{_lambda_.3} parent=0 // loop_header
    %s12 = sphi 0, %s16
    %p13 = scmp.ge.s32.totalorder %s12, 4
    %s19 = sphi 0, %s38
    %s20 = sphi 0, %s34
    %s21 = sphi 0, %s30
    %s22 = sphi 0, %s19
    %s23 = sphi 0, %s20
    %s24 = sphi 0, %s21
    %s25 = sphi 0, %s22
    %s26 = sphi 0, %s23
    %s27 = sphi 0, %s24
    %s45 = sphi 0, %s47
    %s48 = sphi 0, %s45
    %s49 = sphi 0, %s48
    %s65 = sphi 0, %s49
    %s75 = sphi 0, %s77
    %s78 = sphi 0, %s75
    %s79 = sphi 0, %s78
    %s95 = sphi 0, %s79
    %s105 = sphi 0, %s107
    %s108 = sphi 0, %s105
    %s109 = sphi 0, %s108
    %s125 = sphi 0, %s109
    %s135 = sphi 0, %s137
    %s138 = sphi 0, %s135
    %s139 = sphi 0, %s138
    %s155 = sphi 0, %s139
    %s165 = sphi 0, %s167
    %s168 = sphi 0, %s165
    %s169 = sphi 0, %s168
    %s185 = sphi 0, %s169
    %s195 = sphi 0, %s197
    %s198 = sphi 0, %s195
    %s199 = sphi 0, %s198
    %s215 = sphi 0, %s199
  $region4: #{_lambda_.3} parent=0 // loop_header_branch
    %15 = sbr.rel (%p13) target = $region8
  $region5: #{_lambda_.3} parent=0 // loop_body
    %s17 = ssub.s32 %s12, 1
    %s18 = ssub.s32 %s12, 2
    %s28 = sadd.s32 1, %s21
    %p29 = scmp.ge.s32.totalorder %s28, 1
    %s30 = scalar_select %p29, 0, %s28
    %s31 = sadd.s32 1, %s20
    %s32 = scalar_select %p29, %s31, %s20
    %p33 = scmp.ge.s32.totalorder %s32, 1
    %s34 = scalar_select %p33, 0, %s32
    %s35 = sadd.s32 1, %s19
    %s36 = scalar_select %p33, %s35, %s19
    %p37 = scmp.ge.s32.totalorder %s36, 2
    %s38 = scalar_select %p37, 0, %s36
    %s39 = ssub.s32 %s19, %s38
    %s40 = ssub.s32 %s20, %s34
    %s41 = sor.u32 %s39, %s40
    %s42 = ssub.s32 %s21, %s30
    %s43 = sor.u32 %s41, %s42
    %p44 = scmp.eq.s32.totalorder %s43, 0
    %s46 = sadd.s32 %s45, 1
    %s47 = scalar_select %p44, %s45, %s46
    %p50 = pneg %p44
    %p51 = scmp.eq.s32.totalorder %s12, 1
    %p52 = por %p50, %p51
    %p53 = scmp.ne.s32.totalorder %s45, %s48
    %p54 = scmp.eq.s32.totalorder %s12, 0
    %p55 = por %p53, %p54
    %p56 = scmp.ne.s32.totalorder %s45, %s48
    %p57 = scmp.eq.s32.totalorder %s17, 1
    %p58 = por %p56, %p57
    %p59 = scmp.ne.s32.totalorder %s48, %s49
    %p60 = scmp.eq.s32.totalorder %s17, 0
    %p61 = por %p59, %p60
    %p62 = scmp.ne.s32.totalorder %s48, %s49
    %p63 = scmp.eq.s32.totalorder %s18, 1
    %p64 = por %p62, %p63
    %p66 = scmp.ne.s32.totalorder %s49, %s65
    %p67 = scmp.eq.s32.totalorder %s18, 0
    %p68 = por %p66, %p67
    %s69 = ssub.s32 %s19, %s38
    %s70 = ssub.s32 %s20, %s34
    %s71 = sor.u32 %s69, %s70
    %s72 = ssub.s32 %s21, %s30
    %s73 = sor.u32 %s71, %s72
    %p74 = scmp.eq.s32.totalorder %s73, 0
    %s76 = sadd.s32 %s75, 1
    %s77 = scalar_select %p74, %s75, %s76
    %p80 = pneg %p74
    %p81 = scmp.eq.s32.totalorder %s12, 1
    %p82 = por %p80, %p81
    %p83 = scmp.ne.s32.totalorder %s75, %s78
    %p84 = scmp.eq.s32.totalorder %s12, 0
    %p85 = por %p83, %p84
    %p86 = scmp.ne.s32.totalorder %s75, %s78
    %p87 = scmp.eq.s32.totalorder %s17, 1
    %p88 = por %p86, %p87
    %p89 = scmp.ne.s32.totalorder %s78, %s79
    %p90 = scmp.eq.s32.totalorder %s17, 0
    %p91 = por %p89, %p90
    %p92 = scmp.ne.s32.totalorder %s78, %s79
    %p93 = scmp.eq.s32.totalorder %s18, 1
    %p94 = por %p92, %p93
    %p96 = scmp.ne.s32.totalorder %s79, %s95
    %p97 = scmp.eq.s32.totalorder %s18, 0
    %p98 = por %p96, %p97
    %s99 = ssub.s32 %s19, %s38
    %s100 = ssub.s32 %s20, %s34
    %s101 = sor.u32 %s99, %s100
    %s102 = ssub.s32 %s21, %s30
    %s103 = sor.u32 %s101, %s102
    %p104 = scmp.eq.s32.totalorder %s103, 0
    %s106 = sadd.s32 %s105, 1
    %s107 = scalar_select %p104, %s105, %s106
    %p110 = pneg %p104
    %p111 = scmp.eq.s32.totalorder %s12, 1
    %p112 = por %p110, %p111
    %p113 = scmp.ne.s32.totalorder %s105, %s108
    %p114 = scmp.eq.s32.totalorder %s12, 0
    %p115 = por %p113, %p114
    %p116 = scmp.ne.s32.totalorder %s105, %s108
    %p117 = scmp.eq.s32.totalorder %s17, 1
    %p118 = por %p116, %p117
    %p119 = scmp.ne.s32.totalorder %s108, %s109
    %p120 = scmp.eq.s32.totalorder %s17, 0
    %p121 = por %p119, %p120
    %p122 = scmp.ne.s32.totalorder %s108, %s109
    %p123 = scmp.eq.s32.totalorder %s18, 1
    %p124 = por %p122, %p123
    %p126 = scmp.ne.s32.totalorder %s109, %s125
    %p127 = scmp.eq.s32.totalorder %s18, 0
    %p128 = por %p126, %p127
    %s129 = ssub.s32 %s19, %s38
    %s130 = ssub.s32 %s20, %s34
    %s131 = sor.u32 %s129, %s130
    %s132 = ssub.s32 %s21, %s30
    %s133 = sor.u32 %s131, %s132
    %p134 = scmp.eq.s32.totalorder %s133, 0
    %s136 = sadd.s32 %s135, 1
    %s137 = scalar_select %p134, %s135, %s136
    %p140 = pneg %p134
    %p141 = scmp.eq.s32.totalorder %s12, 1
    %p142 = por %p140, %p141
    %p143 = scmp.ne.s32.totalorder %s135, %s138
    %p144 = scmp.eq.s32.totalorder %s12, 0
    %p145 = por %p143, %p144
    %p146 = scmp.ne.s32.totalorder %s135, %s138
    %p147 = scmp.eq.s32.totalorder %s17, 1
    %p148 = por %p146, %p147
    %p149 = scmp.ne.s32.totalorder %s138, %s139
    %p150 = scmp.eq.s32.totalorder %s17, 0
    %p151 = por %p149, %p150
    %p152 = scmp.ne.s32.totalorder %s138, %s139
    %p153 = scmp.eq.s32.totalorder %s18, 1
    %p154 = por %p152, %p153
    %p156 = scmp.ne.s32.totalorder %s139, %s155
    %p157 = scmp.eq.s32.totalorder %s18, 0
    %p158 = por %p156, %p157
    %s159 = ssub.s32 %s19, %s38
    %s160 = ssub.s32 %s20, %s34
    %s161 = sor.u32 %s159, %s160
    %s162 = ssub.s32 %s21, %s30
    %s163 = sor.u32 %s161, %s162
    %p164 = scmp.eq.s32.totalorder %s163, 0
    %s166 = sadd.s32 %s165, 1
    %s167 = scalar_select %p164, %s165, %s166
    %p170 = pneg %p164
    %p171 = scmp.eq.s32.totalorder %s12, 1
    %p172 = por %p170, %p171
    %p173 = scmp.ne.s32.totalorder %s165, %s168
    %p174 = scmp.eq.s32.totalorder %s12, 0
    %p175 = por %p173, %p174
    %p176 = scmp.ne.s32.totalorder %s165, %s168
    %p177 = scmp.eq.s32.totalorder %s17, 1
    %p178 = por %p176, %p177
    %p179 = scmp.ne.s32.totalorder %s168, %s169
    %p180 = scmp.eq.s32.totalorder %s17, 0
    %p181 = por %p179, %p180
    %p182 = scmp.ne.s32.totalorder %s168, %s169
    %p183 = scmp.eq.s32.totalorder %s18, 1
    %p184 = por %p182, %p183
    %p186 = scmp.ne.s32.totalorder %s169, %s185
    %p187 = scmp.eq.s32.totalorder %s18, 0
    %p188 = por %p186, %p187
    %s189 = ssub.s32 %s19, %s38
    %s190 = ssub.s32 %s20, %s34
    %s191 = sor.u32 %s189, %s190
    %s192 = ssub.s32 %s21, %s30
    %s193 = sor.u32 %s191, %s192
    %p194 = scmp.eq.s32.totalorder %s193, 0
    %s196 = sadd.s32 %s195, 1
    %s197 = scalar_select %p194, %s195, %s196
    %p200 = pneg %p194
    %p201 = scmp.eq.s32.totalorder %s12, 1
    %p202 = por %p200, %p201
    %p203 = scmp.ne.s32.totalorder %s195, %s198
    %p204 = scmp.eq.s32.totalorder %s12, 0
    %p205 = por %p203, %p204
    %p206 = scmp.ne.s32.totalorder %s195, %s198
    %p207 = scmp.eq.s32.totalorder %s17, 1
    %p208 = por %p206, %p207
    %p209 = scmp.ne.s32.totalorder %s198, %s199
    %p210 = scmp.eq.s32.totalorder %s17, 0
    %p211 = por %p209, %p210
    %p212 = scmp.ne.s32.totalorder %s198, %s199
    %p213 = scmp.eq.s32.totalorder %s18, 1
    %p214 = por %p212, %p213
    %p216 = scmp.ne.s32.totalorder %s199, %s215
    %p217 = scmp.eq.s32.totalorder %s18, 0
    %p218 = por %p216, %p217
    %p219 = scmp.le.s32.totalorder 1, %s12
    %p220 = scmp.lt.s32.totalorder %s12, 3
    %p221 = pnand %p219, %p220
    %p222 = pneg %p221
    // Predicated region
    $region9: #{_lambda_.3} parent=5 // pred_check
      _
    $region10: #{_lambda_.3} parent=5 // pred_check_branch
      %224 = sbr.rel (%p221) target = $region12
    $region11: #{_lambda_.3} parent=5 // pred_region
      %s225 = ssub.s32 %s12, 1
    $region12: #{_lambda_.3} parent=5 // pred_fallthru
      _
    %p226 = scmp.lt.s32.totalorder %s12, 2
    // Predicated region
    $region13: #{_lambda_.3} parent=5 // pred_check
      %p227 = pneg %p226
    $region14: #{_lambda_.3} parent=5 // pred_check_branch
      %229 = sbr.rel (%p227) target = $region16
    $region15: #{_lambda_.3} parent=5 // pred_region
      // Predicated region
      $region17: #{_lambda_.3} parent=15 // pred_check
        %p230 = pneg %p55
      $region18: #{_lambda_.3} parent=15 // pred_check_branch
        %232 = sbr.rel (%p230) target = $region20
      $region19: #{_lambda_.3} parent=15 // pred_region
        %s233 = smul.u32 8, %s20
        %p234 = scmp.lt.s32.totalorder %s19, 1
        %s235 = scalar_select %p234, %s19, 1
        %p236 = scmp.lt.s32.totalorder %s233, 7
        %s237 = scalar_select %p236, %s233, 7
        %p238 = scmp.lt.s32.totalorder %s21, 0
        %s239 = scalar_select %p238, %s21, 0
        %s240 = sadd.s32 %s239, %s237
        %s241 = smul.addr %s235, 8
        %s242 = sadd.s32 %s240, %s241
        %s243 = smul.addr %s242, 8
        %s244 = scalar_lea.vmem %s0, %s243
        %s245 = smul.u32 8, %s20
      $region20: #{_lambda_.3} parent=15 // pred_fallthru
        _
      // Predicated region
      $region21: #{_lambda_.3} parent=15 // pred_check
        %p246 = pneg %p85
      $region22: #{_lambda_.3} parent=15 // pred_check_branch
        %248 = sbr.rel (%p246) target = $region24
      $region23: #{_lambda_.3} parent=15 // pred_region
        %s249 = smul.u32 8, %s20
        %p250 = scmp.lt.s32.totalorder %s19, 1
        %s251 = scalar_select %p250, %s19, 1
        %p252 = scmp.lt.s32.totalorder %s249, 7
        %s253 = scalar_select %p252, %s249, 7
        %p254 = scmp.lt.s32.totalorder %s21, 0
        %s255 = scalar_select %p254, %s21, 0
        %s256 = sadd.s32 %s255, %s253
        %s257 = smul.addr %s251, 8
        %s258 = sadd.s32 %s256, %s257
        %s259 = smul.addr %s258, 8
        %s260 = scalar_lea.vmem %s1, %s259
        %s261 = smul.u32 8, %s20
      $region24: #{_lambda_.3} parent=15 // pred_fallthru
        _
    $region16: #{_lambda_.3} parent=5 // pred_fallthru
      _
    %p262 = scmp.le.s32.totalorder 1, %s12
    %p263 = scmp.lt.s32.totalorder %s12, 3
    %p264 = pnand %p262, %p263
    %p265 = pneg %p264
    // Predicated region
    $region25: #{_lambda_.3} parent=5 // pred_check
      _
    $region26: #{_lambda_.3} parent=5 // pred_check_branch
      %267 = sbr.rel (%p264) target = $region28
    $region27: #{_lambda_.3} parent=5 // pred_region
      %s268 = ssub.s32 %s12, 1
      %s269 = smul.u32 8, %s23
      %p270 = scmp.lt.s32.totalorder %s22, 1
      %s271 = scalar_select %p270, %s22, 1
      %p272 = scmp.lt.s32.totalorder %s269, 7
      %s273 = scalar_select %p272, %s269, 7
      %p274 = scmp.lt.s32.totalorder %s24, 0
      %s275 = scalar_select %p274, %s24, 0
      %s276 = sadd.s32 %s275, %s273
      %s277 = smul.addr %s271, 8
      %s278 = sadd.s32 %s276, %s277
      %s279 = smul.addr %s278, 8
      %s280 = scalar_lea.vmem %s0, %s279
      %p281 = pneg %p61
      %p282 = pneg %p58
      %s283 = smul.u32 8, %s23
      %p284 = scmp.lt.s32.totalorder %s22, 1
      %s285 = scalar_select %p284, %s22, 1
      %p286 = scmp.lt.s32.totalorder %s283, 7
      %s287 = scalar_select %p286, %s283, 7
      %p288 = scmp.lt.s32.totalorder %s24, 0
      %s289 = scalar_select %p288, %s24, 0
      %s290 = sadd.s32 %s289, %s287
      %s291 = smul.addr %s285, 8
      %s292 = sadd.s32 %s290, %s291
      %s293 = smul.addr %s292, 8
      %s294 = scalar_lea.vmem %s1, %s293
      %p295 = pneg %p91
      %p296 = pneg %p88
      %p297 = pneg %p121
      %p298 = pneg %p118
      %s299 = smul.u32 8, %s23
      %p300 = scmp.lt.s32.totalorder %s22, 1
      %s301 = scalar_select %p300, %s22, 1
      %p302 = scmp.lt.s32.totalorder %s299, 7
      %s303 = scalar_select %p302, %s299, 7
      %p304 = scmp.lt.s32.totalorder %s24, 0
      %s305 = scalar_select %p304, %s24, 0
      %s306 = sadd.s32 %s305, %s303
      %s307 = smul.addr %s301, 8
      %s308 = sadd.s32 %s306, %s307
      %s309 = smul.addr %s308, 4
      %s310 = scalar_lea.vmem %s2, %s309
      %p311 = pneg %p151
      %p312 = pneg %p148
      %s313 = smul.u32 8, %s23
      %p314 = scmp.lt.s32.totalorder %s22, 1
      %s315 = scalar_select %p314, %s22, 1
      %p316 = scmp.lt.s32.totalorder %s313, 7
      %s317 = scalar_select %p316, %s313, 7
      %p318 = scmp.lt.s32.totalorder %s24, 0
      %s319 = scalar_select %p318, %s24, 0
      %s320 = sadd.s32 %s319, %s317
      %s321 = smul.addr %s315, 8
      %s322 = sadd.s32 %s320, %s321
      %s323 = smul.addr %s322, 4
      %s324 = scalar_lea.vmem %s3, %s323
      %p325 = pneg %p181
      %p326 = pneg %p178
      %p327 = scmp.lt.s32.totalorder %s22, 1
      %s328 = scalar_select %p327, %s22, 1
      %p329 = scmp.lt.s32.totalorder %s23, 0
      %s330 = scalar_select %p329, %s23, 0
      %p331 = scmp.lt.s32.totalorder %s24, 0
      %s332 = scalar_select %p331, %s24, 0
      %s333 = sadd.s32 %s332, %s330
      %s334 = sadd.s32 %s333, %s328
      %s335 = scalar_lea.vmem %s4, %s334
      %p336 = pneg %p211
      %p337 = pneg %p208
      %p338 = scmp.lt.s32.totalorder %s22, 1
      %s339 = scalar_select %p338, %s22, 1
      %p340 = scmp.lt.s32.totalorder %s23, 0
      %s341 = scalar_select %p340, %s23, 0
      %p342 = scmp.lt.s32.totalorder %s24, 0
      %s343 = scalar_select %p342, %s24, 0
      %s344 = sadd.s32 %s343, %s341
      %s345 = sadd.s32 %s344, %s339
      %s346 = scalar_lea.vmem %s5, %s345
      %s347 = smul.u32 8, %s23
      %p348 = scmp.lt.s32.totalorder %s22, 1
      %s349 = scalar_select %p348, %s22, 1
      %p350 = scmp.lt.s32.totalorder %s347, 7
      %s351 = scalar_select %p350, %s347, 7
      %p352 = scmp.lt.s32.totalorder %s24, 0
      %s353 = scalar_select %p352, %s24, 0
      %s354 = sadd.s32 %s353, %s351
      %s355 = smul.addr %s349, 8
      %s356 = sadd.s32 %s354, %s355
      %s357 = smul.addr %s356, 8
      %s358 = scalar_lea.vmem %s0, %s357
      %s359 = smul.u32 8, %s23
      %s360 = smul.u32 8, %s23
      %p361 = scmp.lt.s32.totalorder %s22, 1
      %s362 = scalar_select %p361, %s22, 1
      %p363 = scmp.lt.s32.totalorder %s360, 7
      %s364 = scalar_select %p363, %s360, 7
      %p365 = scmp.lt.s32.totalorder %s24, 0
      %s366 = scalar_select %p365, %s24, 0
      %s367 = sadd.s32 %s366, %s364
      %s368 = smul.addr %s362, 8
      %s369 = sadd.s32 %s367, %s368
      %s370 = smul.addr %s369, 8
      %s371 = scalar_lea.vmem %s1, %s370
      %s372 = smul.u32 8, %s23
      %s373 = smul.u32 8, %s23
      %p374 = scmp.lt.s32.totalorder %s22, 1
      %s375 = scalar_select %p374, %s22, 1
      %p376 = scmp.lt.s32.totalorder %s373, 7
      %s377 = scalar_select %p376, %s373, 7
      %p378 = scmp.lt.s32.totalorder %s24, 0
      %s379 = scalar_select %p378, %s24, 0
      %s380 = sadd.s32 %s379, %s377
      %s381 = smul.addr %s375, 8
      %s382 = sadd.s32 %s380, %s381
      %s383 = smul.addr %s382, 4
      %s384 = scalar_lea.vmem %s2, %s383
      %s385 = smul.u32 8, %s23
      %s386 = smul.u32 8, %s23
      %p387 = scmp.lt.s32.totalorder %s22, 1
      %s388 = scalar_select %p387, %s22, 1
      %p389 = scmp.lt.s32.totalorder %s386, 7
      %s390 = scalar_select %p389, %s386, 7
      %p391 = scmp.lt.s32.totalorder %s24, 0
      %s392 = scalar_select %p391, %s24, 0
      %s393 = sadd.s32 %s392, %s390
      %s394 = smul.addr %s388, 8
      %s395 = sadd.s32 %s393, %s394
      %s396 = smul.addr %s395, 4
      %s397 = scalar_lea.vmem %s3, %s396
      %s398 = smul.u32 8, %s23
      %p399 = scmp.lt.s32.totalorder %s22, 1
      %s400 = scalar_select %p399, %s22, 1
      %p401 = scmp.lt.s32.totalorder %s23, 0
      %s402 = scalar_select %p401, %s23, 0
      %p403 = scmp.lt.s32.totalorder %s24, 0
      %s404 = scalar_select %p403, %s24, 0
      %s405 = sadd.s32 %s404, %s402
      %s406 = sadd.s32 %s405, %s400
      %s407 = scalar_lea.vmem %s4, %s406
      %p408 = scmp.lt.s32.totalorder %s22, 1
      %s409 = scalar_select %p408, %s22, 1
      %p410 = scmp.lt.s32.totalorder %s23, 0
      %s411 = scalar_select %p410, %s23, 0
      %p412 = scmp.lt.s32.totalorder %s24, 0
      %s413 = scalar_select %p412, %s24, 0
      %s414 = sadd.s32 %s413, %s411
      %s415 = sadd.s32 %s414, %s409
      %s416 = scalar_lea.vmem %s5, %s415
      %v417 = vld [vmem:[%s358] sm:$0xff]
      %v418 = vld [vmem:[%s358 + $0x8] sm:$0xff]
      %v419 = vld [vmem:[%s358 + $0x10] sm:$0xff]
      %v420 = vld [vmem:[%s358 + $0x18] sm:$0xff]
      %v421 = vld [vmem:[%s358 + $0x20] sm:$0xff]
      %v422 = vld [vmem:[%s358 + $0x28] sm:$0xff]
      %v423 = vld [vmem:[%s358 + $0x30] sm:$0xff]
      %v424 = vld [vmem:[%s358 + $0x38] sm:$0xff]
      %v425 = vlaneseq
      %v426 = vshrl.u32 %v425, 7
      %v427 = vcvt.s32.f32 %v426
      %v428 = vld [vmem:[%s371] sm:$0xff]
      %v429 = vld [vmem:[%s371 + $0x8] sm:$0xff]
      %v430 = vld [vmem:[%s371 + $0x10] sm:$0xff]
      %v431 = vld [vmem:[%s371 + $0x18] sm:$0xff]
      %v432 = vld [vmem:[%s371 + $0x20] sm:$0xff]
      %v433 = vld [vmem:[%s371 + $0x28] sm:$0xff]
      %v434 = vld [vmem:[%s371 + $0x30] sm:$0xff]
      %v435 = vld [vmem:[%s371 + $0x38] sm:$0xff]
      %v436 = vadd.f32 %v427, %v428
      %v437 = vadd.f32 %v427, %v429
      %v438 = vadd.f32 %v427, %v430
      %v439 = vadd.f32 %v427, %v431
      %v440 = vadd.f32 %v427, %v432
      %v441 = vadd.f32 %v427, %v433
      %v442 = vadd.f32 %v427, %v434
      %v443 = vadd.f32 %v427, %v435
      %v444 = vand.u32 2147483647, %v436
      %v445 = vand.u32 2147483647, %v437
      %v446 = vand.u32 2147483647, %v438
      %v447 = vand.u32 2147483647, %v439
      %v448 = vand.u32 2147483647, %v440
      %v449 = vand.u32 2147483647, %v441
      %v450 = vand.u32 2147483647, %v442
      %v451 = vand.u32 2147483647, %v443
      %v452 = vsub.f32 1.0, %v444
      %v453 = vsub.f32 1.0, %v445
      %v454 = vsub.f32 1.0, %v446
      %v455 = vsub.f32 1.0, %v447
      %v456 = vsub.f32 1.0, %v448
      %v457 = vsub.f32 1.0, %v449
      %v458 = vsub.f32 1.0, %v450
      %v459 = vsub.f32 1.0, %v451
      %v460 = vmax.f32 %v452, 0.0
      %v461 = vmax.f32 %v453, 0.0
      %v462 = vmax.f32 %v454, 0.0
      %v463 = vmax.f32 %v455, 0.0
      %v464 = vmax.f32 %v456, 0.0
      %v465 = vmax.f32 %v457, 0.0
      %v466 = vmax.f32 %v458, 0.0
      %v467 = vmax.f32 %v459, 0.0
      %v468 = vld [vmem:[%s358] sm:$0x1]
      %v469 = vld [vmem:[%s358 + $0x8] sm:$0x1]
      %v470 = vld [vmem:[%s358 + $0x10] sm:$0x1]
      %v471 = vld [vmem:[%s358 + $0x18] sm:$0x1]
      %v472 = vld [vmem:[%s358 + $0x20] sm:$0x1]
      %v473 = vld [vmem:[%s358 + $0x28] sm:$0x1]
      %v474 = vld [vmem:[%s358 + $0x30] sm:$0x1]
      %v475 = vld [vmem:[%s358 + $0x38] sm:$0x1]
      %v476 = vperm.slane %v468, 0
      %v477 = vperm.slane %v469, 0
      %v478 = vperm.slane %v470, 0
      %v479 = vperm.slane %v471, 0
      %v480 = vperm.slane %v472, 0
      %v481 = vperm.slane %v473, 0
      %v482 = vperm.slane %v474, 0
      %v483 = vperm.slane %v475, 0
      %v484 = vmul.f32 %v460, %v476
      %v485 = vmul.f32 %v461, %v477
      %v486 = vmul.f32 %v462, %v478
      %v487 = vmul.f32 %v463, %v479
      %v488 = vmul.f32 %v464, %v480
      %v489 = vmul.f32 %v465, %v481
      %v490 = vmul.f32 %v466, %v482
      %v491 = vmul.f32 %v467, %v483
      %v492 = vadd.f32 %v484, 0.0
      %v493 = vadd.f32 %v485, 0.0
      %v494 = vadd.f32 %v486, 0.0
      %v495 = vadd.f32 %v487, 0.0
      %v496 = vadd.f32 %v488, 0.0
      %v497 = vadd.f32 %v489, 0.0
      %v498 = vadd.f32 %v490, 0.0
      %v499 = vadd.f32 %v491, 0.0
      %v500 = vsub.f32 %v436, 1.0
      %v501 = vsub.f32 %v437, 1.0
      %v502 = vsub.f32 %v438, 1.0
      %v503 = vsub.f32 %v439, 1.0
      %v504 = vsub.f32 %v440, 1.0
      %v505 = vsub.f32 %v441, 1.0
      %v506 = vsub.f32 %v442, 1.0
      %v507 = vsub.f32 %v443, 1.0
      %v508 = vand.u32 2147483647, %v500
      %v509 = vand.u32 2147483647, %v501
      %v510 = vand.u32 2147483647, %v502
      %v511 = vand.u32 2147483647, %v503
      %v512 = vand.u32 2147483647, %v504
      %v513 = vand.u32 2147483647, %v505
      %v514 = vand.u32 2147483647, %v506
      %v515 = vand.u32 2147483647, %v507
      %v516 = vsub.f32 1.0, %v508
      %v517 = vsub.f32 1.0, %v509
      %v518 = vsub.f32 1.0, %v510
      %v519 = vsub.f32 1.0, %v511
      %v520 = vsub.f32 1.0, %v512
      %v521 = vsub.f32 1.0, %v513
      %v522 = vsub.f32 1.0, %v514
      %v523 = vsub.f32 1.0, %v515
      %v524 = vmax.f32 %v516, 0.0
      %v525 = vmax.f32 %v517, 0.0
      %v526 = vmax.f32 %v518, 0.0
      %v527 = vmax.f32 %v519, 0.0
      %v528 = vmax.f32 %v520, 0.0
      %v529 = vmax.f32 %v521, 0.0
      %v530 = vmax.f32 %v522, 0.0
      %v531 = vmax.f32 %v523, 0.0
      %v532 = vld [vmem:[%s358 + $0x1] sm:$0x1]
      %v533 = vld [vmem:[%s358 + $0x9] sm:$0x1]
      %v534 = vld [vmem:[%s358 + $0x11] sm:$0x1]
      %v535 = vld [vmem:[%s358 + $0x19] sm:$0x1]
      %v536 = vld [vmem:[%s358 + $0x21] sm:$0x1]
      %v537 = vld [vmem:[%s358 + $0x29] sm:$0x1]
      %v538 = vld [vmem:[%s358 + $0x31] sm:$0x1]
      %v539 = vld [vmem:[%s358 + $0x39] sm:$0x1]
      %v540 = vperm.slane %v532, 0
      %v541 = vperm.slane %v533, 0
      %v542 = vperm.slane %v534, 0
      %v543 = vperm.slane %v535, 0
      %v544 = vperm.slane %v536, 0
      %v545 = vperm.slane %v537, 0
      %v546 = vperm.slane %v538, 0
      %v547 = vperm.slane %v539, 0
      %v548 = vmul.f32 %v524, %v540
      %v549 = vmul.f32 %v525, %v541
      %v550 = vmul.f32 %v526, %v542
      %v551 = vmul.f32 %v527, %v543
      %v552 = vmul.f32 %v528, %v544
      %v553 = vmul.f32 %v529, %v545
      %v554 = vmul.f32 %v530, %v546
      %v555 = vmul.f32 %v531, %v547
      %v556 = vadd.f32 %v492, %v548
      %v557 = vadd.f32 %v493, %v549
      %v558 = vadd.f32 %v494, %v550
      %v559 = vadd.f32 %v495, %v551
      %v560 = vadd.f32 %v496, %v552
      %v561 = vadd.f32 %v497, %v553
      %v562 = vadd.f32 %v498, %v554
      %v563 = vadd.f32 %v499, %v555
      %v564 = vsub.f32 %v436, 2.0
      %v565 = vsub.f32 %v437, 2.0
      %v566 = vsub.f32 %v438, 2.0
      %v567 = vsub.f32 %v439, 2.0
      %v568 = vsub.f32 %v440, 2.0
      %v569 = vsub.f32 %v441, 2.0
      %v570 = vsub.f32 %v442, 2.0
      %v571 = vsub.f32 %v443, 2.0
      %v572 = vand.u32 2147483647, %v564
      %v573 = vand.u32 2147483647, %v565
      %v574 = vand.u32 2147483647, %v566
      %v575 = vand.u32 2147483647, %v567
      %v576 = vand.u32 2147483647, %v568
      %v577 = vand.u32 2147483647, %v569
      %v578 = vand.u32 2147483647, %v570
      %v579 = vand.u32 2147483647, %v571
      %v580 = vsub.f32 1.0, %v572
      %v581 = vsub.f32 1.0, %v573
      %v582 = vsub.f32 1.0, %v574
      %v583 = vsub.f32 1.0, %v575
      %v584 = vsub.f32 1.0, %v576
      %v585 = vsub.f32 1.0, %v577
      %v586 = vsub.f32 1.0, %v578
      %v587 = vsub.f32 1.0, %v579
      %v588 = vmax.f32 %v580, 0.0
      %v589 = vmax.f32 %v581, 0.0
      %v590 = vmax.f32 %v582, 0.0
      %v591 = vmax.f32 %v583, 0.0
      %v592 = vmax.f32 %v584, 0.0
      %v593 = vmax.f32 %v585, 0.0
      %v594 = vmax.f32 %v586, 0.0
      %v595 = vmax.f32 %v587, 0.0
      %v596 = vld [vmem:[%s358 + $0x2] sm:$0x1]
      %v597 = vld [vmem:[%s358 + $0xa] sm:$0x1]
      %v598 = vld [vmem:[%s358 + $0x12] sm:$0x1]
      %v599 = vld [vmem:[%s358 + $0x1a] sm:$0x1]
      %v600 = vld [vmem:[%s358 + $0x22] sm:$0x1]
      %v601 = vld [vmem:[%s358 + $0x2a] sm:$0x1]
      %v602 = vld [vmem:[%s358 + $0x32] sm:$0x1]
      %v603 = vld [vmem:[%s358 + $0x3a] sm:$0x1]
      %v604 = vperm.slane %v596, 0
      %v605 = vperm.slane %v597, 0
      %v606 = vperm.slane %v598, 0
      %v607 = vperm.slane %v599, 0
      %v608 = vperm.slane %v600, 0
      %v609 = vperm.slane %v601, 0
      %v610 = vperm.slane %v602, 0
      %v611 = vperm.slane %v603, 0
      %v612 = vmul.f32 %v588, %v604
      %v613 = vmul.f32 %v589, %v605
      %v614 = vmul.f32 %v590, %v606
      %v615 = vmul.f32 %v591, %v607
      %v616 = vmul.f32 %v592, %v608
      %v617 = vmul.f32 %v593, %v609
      %v618 = vmul.f32 %v594, %v610
      %v619 = vmul.f32 %v595, %v611
      %v620 = vadd.f32 %v556, %v612
      %v621 = vadd.f32 %v557, %v613
      %v622 = vadd.f32 %v558, %v614
      %v623 = vadd.f32 %v559, %v615
      %v624 = vadd.f32 %v560, %v616
      %v625 = vadd.f32 %v561, %v617
      %v626 = vadd.f32 %v562, %v618
      %v627 = vadd.f32 %v563, %v619
      %v628 = vsub.f32 %v436, 3.0
      %v629 = vsub.f32 %v437, 3.0
      %v630 = vsub.f32 %v438, 3.0
      %v631 = vsub.f32 %v439, 3.0
      %v632 = vsub.f32 %v440, 3.0
      %v633 = vsub.f32 %v441, 3.0
      %v634 = vsub.f32 %v442, 3.0
      %v635 = vsub.f32 %v443, 3.0
      %v636 = vand.u32 2147483647, %v628
      %v637 = vand.u32 2147483647, %v629
      %v638 = vand.u32 2147483647, %v630
      %v639 = vand.u32 2147483647, %v631
      %v640 = vand.u32 2147483647, %v632
      %v641 = vand.u32 2147483647, %v633
      %v642 = vand.u32 2147483647, %v634
      %v643 = vand.u32 2147483647, %v635
      %v644 = vsub.f32 1.0, %v636
      %v645 = vsub.f32 1.0, %v637
      %v646 = vsub.f32 1.0, %v638
      %v647 = vsub.f32 1.0, %v639
      %v648 = vsub.f32 1.0, %v640
      %v649 = vsub.f32 1.0, %v641
      %v650 = vsub.f32 1.0, %v642
      %v651 = vsub.f32 1.0, %v643
      %v652 = vmax.f32 %v644, 0.0
      %v653 = vmax.f32 %v645, 0.0
      %v654 = vmax.f32 %v646, 0.0
      %v655 = vmax.f32 %v647, 0.0
      %v656 = vmax.f32 %v648, 0.0
      %v657 = vmax.f32 %v649, 0.0
      %v658 = vmax.f32 %v650, 0.0
      %v659 = vmax.f32 %v651, 0.0
      %v660 = vld [vmem:[%s358 + $0x3] sm:$0x1]
      %v661 = vld [vmem:[%s358 + $0xb] sm:$0x1]
      %v662 = vld [vmem:[%s358 + $0x13] sm:$0x1]
      %v663 = vld [vmem:[%s358 + $0x1b] sm:$0x1]
      %v664 = vld [vmem:[%s358 + $0x23] sm:$0x1]
      %v665 = vld [vmem:[%s358 + $0x2b] sm:$0x1]
      %v666 = vld [vmem:[%s358 + $0x33] sm:$0x1]
      %v667 = vld [vmem:[%s358 + $0x3b] sm:$0x1]
      %v668 = vperm.slane %v660, 0
      %v669 = vperm.slane %v661, 0
      %v670 = vperm.slane %v662, 0
      %v671 = vperm.slane %v663, 0
      %v672 = vperm.slane %v664, 0
      %v673 = vperm.slane %v665, 0
      %v674 = vperm.slane %v666, 0
      %v675 = vperm.slane %v667, 0
      %v676 = vmul.f32 %v652, %v668
      %v677 = vmul.f32 %v653, %v669
      %v678 = vmul.f32 %v654, %v670
      %v679 = vmul.f32 %v655, %v671
      %v680 = vmul.f32 %v656, %v672
      %v681 = vmul.f32 %v657, %v673
      %v682 = vmul.f32 %v658, %v674
      %v683 = vmul.f32 %v659, %v675
      %v684 = vadd.f32 %v620, %v676
      %v685 = vadd.f32 %v621, %v677
      %v686 = vadd.f32 %v622, %v678
      %v687 = vadd.f32 %v623, %v679
      %v688 = vadd.f32 %v624, %v680
      %v689 = vadd.f32 %v625, %v681
      %v690 = vadd.f32 %v626, %v682
      %v691 = vadd.f32 %v627, %v683
      %v692 = vsub.f32 %v436, 4.0
      %v693 = vsub.f32 %v437, 4.0
      %v694 = vsub.f32 %v438, 4.0
      %v695 = vsub.f32 %v439, 4.0
      %v696 = vsub.f32 %v440, 4.0
      %v697 = vsub.f32 %v441, 4.0
      %v698 = vsub.f32 %v442, 4.0
      %v699 = vsub.f32 %v443, 4.0
      %v700 = vand.u32 2147483647, %v692
      %v701 = vand.u32 2147483647, %v693
      %v702 = vand.u32 2147483647, %v694
      %v703 = vand.u32 2147483647, %v695
      %v704 = vand.u32 2147483647, %v696
      %v705 = vand.u32 2147483647, %v697
      %v706 = vand.u32 2147483647, %v698
      %v707 = vand.u32 2147483647, %v699
      %v708 = vsub.f32 1.0, %v700
      %v709 = vsub.f32 1.0, %v701
      %v710 = vsub.f32 1.0, %v702
      %v711 = vsub.f32 1.0, %v703
      %v712 = vsub.f32 1.0, %v704
      %v713 = vsub.f32 1.0, %v705
      %v714 = vsub.f32 1.0, %v706
      %v715 = vsub.f32 1.0, %v707
      %v716 = vmax.f32 %v708, 0.0
      %v717 = vmax.f32 %v709, 0.0
      %v718 = vmax.f32 %v710, 0.0
      %v719 = vmax.f32 %v711, 0.0
      %v720 = vmax.f32 %v712, 0.0
      %v721 = vmax.f32 %v713, 0.0
      %v722 = vmax.f32 %v714, 0.0
      %v723 = vmax.f32 %v715, 0.0
      %v724 = vld [vmem:[%s358 + $0x4] sm:$0x1]
      %v725 = vld [vmem:[%s358 + $0xc] sm:$0x1]
      %v726 = vld [vmem:[%s358 + $0x14] sm:$0x1]
      %v727 = vld [vmem:[%s358 + $0x1c] sm:$0x1]
      %v728 = vld [vmem:[%s358 + $0x24] sm:$0x1]
      %v729 = vld [vmem:[%s358 + $0x2c] sm:$0x1]
      %v730 = vld [vmem:[%s358 + $0x34] sm:$0x1]
      %v731 = vld [vmem:[%s358 + $0x3c] sm:$0x1]
      %v732 = vperm.slane %v724, 0
      %v733 = vperm.slane %v725, 0
      %v734 = vperm.slane %v726, 0
      %v735 = vperm.slane %v727, 0
      %v736 = vperm.slane %v728, 0
      %v737 = vperm.slane %v729, 0
      %v738 = vperm.slane %v730, 0
      %v739 = vperm.slane %v731, 0
      %v740 = vmul.f32 %v716, %v732
      %v741 = vmul.f32 %v717, %v733
      %v742 = vmul.f32 %v718, %v734
      %v743 = vmul.f32 %v719, %v735
      %v744 = vmul.f32 %v720, %v736
      %v745 = vmul.f32 %v721, %v737
      %v746 = vmul.f32 %v722, %v738
      %v747 = vmul.f32 %v723, %v739
      %v748 = vadd.f32 %v684, %v740
      %v749 = vadd.f32 %v685, %v741
      %v750 = vadd.f32 %v686, %v742
      %v751 = vadd.f32 %v687, %v743
      %v752 = vadd.f32 %v688, %v744
      %v753 = vadd.f32 %v689, %v745
      %v754 = vadd.f32 %v690, %v746
      %v755 = vadd.f32 %v691, %v747
      %v756 = vsub.f32 %v436, 5.0
      %v757 = vsub.f32 %v437, 5.0
      %v758 = vsub.f32 %v438, 5.0
      %v759 = vsub.f32 %v439, 5.0
      %v760 = vsub.f32 %v440, 5.0
      %v761 = vsub.f32 %v441, 5.0
      %v762 = vsub.f32 %v442, 5.0
      %v763 = vsub.f32 %v443, 5.0
      %v764 = vand.u32 2147483647, %v756
      %v765 = vand.u32 2147483647, %v757
      %v766 = vand.u32 2147483647, %v758
      %v767 = vand.u32 2147483647, %v759
      %v768 = vand.u32 2147483647, %v760
      %v769 = vand.u32 2147483647, %v761
      %v770 = vand.u32 2147483647, %v762
      %v771 = vand.u32 2147483647, %v763
      %v772 = vsub.f32 1.0, %v764
      %v773 = vsub.f32 1.0, %v765
      %v774 = vsub.f32 1.0, %v766
      %v775 = vsub.f32 1.0, %v767
      %v776 = vsub.f32 1.0, %v768
      %v777 = vsub.f32 1.0, %v769
      %v778 = vsub.f32 1.0, %v770
      %v779 = vsub.f32 1.0, %v771
      %v780 = vmax.f32 %v772, 0.0
      %v781 = vmax.f32 %v773, 0.0
      %v782 = vmax.f32 %v774, 0.0
      %v783 = vmax.f32 %v775, 0.0
      %v784 = vmax.f32 %v776, 0.0
      %v785 = vmax.f32 %v777, 0.0
      %v786 = vmax.f32 %v778, 0.0
      %v787 = vmax.f32 %v779, 0.0
      %v788 = vld [vmem:[%s358 + $0x5] sm:$0x1]
      %v789 = vld [vmem:[%s358 + $0xd] sm:$0x1]
      %v790 = vld [vmem:[%s358 + $0x15] sm:$0x1]
      %v791 = vld [vmem:[%s358 + $0x1d] sm:$0x1]
      %v792 = vld [vmem:[%s358 + $0x25] sm:$0x1]
      %v793 = vld [vmem:[%s358 + $0x2d] sm:$0x1]
      %v794 = vld [vmem:[%s358 + $0x35] sm:$0x1]
      %v795 = vld [vmem:[%s358 + $0x3d] sm:$0x1]
      %v796 = vperm.slane %v788, 0
      %v797 = vperm.slane %v789, 0
      %v798 = vperm.slane %v790, 0
      %v799 = vperm.slane %v791, 0
      %v800 = vperm.slane %v792, 0
      %v801 = vperm.slane %v793, 0
      %v802 = vperm.slane %v794, 0
      %v803 = vperm.slane %v795, 0
      %v804 = vmul.f32 %v780, %v796
      %v805 = vmul.f32 %v781, %v797
      %v806 = vmul.f32 %v782, %v798
      %v807 = vmul.f32 %v783, %v799
      %v808 = vmul.f32 %v784, %v800
      %v809 = vmul.f32 %v785, %v801
      %v810 = vmul.f32 %v786, %v802
      %v811 = vmul.f32 %v787, %v803
      %v812 = vadd.f32 %v748, %v804
      %v813 = vadd.f32 %v749, %v805
      %v814 = vadd.f32 %v750, %v806
      %v815 = vadd.f32 %v751, %v807
      %v816 = vadd.f32 %v752, %v808
      %v817 = vadd.f32 %v753, %v809
      %v818 = vadd.f32 %v754, %v810
      %v819 = vadd.f32 %v755, %v811
      %v820 = vsub.f32 %v436, 6.0
      %v821 = vsub.f32 %v437, 6.0
      %v822 = vsub.f32 %v438, 6.0
      %v823 = vsub.f32 %v439, 6.0
      %v824 = vsub.f32 %v440, 6.0
      %v825 = vsub.f32 %v441, 6.0
      %v826 = vsub.f32 %v442, 6.0
      %v827 = vsub.f32 %v443, 6.0
      %v828 = vand.u32 2147483647, %v820
      %v829 = vand.u32 2147483647, %v821
      %v830 = vand.u32 2147483647, %v822
      %v831 = vand.u32 2147483647, %v823
      %v832 = vand.u32 2147483647, %v824
      %v833 = vand.u32 2147483647, %v825
      %v834 = vand.u32 2147483647, %v826
      %v835 = vand.u32 2147483647, %v827
      %v836 = vsub.f32 1.0, %v828
      %v837 = vsub.f32 1.0, %v829
      %v838 = vsub.f32 1.0, %v830
      %v839 = vsub.f32 1.0, %v831
      %v840 = vsub.f32 1.0, %v832
      %v841 = vsub.f32 1.0, %v833
      %v842 = vsub.f32 1.0, %v834
      %v843 = vsub.f32 1.0, %v835
      %v844 = vmax.f32 %v836, 0.0
      %v845 = vmax.f32 %v837, 0.0
      %v846 = vmax.f32 %v838, 0.0
      %v847 = vmax.f32 %v839, 0.0
      %v848 = vmax.f32 %v840, 0.0
      %v849 = vmax.f32 %v841, 0.0
      %v850 = vmax.f32 %v842, 0.0
      %v851 = vmax.f32 %v843, 0.0
      %v852 = vld [vmem:[%s358 + $0x6] sm:$0x1]
      %v853 = vld [vmem:[%s358 + $0xe] sm:$0x1]
      %v854 = vld [vmem:[%s358 + $0x16] sm:$0x1]
      %v855 = vld [vmem:[%s358 + $0x1e] sm:$0x1]
      %v856 = vld [vmem:[%s358 + $0x26] sm:$0x1]
      %v857 = vld [vmem:[%s358 + $0x2e] sm:$0x1]
      %v858 = vld [vmem:[%s358 + $0x36] sm:$0x1]
      %v859 = vld [vmem:[%s358 + $0x3e] sm:$0x1]
      %v860 = vperm.slane %v852, 0
      %v861 = vperm.slane %v853, 0
      %v862 = vperm.slane %v854, 0
      %v863 = vperm.slane %v855, 0
      %v864 = vperm.slane %v856, 0
      %v865 = vperm.slane %v857, 0
      %v866 = vperm.slane %v858, 0
      %v867 = vperm.slane %v859, 0
      %v868 = vmul.f32 %v844, %v860
      %v869 = vmul.f32 %v845, %v861
      %v870 = vmul.f32 %v846, %v862
      %v871 = vmul.f32 %v847, %v863
      %v872 = vmul.f32 %v848, %v864
      %v873 = vmul.f32 %v849, %v865
      %v874 = vmul.f32 %v850, %v866
      %v875 = vmul.f32 %v851, %v867
      %v876 = vadd.f32 %v812, %v868
      %v877 = vadd.f32 %v813, %v869
      %v878 = vadd.f32 %v814, %v870
      %v879 = vadd.f32 %v815, %v871
      %v880 = vadd.f32 %v816, %v872
      %v881 = vadd.f32 %v817, %v873
      %v882 = vadd.f32 %v818, %v874
      %v883 = vadd.f32 %v819, %v875
      %v884 = vsub.f32 %v436, 7.0
      %v885 = vsub.f32 %v437, 7.0
      %v886 = vsub.f32 %v438, 7.0
      %v887 = vsub.f32 %v439, 7.0
      %v888 = vsub.f32 %v440, 7.0
      %v889 = vsub.f32 %v441, 7.0
      %v890 = vsub.f32 %v442, 7.0
      %v891 = vsub.f32 %v443, 7.0
      %v892 = vand.u32 2147483647, %v884
      %v893 = vand.u32 2147483647, %v885
      %v894 = vand.u32 2147483647, %v886
      %v895 = vand.u32 2147483647, %v887
      %v896 = vand.u32 2147483647, %v888
      %v897 = vand.u32 2147483647, %v889
      %v898 = vand.u32 2147483647, %v890
      %v899 = vand.u32 2147483647, %v891
      %v900 = vsub.f32 1.0, %v892
      %v901 = vsub.f32 1.0, %v893
      %v902 = vsub.f32 1.0, %v894
      %v903 = vsub.f32 1.0, %v895
      %v904 = vsub.f32 1.0, %v896
      %v905 = vsub.f32 1.0, %v897
      %v906 = vsub.f32 1.0, %v898
      %v907 = vsub.f32 1.0, %v899
      %v908 = vmax.f32 %v900, 0.0
      %v909 = vmax.f32 %v901, 0.0
      %v910 = vmax.f32 %v902, 0.0
      %v911 = vmax.f32 %v903, 0.0
      %v912 = vmax.f32 %v904, 0.0
      %v913 = vmax.f32 %v905, 0.0
      %v914 = vmax.f32 %v906, 0.0
      %v915 = vmax.f32 %v907, 0.0
      %v916 = vld [vmem:[%s358 + $0x7] sm:$0x1]
      %v917 = vld [vmem:[%s358 + $0xf] sm:$0x1]
      %v918 = vld [vmem:[%s358 + $0x17] sm:$0x1]
      %v919 = vld [vmem:[%s358 + $0x1f] sm:$0x1]
      %v920 = vld [vmem:[%s358 + $0x27] sm:$0x1]
      %v921 = vld [vmem:[%s358 + $0x2f] sm:$0x1]
      %v922 = vld [vmem:[%s358 + $0x37] sm:$0x1]
      %v923 = vld [vmem:[%s358 + $0x3f] sm:$0x1]
      %v924 = vperm.slane %v916, 0
      %v925 = vperm.slane %v917, 0
      %v926 = vperm.slane %v918, 0
      %v927 = vperm.slane %v919, 0
      %v928 = vperm.slane %v920, 0
      %v929 = vperm.slane %v921, 0
      %v930 = vperm.slane %v922, 0
      %v931 = vperm.slane %v923, 0
      %v932 = vmul.f32 %v908, %v924
      %v933 = vmul.f32 %v909, %v925
      %v934 = vmul.f32 %v910, %v926
      %v935 = vmul.f32 %v911, %v927
      %v936 = vmul.f32 %v912, %v928
      %v937 = vmul.f32 %v913, %v929
      %v938 = vmul.f32 %v914, %v930
      %v939 = vmul.f32 %v915, %v931
      %v940 = vadd.f32 %v876, %v932
      %v941 = vadd.f32 %v877, %v933
      %v942 = vadd.f32 %v878, %v934
      %v943 = vadd.f32 %v879, %v935
      %v944 = vadd.f32 %v880, %v936
      %v945 = vadd.f32 %v881, %v937
      %v946 = vadd.f32 %v882, %v938
      %v947 = vadd.f32 %v883, %v939
      %vm948 = vcmask 130048
      %v949 = vsel %vm948, %v940, 0.0
      %v950 = vsel %vm948, %v941, 0.0
      %v951 = vadd.f32 %v949, %v950
      %v952 = vsel %vm948, %v942, 0.0
      %v953 = vadd.f32 %v951, %v952
      %v954 = vsel %vm948, %v943, 0.0
      %v955 = vadd.f32 %v953, %v954
      %v956 = vsel %vm948, %v944, 0.0
      %v957 = vadd.f32 %v955, %v956
      %v958 = vsel %vm948, %v945, 0.0
      %v959 = vadd.f32 %v957, %v958
      %v960 = vsel %vm948, %v946, 0.0
      %v961 = vadd.f32 %v959, %v960
      %v962 = vsel %vm948, %v947, 0.0
      %v963 = vadd.f32 %v961, %v962
      %v964 = vsel %vm948, %v963, 0.0
      %v965 = vrot.slane %v964, 4
      %v966 = vadd.f32 %v964, %v965
      %v967 = vrot.slane %v966, 2
      %v968 = vadd.f32 %v966, %v967
      %v969 = vrot.slane %v968, 1
      %v970 = vadd.f32 %v968, %v969
      %vm971 = vcmask 122880
      %972 = vst.msk [vmem:[%s407] sm:$0x1] %vm971, %v970
      %v973 = vsel %vm948, %v417, 0.0
      %v974 = vsel %vm948, %v418, 0.0
      %v975 = vadd.f32 %v973, %v974
      %v976 = vsel %vm948, %v419, 0.0
      %v977 = vadd.f32 %v975, %v976
      %v978 = vsel %vm948, %v420, 0.0
      %v979 = vadd.f32 %v977, %v978
      %v980 = vsel %vm948, %v421, 0.0
      %v981 = vadd.f32 %v979, %v980
      %v982 = vsel %vm948, %v422, 0.0
      %v983 = vadd.f32 %v981, %v982
      %v984 = vsel %vm948, %v423, 0.0
      %v985 = vadd.f32 %v983, %v984
      %v986 = vsel %vm948, %v424, 0.0
      %v987 = vadd.f32 %v985, %v986
      %v988 = vsel %vm948, %v987, 0.0
      %v989 = vrot.slane %v988, 4
      %v990 = vadd.f32 %v988, %v989
      %v991 = vrot.slane %v990, 2
      %v992 = vadd.f32 %v990, %v991
      %v993 = vrot.slane %v992, 1
      %v994 = vadd.f32 %v992, %v993
      %995 = vst.msk [vmem:[%s416] sm:$0x1] %vm971, %v994
      %v996 = vpack.c.bf16 %v940, %v940
      %v997 = vpack.c.bf16 %v941, %v941
      %v998 = vpack.c.bf16 %v942, %v942
      %v999 = vpack.c.bf16 %v943, %v943
      %v1000 = vpack.c.bf16 %v944, %v944
      %v1001 = vpack.c.bf16 %v945, %v945
      %v1002 = vpack.c.bf16 %v946, %v946
      %v1003 = vpack.c.bf16 %v947, %v947
      %vm1004 = vcmask 125952
      %1005 = vst.msk [vmem:[%s384] sm:$0xf] %vm1004, %v996
      %1006 = vst.msk [vmem:[%s384 + $0x4] sm:$0xf] %vm1004, %v997
      %1007 = vst.msk [vmem:[%s384 + $0x8] sm:$0xf] %vm1004, %v998
      %1008 = vst.msk [vmem:[%s384 + $0xc] sm:$0xf] %vm1004, %v999
      %1009 = vst.msk [vmem:[%s384 + $0x10] sm:$0xf] %vm1004, %v1000
      %1010 = vst.msk [vmem:[%s384 + $0x14] sm:$0xf] %vm1004, %v1001
      %1011 = vst.msk [vmem:[%s384 + $0x18] sm:$0xf] %vm1004, %v1002
      %1012 = vst.msk [vmem:[%s384 + $0x1c] sm:$0xf] %vm1004, %v1003
      %v1013 = vpack.c.bf16 %v417, %v417
      %v1014 = vpack.c.bf16 %v418, %v418
      %v1015 = vpack.c.bf16 %v419, %v419
      %v1016 = vpack.c.bf16 %v420, %v420
      %v1017 = vpack.c.bf16 %v421, %v421
      %v1018 = vpack.c.bf16 %v422, %v422
      %v1019 = vpack.c.bf16 %v423, %v423
      %v1020 = vpack.c.bf16 %v424, %v424
      %1021 = vst.msk [vmem:[%s397] sm:$0xf] %vm1004, %v1013
      %1022 = vst.msk [vmem:[%s397 + $0x4] sm:$0xf] %vm1004, %v1014
      %1023 = vst.msk [vmem:[%s397 + $0x8] sm:$0xf] %vm1004, %v1015
      %1024 = vst.msk [vmem:[%s397 + $0xc] sm:$0xf] %vm1004, %v1016
      %1025 = vst.msk [vmem:[%s397 + $0x10] sm:$0xf] %vm1004, %v1017
      %1026 = vst.msk [vmem:[%s397 + $0x14] sm:$0xf] %vm1004, %v1018
      %1027 = vst.msk [vmem:[%s397 + $0x18] sm:$0xf] %vm1004, %v1019
      %1028 = vst.msk [vmem:[%s397 + $0x1c] sm:$0xf] %vm1004, %v1020
      %s1029 = smul.u32 8, %s23
      %p1030 = scmp.lt.s32.totalorder %s22, 1
      %s1031 = scalar_select %p1030, %s22, 1
      %p1032 = scmp.lt.s32.totalorder %s1029, 7
      %s1033 = scalar_select %p1032, %s1029, 7
      %p1034 = scmp.lt.s32.totalorder %s24, 0
      %s1035 = scalar_select %p1034, %s24, 0
      %s1036 = sadd.s32 %s1035, %s1033
      %s1037 = smul.addr %s1031, 8
      %s1038 = sadd.s32 %s1036, %s1037
      %s1039 = smul.addr %s1038, 4
      %s1040 = scalar_lea.vmem %s2, %s1039
      %s1041 = smul.u32 8, %s23
      %p1042 = scmp.lt.s32.totalorder %s22, 1
      %s1043 = scalar_select %p1042, %s22, 1
      %p1044 = scmp.lt.s32.totalorder %s1041, 7
      %s1045 = scalar_select %p1044, %s1041, 7
      %p1046 = scmp.lt.s32.totalorder %s24, 0
      %s1047 = scalar_select %p1046, %s24, 0
      %s1048 = sadd.s32 %s1047, %s1045
      %s1049 = smul.addr %s1043, 8
      %s1050 = sadd.s32 %s1048, %s1049
      %s1051 = smul.addr %s1050, 4
      %s1052 = scalar_lea.vmem %s3, %s1051
      %p1053 = scmp.lt.s32.totalorder %s22, 1
      %s1054 = scalar_select %p1053, %s22, 1
      %p1055 = scmp.lt.s32.totalorder %s23, 0
      %s1056 = scalar_select %p1055, %s23, 0
      %p1057 = scmp.lt.s32.totalorder %s24, 0
      %s1058 = scalar_select %p1057, %s24, 0
      %s1059 = sadd.s32 %s1058, %s1056
      %s1060 = sadd.s32 %s1059, %s1054
      %s1061 = scalar_lea.vmem %s4, %s1060
      %p1062 = scmp.lt.s32.totalorder %s22, 1
      %s1063 = scalar_select %p1062, %s22, 1
      %p1064 = scmp.lt.s32.totalorder %s23, 0
      %s1065 = scalar_select %p1064, %s23, 0
      %p1066 = scmp.lt.s32.totalorder %s24, 0
      %s1067 = scalar_select %p1066, %s24, 0
      %s1068 = sadd.s32 %s1067, %s1065
      %s1069 = sadd.s32 %s1068, %s1063
      %s1070 = scalar_lea.vmem %s5, %s1069
      // Predicated region
      $region29: #{_lambda_.3} parent=27 // pred_check
        %p1071 = pneg %p118
      $region30: #{_lambda_.3} parent=27 // pred_check_branch
        %1073 = sbr.rel (%p1071) target = $region32
      $region31: #{_lambda_.3} parent=27 // pred_region
        %s1074 = smul.u32 8, %s23
      $region32: #{_lambda_.3} parent=27 // pred_fallthru
        _
      // Predicated region
      $region33: #{_lambda_.3} parent=27 // pred_check
        %p1075 = pneg %p148
      $region34: #{_lambda_.3} parent=27 // pred_check_branch
        %1077 = sbr.rel (%p1075) target = $region36
      $region35: #{_lambda_.3} parent=27 // pred_region
        %s1078 = smul.u32 8, %s23
      $region36: #{_lambda_.3} parent=27 // pred_fallthru
        _
      // Predicated region
      $region37: #{_lambda_.3} parent=27 // pred_check
        %p1079 = pneg %p178
      $region38: #{_lambda_.3} parent=27 // pred_check_branch
        %1081 = sbr.rel (%p1079) target = $region40
      $region39: #{_lambda_.3} parent=27 // pred_region
        _
      $region40: #{_lambda_.3} parent=27 // pred_fallthru
        _
      // Predicated region
      $region41: #{_lambda_.3} parent=27 // pred_check
        %p1082 = pneg %p208
      $region42: #{_lambda_.3} parent=27 // pred_check_branch
        %1084 = sbr.rel (%p1082) target = $region44
      $region43: #{_lambda_.3} parent=27 // pred_region
        _
      $region44: #{_lambda_.3} parent=27 // pred_fallthru
        _
    $region28: #{_lambda_.3} parent=5 // pred_fallthru
      _
    %p1085 = scmp.le.s32.totalorder 2, %s12
    // Predicated region
    $region45: #{_lambda_.3} parent=5 // pred_check
      %p1086 = pneg %p1085
    $region46: #{_lambda_.3} parent=5 // pred_check_branch
      %1088 = sbr.rel (%p1086) target = $region48
    $region47: #{_lambda_.3} parent=5 // pred_region
      %s1089 = ssub.s32 %s12, 2
      // Predicated region
      $region49: #{_lambda_.3} parent=47 // pred_check
        %p1090 = pneg %p124
      $region50: #{_lambda_.3} parent=47 // pred_check_branch
        %1092 = sbr.rel (%p1090) target = $region52
      $region51: #{_lambda_.3} parent=47 // pred_region
        %s1093 = smul.u32 8, %s26
        %p1094 = scmp.lt.s32.totalorder %s25, 1
        %s1095 = scalar_select %p1094, %s25, 1
        %p1096 = scmp.lt.s32.totalorder %s1093, 7
        %s1097 = scalar_select %p1096, %s1093, 7
        %p1098 = scmp.lt.s32.totalorder %s27, 0
        %s1099 = scalar_select %p1098, %s27, 0
        %s1100 = sadd.s32 %s1099, %s1097
        %s1101 = smul.addr %s1095, 8
        %s1102 = sadd.s32 %s1100, %s1101
        %s1103 = smul.addr %s1102, 4
        %s1104 = scalar_lea.vmem %s2, %s1103
      $region52: #{_lambda_.3} parent=47 // pred_fallthru
        _
      // Predicated region
      $region53: #{_lambda_.3} parent=47 // pred_check
        %p1105 = pneg %p154
      $region54: #{_lambda_.3} parent=47 // pred_check_branch
        %1107 = sbr.rel (%p1105) target = $region56
      $region55: #{_lambda_.3} parent=47 // pred_region
        %s1108 = smul.u32 8, %s26
        %p1109 = scmp.lt.s32.totalorder %s25, 1
        %s1110 = scalar_select %p1109, %s25, 1
        %p1111 = scmp.lt.s32.totalorder %s1108, 7
        %s1112 = scalar_select %p1111, %s1108, 7
        %p1113 = scmp.lt.s32.totalorder %s27, 0
        %s1114 = scalar_select %p1113, %s27, 0
        %s1115 = sadd.s32 %s1114, %s1112
        %s1116 = smul.addr %s1110, 8
        %s1117 = sadd.s32 %s1115, %s1116
        %s1118 = smul.addr %s1117, 4
        %s1119 = scalar_lea.vmem %s3, %s1118
      $region56: #{_lambda_.3} parent=47 // pred_fallthru
        _
      // Predicated region
      $region57: #{_lambda_.3} parent=47 // pred_check
        %p1120 = pneg %p184
      $region58: #{_lambda_.3} parent=47 // pred_check_branch
        %1122 = sbr.rel (%p1120) target = $region60
      $region59: #{_lambda_.3} parent=47 // pred_region
        %p1123 = scmp.lt.s32.totalorder %s25, 1
        %s1124 = scalar_select %p1123, %s25, 1
        %p1125 = scmp.lt.s32.totalorder %s26, 0
        %s1126 = scalar_select %p1125, %s26, 0
        %p1127 = scmp.lt.s32.totalorder %s27, 0
        %s1128 = scalar_select %p1127, %s27, 0
        %s1129 = sadd.s32 %s1128, %s1126
        %s1130 = sadd.s32 %s1129, %s1124
        %s1131 = scalar_lea.vmem %s4, %s1130
      $region60: #{_lambda_.3} parent=47 // pred_fallthru
        _
      // Predicated region
      $region61: #{_lambda_.3} parent=47 // pred_check
        %p1132 = pneg %p214
      $region62: #{_lambda_.3} parent=47 // pred_check_branch
        %1134 = sbr.rel (%p1132) target = $region64
      $region63: #{_lambda_.3} parent=47 // pred_region
        %p1135 = scmp.lt.s32.totalorder %s25, 1
        %s1136 = scalar_select %p1135, %s25, 1
        %p1137 = scmp.lt.s32.totalorder %s26, 0
        %s1138 = scalar_select %p1137, %s26, 0
        %p1139 = scmp.lt.s32.totalorder %s27, 0
        %s1140 = scalar_select %p1139, %s27, 0
        %s1141 = sadd.s32 %s1140, %s1138
        %s1142 = sadd.s32 %s1141, %s1136
        %s1143 = scalar_lea.vmem %s5, %s1142
      $region64: #{_lambda_.3} parent=47 // pred_fallthru
        _
    $region48: #{_lambda_.3} parent=5 // pred_fallthru
      _
  $region6: #{_lambda_.3} parent=0 // loop_footer
    %s16 = sadd.s32 1, %s12
  $region7: #{_lambda_.3} parent=0 // loop_footer_branch
    %11 = sbr.rel target = $region3
  $region8: #{_lambda_.3} parent=0 // loop_exit
    _

// kernel: _lambda_.5
$region0: #{_lambda_.5}
  #allocation0 [shape = 'u32[]', space=smem, size = 0x4, offset = 0x4, fixed_abs, tag = 'smem constant byte address 0x4 - core index']
  #allocation1 [shape = 'u32[72,128]{1,0:T(1,128)}', space=vmem, size = 0x9000, scoped, tag = 'internal scratch']
  %s0 = inlined_call_operand.vmem [shape: bf16[2,64,16], index: 0, kind: input, shape index: {}]
  %s1 = inlined_call_operand.vmem [shape: bf16[2,64,16], index: 1, kind: input, shape index: {}]
  %s2 = inlined_call_operand.vmem [shape: bf16[2,64,16], index: 2, kind: input, shape index: {}]
  %s3 = inlined_call_operand.vmem [shape: bf16[2,3,16,16], index: 3, kind: input, shape index: {}]
  %s4 = inlined_call_operand.vmem [shape: f32[2,1,16], index: 4, kind: input, shape index: {}]
  %s5 = inlined_call_operand.hbm [shape: f32[2,64,16], index: 5, kind: output, shape index: {}]
  %s6 = sld [smem:[#allocation0]]
  $region53: #{_lambda_.5} parent=0
    _
  %s8 = ssub.s32 1, %s6
  %s9 = scalar_select 0, %s8, %s6
  $region1: #{_lambda_.5} parent=0
    #allocation2 [shape = 'u8[65536]{0}', space=vmem, size = 0x10000, scoped, tag = 'output window, operand 0']
    #allocation3 [shape = 's32[2]{0}', space=sflag, size = 0x8, scoped, tag = 'scoped memory for _lambda_.5']
    %10 = vsyncpa [#allocation3], 0
    %s11 = scalar_lea.sflag [#allocation3], 1
    %12 = vsyncpa %s11, 0
    loop: start=0, step=1, limit=4
    $region2: #{_lambda_.5} parent=1 // loop_pre_header
      _
    $region3: #{_lambda_.5} parent=1 // loop_header
      %s14 = sphi 0, %s18
      %p15 = scmp.ge.s32.totalorder %s14, 4
      %s21 = sphi 0, %s33
      %s22 = sphi 0, %s29
      %s23 = sphi 0, %s21
      %s24 = sphi 0, %s22
      %s25 = sphi 0, %s23
      %s26 = sphi 0, %s24
      %s38 = sphi 0, %s40
      %s41 = sphi 0, %s38
      %s42 = sphi 0, %s41
      %s58 = sphi 0, %s42
      %s66 = sphi 0, %s68
      %s69 = sphi 0, %s66
      %s70 = sphi 0, %s69
      %s86 = sphi 0, %s70
      %s94 = sphi 0, %s96
      %s97 = sphi 0, %s94
      %s98 = sphi 0, %s97
      %s114 = sphi 0, %s98
      %s120 = sphi 0, %s122
      %s123 = sphi 0, %s120
      %s124 = sphi 0, %s123
      %s140 = sphi 0, %s124
      %s146 = sphi 0, %s148
      %s149 = sphi 0, %s146
      %s150 = sphi 0, %s149
      %s166 = sphi 0, %s150
      %s174 = sphi 0, %s176
      %s177 = sphi 0, %s174
      %s178 = sphi 0, %s177
      %s194 = sphi 0, %s178
    $region4: #{_lambda_.5} parent=1 // loop_header_branch
      %17 = sbr.rel (%p15) target = $region8
    $region5: #{_lambda_.5} parent=1 // loop_body
      %s19 = ssub.s32 %s14, 1
      %s20 = ssub.s32 %s14, 2
      %s27 = sadd.s32 1, %s22
      %p28 = scmp.ge.s32.totalorder %s27, 1
      %s29 = scalar_select %p28, 0, %s27
      %s30 = sadd.s32 1, %s21
      %s31 = scalar_select %p28, %s30, %s21
      %p32 = scmp.ge.s32.totalorder %s31, 2
      %s33 = scalar_select %p32, 0, %s31
      %s34 = ssub.s32 %s21, %s33
      %s35 = ssub.s32 %s22, %s29
      %s36 = sor.u32 %s34, %s35
      %p37 = scmp.eq.s32.totalorder %s36, 0
      %s39 = sadd.s32 %s38, 1
      %s40 = scalar_select %p37, %s38, %s39
      %p43 = pneg %p37
      %p44 = scmp.eq.s32.totalorder %s14, 1
      %p45 = por %p43, %p44
      %p46 = scmp.ne.s32.totalorder %s38, %s41
      %p47 = scmp.eq.s32.totalorder %s14, 0
      %p48 = por %p46, %p47
      %p49 = scmp.ne.s32.totalorder %s38, %s41
      %p50 = scmp.eq.s32.totalorder %s19, 1
      %p51 = por %p49, %p50
      %p52 = scmp.ne.s32.totalorder %s41, %s42
      %p53 = scmp.eq.s32.totalorder %s19, 0
      %p54 = por %p52, %p53
      %p55 = scmp.ne.s32.totalorder %s41, %s42
      %p56 = scmp.eq.s32.totalorder %s20, 1
      %p57 = por %p55, %p56
      %p59 = scmp.ne.s32.totalorder %s42, %s58
      %p60 = scmp.eq.s32.totalorder %s20, 0
      %p61 = por %p59, %p60
      %s62 = ssub.s32 %s21, %s33
      %s63 = ssub.s32 %s22, %s29
      %s64 = sor.u32 %s62, %s63
      %p65 = scmp.eq.s32.totalorder %s64, 0
      %s67 = sadd.s32 %s66, 1
      %s68 = scalar_select %p65, %s66, %s67
      %p71 = pneg %p65
      %p72 = scmp.eq.s32.totalorder %s14, 1
      %p73 = por %p71, %p72
      %p74 = scmp.ne.s32.totalorder %s66, %s69
      %p75 = scmp.eq.s32.totalorder %s14, 0
      %p76 = por %p74, %p75
      %p77 = scmp.ne.s32.totalorder %s66, %s69
      %p78 = scmp.eq.s32.totalorder %s19, 1
      %p79 = por %p77, %p78
      %p80 = scmp.ne.s32.totalorder %s69, %s70
      %p81 = scmp.eq.s32.totalorder %s19, 0
      %p82 = por %p80, %p81
      %p83 = scmp.ne.s32.totalorder %s69, %s70
      %p84 = scmp.eq.s32.totalorder %s20, 1
      %p85 = por %p83, %p84
      %p87 = scmp.ne.s32.totalorder %s70, %s86
      %p88 = scmp.eq.s32.totalorder %s20, 0
      %p89 = por %p87, %p88
      %s90 = ssub.s32 %s21, %s33
      %s91 = ssub.s32 %s22, %s29
      %s92 = sor.u32 %s90, %s91
      %p93 = scmp.eq.s32.totalorder %s92, 0
      %s95 = sadd.s32 %s94, 1
      %s96 = scalar_select %p93, %s94, %s95
      %p99 = pneg %p93
      %p100 = scmp.eq.s32.totalorder %s14, 1
      %p101 = por %p99, %p100
      %p102 = scmp.ne.s32.totalorder %s94, %s97
      %p103 = scmp.eq.s32.totalorder %s14, 0
      %p104 = por %p102, %p103
      %p105 = scmp.ne.s32.totalorder %s94, %s97
      %p106 = scmp.eq.s32.totalorder %s19, 1
      %p107 = por %p105, %p106
      %p108 = scmp.ne.s32.totalorder %s97, %s98
      %p109 = scmp.eq.s32.totalorder %s19, 0
      %p110 = por %p108, %p109
      %p111 = scmp.ne.s32.totalorder %s97, %s98
      %p112 = scmp.eq.s32.totalorder %s20, 1
      %p113 = por %p111, %p112
      %p115 = scmp.ne.s32.totalorder %s98, %s114
      %p116 = scmp.eq.s32.totalorder %s20, 0
      %p117 = por %p115, %p116
      %s118 = ssub.s32 %s21, %s33
      %p119 = scmp.eq.s32.totalorder %s118, 0
      %s121 = sadd.s32 %s120, 1
      %s122 = scalar_select %p119, %s120, %s121
      %p125 = pneg %p119
      %p126 = scmp.eq.s32.totalorder %s14, 1
      %p127 = por %p125, %p126
      %p128 = scmp.ne.s32.totalorder %s120, %s123
      %p129 = scmp.eq.s32.totalorder %s14, 0
      %p130 = por %p128, %p129
      %p131 = scmp.ne.s32.totalorder %s120, %s123
      %p132 = scmp.eq.s32.totalorder %s19, 1
      %p133 = por %p131, %p132
      %p134 = scmp.ne.s32.totalorder %s123, %s124
      %p135 = scmp.eq.s32.totalorder %s19, 0
      %p136 = por %p134, %p135
      %p137 = scmp.ne.s32.totalorder %s123, %s124
      %p138 = scmp.eq.s32.totalorder %s20, 1
      %p139 = por %p137, %p138
      %p141 = scmp.ne.s32.totalorder %s124, %s140
      %p142 = scmp.eq.s32.totalorder %s20, 0
      %p143 = por %p141, %p142
      %s144 = ssub.s32 %s21, %s33
      %p145 = scmp.eq.s32.totalorder %s144, 0
      %s147 = sadd.s32 %s146, 1
      %s148 = scalar_select %p145, %s146, %s147
      %p151 = pneg %p145
      %p152 = scmp.eq.s32.totalorder %s14, 1
      %p153 = por %p151, %p152
      %p154 = scmp.ne.s32.totalorder %s146, %s149
      %p155 = scmp.eq.s32.totalorder %s14, 0
      %p156 = por %p154, %p155
      %p157 = scmp.ne.s32.totalorder %s146, %s149
      %p158 = scmp.eq.s32.totalorder %s19, 1
      %p159 = por %p157, %p158
      %p160 = scmp.ne.s32.totalorder %s149, %s150
      %p161 = scmp.eq.s32.totalorder %s19, 0
      %p162 = por %p160, %p161
      %p163 = scmp.ne.s32.totalorder %s149, %s150
      %p164 = scmp.eq.s32.totalorder %s20, 1
      %p165 = por %p163, %p164
      %p167 = scmp.ne.s32.totalorder %s150, %s166
      %p168 = scmp.eq.s32.totalorder %s20, 0
      %p169 = por %p167, %p168
      %s170 = ssub.s32 %s21, %s33
      %s171 = ssub.s32 %s22, %s29
      %s172 = sor.u32 %s170, %s171
      %p173 = scmp.eq.s32.totalorder %s172, 0
      %s175 = sadd.s32 %s174, 1
      %s176 = scalar_select %p173, %s174, %s175
      %p179 = pneg %p173
      %p180 = scmp.eq.s32.totalorder %s14, 1
      %p181 = por %p179, %p180
      %p182 = scmp.ne.s32.totalorder %s174, %s177
      %p183 = scmp.eq.s32.totalorder %s14, 0
      %p184 = por %p182, %p183
      %p185 = scmp.ne.s32.totalorder %s174, %s177
      %p186 = scmp.eq.s32.totalorder %s19, 1
      %p187 = por %p185, %p186
      %p188 = scmp.ne.s32.totalorder %s177, %s178
      %p189 = scmp.eq.s32.totalorder %s19, 0
      %p190 = por %p188, %p189
      %p191 = scmp.ne.s32.totalorder %s177, %s178
      %p192 = scmp.eq.s32.totalorder %s20, 1
      %p193 = por %p191, %p192
      %p195 = scmp.ne.s32.totalorder %s178, %s194
      %p196 = scmp.eq.s32.totalorder %s20, 0
      %p197 = por %p195, %p196
      %p198 = scmp.le.s32.totalorder 1, %s14
      %p199 = scmp.lt.s32.totalorder %s14, 3
      %p200 = pnand %p198, %p199
      %p201 = pneg %p200
      // Predicated region
      $region9: #{_lambda_.5} parent=5 // pred_check
        _
      $region10: #{_lambda_.5} parent=5 // pred_check_branch
        %203 = sbr.rel (%p200) target = $region12
      $region11: #{_lambda_.5} parent=5 // pred_region
        %s204 = ssub.s32 %s14, 1
      $region12: #{_lambda_.5} parent=5 // pred_fallthru
        _
      %p205 = scmp.lt.s32.totalorder %s14, 2
      // Predicated region
      $region13: #{_lambda_.5} parent=5 // pred_check
        %p206 = pneg %p205
      $region14: #{_lambda_.5} parent=5 // pred_check_branch
        %208 = sbr.rel (%p206) target = $region16
      $region15: #{_lambda_.5} parent=5 // pred_region
        // Predicated region
        $region17: #{_lambda_.5} parent=15 // pred_check
          %p209 = pneg %p48
        $region18: #{_lambda_.5} parent=15 // pred_check_branch
          %211 = sbr.rel (%p209) target = $region20
        $region19: #{_lambda_.5} parent=15 // pred_region
          %s212 = smul.u32 8, %s22
          %p213 = scmp.lt.s32.totalorder %s21, 1
          %s214 = scalar_select %p213, %s21, 1
          %p215 = scmp.lt.s32.totalorder %s212, 7
          %s216 = scalar_select %p215, %s212, 7
          %s217 = smul.addr %s214, 8
          %s218 = sadd.s32 %s216, %s217
          %s219 = smul.addr %s218, 4
          %s220 = scalar_lea.vmem %s0, %s219
          %s221 = smul.u32 8, %s22
        $region20: #{_lambda_.5} parent=15 // pred_fallthru
          _
        // Predicated region
        $region21: #{_lambda_.5} parent=15 // pred_check
          %p222 = pneg %p76
        $region22: #{_lambda_.5} parent=15 // pred_check_branch
          %224 = sbr.rel (%p222) target = $region24
        $region23: #{_lambda_.5} parent=15 // pred_region
          %s225 = smul.u32 8, %s22
          %p226 = scmp.lt.s32.totalorder %s21, 1
          %s227 = scalar_select %p226, %s21, 1
          %p228 = scmp.lt.s32.totalorder %s225, 7
          %s229 = scalar_select %p228, %s225, 7
          %s230 = smul.addr %s227, 8
          %s231 = sadd.s32 %s229, %s230
          %s232 = smul.addr %s231, 4
          %s233 = scalar_lea.vmem %s1, %s232
          %s234 = smul.u32 8, %s22
        $region24: #{_lambda_.5} parent=15 // pred_fallthru
          _
        // Predicated region
        $region25: #{_lambda_.5} parent=15 // pred_check
          %p235 = pneg %p104
        $region26: #{_lambda_.5} parent=15 // pred_check_branch
          %237 = sbr.rel (%p235) target = $region28
        $region27: #{_lambda_.5} parent=15 // pred_region
          %s238 = smul.u32 8, %s22
          %p239 = scmp.lt.s32.totalorder %s21, 1
          %s240 = scalar_select %p239, %s21, 1
          %p241 = scmp.lt.s32.totalorder %s238, 7
          %s242 = scalar_select %p241, %s238, 7
          %s243 = smul.addr %s240, 8
          %s244 = sadd.s32 %s242, %s243
          %s245 = smul.addr %s244, 4
          %s246 = scalar_lea.vmem %s2, %s245
          %s247 = smul.u32 8, %s22
        $region28: #{_lambda_.5} parent=15 // pred_fallthru
          _
        // Predicated region
        $region29: #{_lambda_.5} parent=15 // pred_check
          %p248 = pneg %p130
        $region30: #{_lambda_.5} parent=15 // pred_check_branch
          %250 = sbr.rel (%p248) target = $region32
        $region31: #{_lambda_.5} parent=15 // pred_region
          %p251 = scmp.lt.s32.totalorder %s21, 1
          %s252 = scalar_select %p251, %s21, 1
          %s253 = smul.addr %s252, 6
          %s254 = smul.addr %s253, 4
          %s255 = scalar_lea.vmem %s3, %s254
        $region32: #{_lambda_.5} parent=15 // pred_fallthru
          _
        // Predicated region
        $region33: #{_lambda_.5} parent=15 // pred_check
          %p256 = pneg %p156
        $region34: #{_lambda_.5} parent=15 // pred_check_branch
          %258 = sbr.rel (%p256) target = $region36
        $region35: #{_lambda_.5} parent=15 // pred_region
          %p259 = scmp.lt.s32.totalorder %s21, 1
          %s260 = scalar_select %p259, %s21, 1
          %s261 = scalar_lea.vmem %s4, %s260
        $region36: #{_lambda_.5} parent=15 // pred_fallthru
          _
      $region16: #{_lambda_.5} parent=5 // pred_fallthru
        _
      %p262 = scmp.le.s32.totalorder 1, %s14
      %p263 = scmp.lt.s32.totalorder %s14, 3
      %p264 = pnand %p262, %p263
      %p265 = pneg %p264
      // Predicated region
      $region37: #{_lambda_.5} parent=5 // pred_check
        _
      $region38: #{_lambda_.5} parent=5 // pred_check_branch
        %267 = sbr.rel (%p264) target = $region40
      $region39: #{_lambda_.5} parent=5 // pred_region
        %s268 = ssub.s32 %s14, 1
        %s269 = smul.u32 8, %s24
        %p270 = scmp.lt.s32.totalorder %s23, 1
        %s271 = scalar_select %p270, %s23, 1
        %p272 = scmp.lt.s32.totalorder %s269, 7
        %s273 = scalar_select %p272, %s269, 7
        %s274 = smul.addr %s271, 8
        %s275 = sadd.s32 %s273, %s274
        %s276 = smul.addr %s275, 4
        %s277 = scalar_lea.vmem %s0, %s276
        %p278 = pneg %p54
        %p279 = pneg %p51
        %s280 = smul.u32 8, %s24
        %p281 = scmp.lt.s32.totalorder %s23, 1
        %s282 = scalar_select %p281, %s23, 1
        %p283 = scmp.lt.s32.totalorder %s280, 7
        %s284 = scalar_select %p283, %s280, 7
        %s285 = smul.addr %s282, 8
        %s286 = sadd.s32 %s284, %s285
        %s287 = smul.addr %s286, 4
        %s288 = scalar_lea.vmem %s1, %s287
        %p289 = pneg %p82
        %p290 = pneg %p79
        %s291 = smul.u32 8, %s24
        %p292 = scmp.lt.s32.totalorder %s23, 1
        %s293 = scalar_select %p292, %s23, 1
        %p294 = scmp.lt.s32.totalorder %s291, 7
        %s295 = scalar_select %p294, %s291, 7
        %s296 = smul.addr %s293, 8
        %s297 = sadd.s32 %s295, %s296
        %s298 = smul.addr %s297, 4
        %s299 = scalar_lea.vmem %s2, %s298
        %p300 = pneg %p110
        %p301 = pneg %p107
        %p302 = scmp.lt.s32.totalorder %s23, 1
        %s303 = scalar_select %p302, %s23, 1
        %s304 = smul.addr %s303, 6
        %s305 = smul.addr %s304, 4
        %s306 = scalar_lea.vmem %s3, %s305
        %p307 = pneg %p136
        %p308 = pneg %p133
        %p309 = scmp.lt.s32.totalorder %s23, 1
        %s310 = scalar_select %p309, %s23, 1
        %s311 = scalar_lea.vmem %s4, %s310
        %p312 = pneg %p162
        %p313 = pneg %p159
        %p314 = pneg %p190
        %p315 = pneg %p187
        %s316 = sand.u32 %s177, 1
        %s317 = scalar_lea.sflag [#allocation3], %s316
        %s318 = sand.u32 %s177, 1
        %s319 = smul.addr %s318, 64
        %s320 = scalar_lea.vmem [#allocation2], %s319
        %s321 = smul.u32 8, %s24
        %p322 = scmp.lt.s32.totalorder %s23, 1
        %s323 = scalar_select %p322, %s23, 1
        %p324 = scmp.lt.s32.totalorder %s321, 7
        %s325 = scalar_select %p324, %s321, 7
        %s326 = smul.addr %s323, 8
        %s327 = sadd.s32 %s325, %s326
        %s328 = smul.addr %s327, 4
        %s329 = scalar_lea.vmem %s0, %s328
        %s330 = smul.u32 8, %s24
        %s331 = smul.u32 8, %s24
        %p332 = scmp.lt.s32.totalorder %s23, 1
        %s333 = scalar_select %p332, %s23, 1
        %p334 = scmp.lt.s32.totalorder %s331, 7
        %s335 = scalar_select %p334, %s331, 7
        %s336 = smul.addr %s333, 8
        %s337 = sadd.s32 %s335, %s336
        %s338 = smul.addr %s337, 4
        %s339 = scalar_lea.vmem %s1, %s338
        %s340 = smul.u32 8, %s24
        %s341 = smul.u32 8, %s24
        %p342 = scmp.lt.s32.totalorder %s23, 1
        %s343 = scalar_select %p342, %s23, 1
        %p344 = scmp.lt.s32.totalorder %s341, 7
        %s345 = scalar_select %p344, %s341, 7
        %s346 = smul.addr %s343, 8
        %s347 = sadd.s32 %s345, %s346
        %s348 = smul.addr %s347, 4
        %s349 = scalar_lea.vmem %s2, %s348
        %s350 = smul.u32 8, %s24
        %p351 = scmp.lt.s32.totalorder %s23, 1
        %s352 = scalar_select %p351, %s23, 1
        %s353 = smul.addr %s352, 6
        %s354 = smul.addr %s353, 4
        %s355 = scalar_lea.vmem %s3, %s354
        %p356 = scmp.lt.s32.totalorder %s23, 1
        %s357 = scalar_select %p356, %s23, 1
        %s358 = scalar_lea.vmem %s4, %s357
        %s359 = smul.u32 8, %s24
        %v361 = vld [vmem:[%s329] sm:$0xf]
        %v362 = vld [vmem:[%s329 + $0x4] sm:$0xf]
        %v363 = vld [vmem:[%s329 + $0x8] sm:$0xf]
        %v364 = vld [vmem:[%s329 + $0xc] sm:$0xf]
        %v365 = vld [vmem:[%s329 + $0x10] sm:$0xf]
        %v366 = vld [vmem:[%s329 + $0x14] sm:$0xf]
        %v367 = vld [vmem:[%s329 + $0x18] sm:$0xf]
        %v368 = vld [vmem:[%s329 + $0x1c] sm:$0xf]
        %v369 = vld [vmem:[%s355] sm:$0xf]
        %v370 = vld [vmem:[%s355 + $0x4] sm:$0xf]
        %v371 = vld [vmem:[%s339] sm:$0xf]
        %v372 = vld [vmem:[%s339 + $0x4] sm:$0xf]
        %v373 = vld [vmem:[%s339 + $0x8] sm:$0xf]
        %v374 = vld [vmem:[%s339 + $0xc] sm:$0xf]
        %v375 = vld [vmem:[%s339 + $0x10] sm:$0xf]
        %v376 = vld [vmem:[%s339 + $0x14] sm:$0xf]
        %v377 = vld [vmem:[%s339 + $0x18] sm:$0xf]
        %v378 = vld [vmem:[%s339 + $0x1c] sm:$0xf]
        %s379 = scalar_lea.vmem %s355, 8
        %v380 = vld [vmem:[%s379] sm:$0xf]
        %v381 = vld [vmem:[%s379 + $0x4] sm:$0xf]
        %v390 = vunpack.c.l.b16 %v371
        %v391 = vunpack.c.l.b16 %v372
        %v392 = vunpack.c.l.b16 %v373
        %v393 = vunpack.c.l.b16 %v374
        %v394 = vunpack.c.l.b16 %v375
        %v395 = vunpack.c.l.b16 %v376
        %v396 = vunpack.c.l.b16 %v377
        %v397 = vunpack.c.l.b16 %v378
        %v398 = vpack.c.b16 %v391, %v390
        %v399 = vpack.c.b16 %v393, %v392
        %v400 = vpack.c.b16 %v395, %v394
        %v401 = vpack.c.b16 %v397, %v396
        %v404 = vunpack.c.l.b16 %v380
        %v405 = vunpack.c.l.b16 %v381
        %v406 = vpack.c.b16 %v405, %v404
        %vm408 = vcmask 130048
        %v410 = vsel %vm408, %v398, 0
        %v413 = vsel %vm408, %v399, 0
        %v416 = vsel %vm408, %v400, 0
        %v419 = vsel %vm408, %v401, 0
        %421 = vmatpush.bf16.msra.mxu0 0
        %422 = vmatpush.bf16.msra.mxu0 0
        %423 = vmatpush.bf16.msra.mxu0 0
        %424 = vmatpush.bf16.msra.mxu0 0
        %425 = vmatpush.bf16.msra.mxu0 0
        %426 = vmatpush.bf16.msra.mxu0 0
        %427 = vmatpush.bf16.msra.mxu0 0
        %428 = vmatpush.bf16.msra.mxu0 %v406
        %429 = vmatmul.bf16.gmra.mxu0 %v410
        %v430 = vpop.f32.mrf.mxu0
        %v431 = vadd.f32 0.0, %v430
        %v432 = vpop.f32.mrf.mxu0
        %v433 = vadd.f32 0.0, %v432
        %434 = vmatmul.bf16.gmra.mxu0 %v413
        %v435 = vpop.f32.mrf.mxu0
        %v436 = vadd.f32 0.0, %v435
        %v437 = vpop.f32.mrf.mxu0
        %v438 = vadd.f32 0.0, %v437
        %439 = vmatmul.bf16.gmra.mxu0 %v416
        %v440 = vpop.f32.mrf.mxu0
        %v441 = vadd.f32 0.0, %v440
        %v442 = vpop.f32.mrf.mxu0
        %v443 = vadd.f32 0.0, %v442
        %444 = vmatmul.bf16.gmra.mxu0 %v419
        %v445 = vpop.f32.mrf.mxu0
        %v446 = vadd.f32 0.0, %v445
        %v447 = vpop.f32.mrf.mxu0
        %v448 = vadd.f32 0.0, %v447
        %449 = vdwg.mxu0
        %v458 = vunpack.c.l.b16 %v361
        %v459 = vunpack.c.l.b16 %v362
        %v460 = vunpack.c.l.b16 %v363
        %v461 = vunpack.c.l.b16 %v364
        %v462 = vunpack.c.l.b16 %v365
        %v463 = vunpack.c.l.b16 %v366
        %v464 = vunpack.c.l.b16 %v367
        %v465 = vunpack.c.l.b16 %v368
        %v466 = vpack.c.b16 %v459, %v458
        %v467 = vpack.c.b16 %v461, %v460
        %v468 = vpack.c.b16 %v463, %v462
        %v469 = vpack.c.b16 %v465, %v464
        %v472 = vunpack.c.l.b16 %v369
        %v473 = vunpack.c.l.b16 %v370
        %v474 = vpack.c.b16 %v473, %v472
        %v477 = vsel %vm408, %v466, 0
        %v480 = vsel %vm408, %v467, 0
        %v483 = vsel %vm408, %v468, 0
        %v486 = vsel %vm408, %v469, 0
        %488 = vmatpush.bf16.msra.mxu0 0
        %489 = vmatpush.bf16.msra.mxu0 0
        %490 = vmatpush.bf16.msra.mxu0 0
        %491 = vmatpush.bf16.msra.mxu0 0
        %492 = vmatpush.bf16.msra.mxu0 0
        %493 = vmatpush.bf16.msra.mxu0 0
        %494 = vmatpush.bf16.msra.mxu0 0
        %495 = vmatpush.bf16.msra.mxu0 %v474
        %496 = vmatmul.bf16.gmra.mxu0 %v477
        %v497 = vpop.f32.mrf.mxu0
        %v498 = vadd.f32 %v431, %v497
        %v499 = vpop.f32.mrf.mxu0
        %v500 = vadd.f32 %v433, %v499
        %501 = vmatmul.bf16.gmra.mxu0 %v480
        %v502 = vpop.f32.mrf.mxu0
        %v503 = vadd.f32 %v436, %v502
        %v504 = vpop.f32.mrf.mxu0
        %v505 = vadd.f32 %v438, %v504
        %506 = vmatmul.bf16.gmra.mxu0 %v483
        %v507 = vpop.f32.mrf.mxu0
        %v508 = vadd.f32 %v441, %v507
        %v509 = vpop.f32.mrf.mxu0
        %v510 = vadd.f32 %v443, %v509
        %511 = vmatmul.bf16.gmra.mxu0 %v486
        %v512 = vpop.f32.mrf.mxu0
        %v513 = vadd.f32 %v446, %v512
        %v514 = vpop.f32.mrf.mxu0
        %v515 = vadd.f32 %v448, %v514
        %516 = vdwg.mxu0
        %v517 = vld [vmem:[%s349] sm:$0xf]
        %v518 = vld [vmem:[%s349 + $0x4] sm:$0xf]
        %v519 = vld [vmem:[%s349 + $0x8] sm:$0xf]
        %v520 = vld [vmem:[%s349 + $0xc] sm:$0xf]
        %v521 = vld [vmem:[%s349 + $0x10] sm:$0xf]
        %v522 = vld [vmem:[%s349 + $0x14] sm:$0xf]
        %v523 = vld [vmem:[%s349 + $0x18] sm:$0xf]
        %v524 = vld [vmem:[%s349 + $0x1c] sm:$0xf]
        %s525 = scalar_lea.vmem %s355, 16
        %v526 = vld [vmem:[%s525] sm:$0xf]
        %v527 = vld [vmem:[%s525 + $0x4] sm:$0xf]
        %v536 = vunpack.c.l.b16 %v517
        %v537 = vunpack.c.l.b16 %v518
        %v538 = vunpack.c.l.b16 %v519
        %v539 = vunpack.c.l.b16 %v520
        %v540 = vunpack.c.l.b16 %v521
        %v541 = vunpack.c.l.b16 %v522
        %v542 = vunpack.c.l.b16 %v523
        %v543 = vunpack.c.l.b16 %v524
        %v544 = vpack.c.b16 %v537, %v536
        %v545 = vpack.c.b16 %v539, %v538
        %v546 = vpack.c.b16 %v541, %v540
        %v547 = vpack.c.b16 %v543, %v542
        %v550 = vunpack.c.l.b16 %v526
        %v551 = vunpack.c.l.b16 %v527
        %v552 = vpack.c.b16 %v551, %v550
        %v555 = vsel %vm408, %v544, 0
        %v558 = vsel %vm408, %v545, 0
        %v561 = vsel %vm408, %v546, 0
        %v564 = vsel %vm408, %v547, 0
        %566 = vmatpush.bf16.msra.mxu0 0
        %567 = vmatpush.bf16.msra.mxu0 0
        %568 = vmatpush.bf16.msra.mxu0 0
        %569 = vmatpush.bf16.msra.mxu0 0
        %570 = vmatpush.bf16.msra.mxu0 0
        %571 = vmatpush.bf16.msra.mxu0 0
        %572 = vmatpush.bf16.msra.mxu0 0
        %573 = vmatpush.bf16.msra.mxu0 %v552
        %574 = vmatmul.bf16.gmra.mxu0 %v555
        %v575 = vpop.f32.mrf.mxu0
        %v576 = vadd.f32 0.0, %v575
        %v577 = vpop.f32.mrf.mxu0
        %v578 = vadd.f32 0.0, %v577
        %579 = vmatmul.bf16.gmra.mxu0 %v558
        %v580 = vpop.f32.mrf.mxu0
        %v581 = vadd.f32 0.0, %v580
        %v582 = vpop.f32.mrf.mxu0
        %v583 = vadd.f32 0.0, %v582
        %584 = vmatmul.bf16.gmra.mxu0 %v561
        %v585 = vpop.f32.mrf.mxu0
        %v586 = vadd.f32 0.0, %v585
        %v587 = vpop.f32.mrf.mxu0
        %v588 = vadd.f32 0.0, %v587
        %589 = vmatmul.bf16.gmra.mxu0 %v564
        %v590 = vpop.f32.mrf.mxu0
        %v591 = vadd.f32 0.0, %v590
        %v592 = vpop.f32.mrf.mxu0
        %v593 = vadd.f32 0.0, %v592
        %594 = vdwg.mxu0
        %v595 = vadd.f32 %v498, %v576
        %v596 = vadd.f32 %v500, %v578
        %v597 = vadd.f32 %v503, %v581
        %v598 = vadd.f32 %v505, %v583
        %v599 = vadd.f32 %v508, %v586
        %v600 = vadd.f32 %v510, %v588
        %v601 = vadd.f32 %v513, %v591
        %v602 = vadd.f32 %v515, %v593
        %v603 = vld [vmem:[%s358] sm:$0x1]
        %v605 = vperm.slane %v603, 0
        %v607 = vadd.f32 %v595, %v605
        %v608 = vadd.f32 %v596, %v605
        %v609 = vadd.f32 %v597, %v605
        %v610 = vadd.f32 %v598, %v605
        %v611 = vadd.f32 %v599, %v605
        %v612 = vadd.f32 %v600, %v605
        %v613 = vadd.f32 %v601, %v605
        %v614 = vadd.f32 %v602, %v605
        %615 = vst.msk [vmem:[%s320] sm:$0xff] %vm408, %v607
        %616 = vst.msk [vmem:[%s320 + $0x8] sm:$0xff] %vm408, %v608
        %617 = vst.msk [vmem:[%s320 + $0x10] sm:$0xff] %vm408, %v609
        %618 = vst.msk [vmem:[%s320 + $0x18] sm:$0xff] %vm408, %v610
        %619 = vst.msk [vmem:[%s320 + $0x20] sm:$0xff] %vm408, %v611
        %620 = vst.msk [vmem:[%s320 + $0x28] sm:$0xff] %vm408, %v612
        %621 = vst.msk [vmem:[%s320 + $0x30] sm:$0xff] %vm408, %v613
        %622 = vst.msk [vmem:[%s320 + $0x38] sm:$0xff] %vm408, %v614
        %s623 = sand.u32 %s177, 1
        %s624 = scalar_lea.sflag [#allocation3], %s623
        %s625 = sand.u32 %s177, 1
        %s626 = smul.addr %s625, 64
        %s627 = scalar_lea.vmem [#allocation2], %s626
        // Predicated region
        $region41: #{_lambda_.5} parent=39 // pred_check
          %p628 = pneg %p187
        $region42: #{_lambda_.5} parent=39 // pred_check_branch
          %630 = sbr.rel (%p628) target = $region44
        $region43: #{_lambda_.5} parent=39 // pred_region
          %s631 = smul.u32 8, %s24
          %633 = vsyncadd %s624, 0
          %s634 = smul.addr %s23, 8
          %s635 = sadd.s32 %s631, %s634
          %s636 = smul.addr %s635, 8
          %s637 = scalar_lea.hbm %s5, %s636
          %s638 = sshll.u32 %s627, 4
          %s639 = int_to_ptr.vmem [resolvable:$true] %s638
          %s640 = sshll.u32 %s637, 4
          %s641 = int_to_ptr.hbm [resolvable:$true] %s640
          %646 = dma.vmem_to_hbm [thread:$0]  %s639, 1024, %s641, %s624, 128, 128, 8
        $region44: #{_lambda_.5} parent=39 // pred_fallthru
          _
      $region40: #{_lambda_.5} parent=5 // pred_fallthru
        _
      %p647 = scmp.le.s32.totalorder 2, %s14
      // Predicated region
      $region45: #{_lambda_.5} parent=5 // pred_check
        %p648 = pneg %p647
      $region46: #{_lambda_.5} parent=5 // pred_check_branch
        %650 = sbr.rel (%p648) target = $region48
      $region47: #{_lambda_.5} parent=5 // pred_region
        %s651 = ssub.s32 %s14, 2
        // Predicated region
        $region49: #{_lambda_.5} parent=47 // pred_check
          %p652 = pneg %p193
        $region50: #{_lambda_.5} parent=47 // pred_check_branch
          %654 = sbr.rel (%p652) target = $region52
        $region51: #{_lambda_.5} parent=47 // pred_region
          %s655 = sand.u32 %s178, 1
          %s656 = scalar_lea.sflag [#allocation3], %s655
          %s657 = sand.u32 %s178, 1
          %s658 = smul.addr %s657, 64
          %s659 = scalar_lea.vmem [#allocation2], %s658
          %661 = dma.done %s656, 1024
        $region52: #{_lambda_.5} parent=47 // pred_fallthru
          _
      $region48: #{_lambda_.5} parent=5 // pred_fallthru
        _
    $region6: #{_lambda_.5} parent=1 // loop_footer
      %s18 = sadd.s32 1, %s14
    $region7: #{_lambda_.5} parent=1 // loop_footer_branch
      %13 = sbr.rel target = $region3
    $region8: #{_lambda_.5} parent=1 // loop_exit
      _
    %662 = vsyncpa [#allocation3], 1
    %s663 = scalar_lea.sflag [#allocation3], 1
    %664 = vsyncpa %s663, 1

</llo_original>
